<compile_context>
chip_gen: v7x
topology: tpu7x:2x2x1
jax: 0.10.0
libtpu: 0.0.40
codegen_flags: <defaults>
</compile_context>

<pallas_src>
import jax
import jax.numpy as jnp
import numpy as np
from jax import lax
from jax.experimental import pallas as pl
from jax.experimental.pallas import tpu as pltpu


def _lstm_net_kernel(xp_ref, whh0_ref, wih1_ref, whh1_ref, b1_ref, h_out_ref):
    """xp_ref:   (T, B, 4H) layer-0 input projection incl. bias, time-major.
       whh0_ref: (H, 4H)    layer-0 recurrent weights (transposed).
       wih1_ref: (H, 4H)    layer-1 input weights (transposed).
       whh1_ref: (H, 4H)    layer-1 recurrent weights (transposed).
       b1_ref:   (1, 4H)    folded b_ih_l1 + b_hh_l1.
       h_out_ref:(B, H)     last-step layer-1 hidden state (lane-dense).
    """
    T, B, G = xp_ref.shape
    H = G // 4

    def gates_to_hc(gates, c_prev):
        # PyTorch gate order: i, f, g, o
        i = jax.nn.sigmoid(gates[:, 0 * H:1 * H])
        f = jax.nn.sigmoid(gates[:, 1 * H:2 * H])
        g = jnp.tanh(gates[:, 2 * H:3 * H])
        o = jax.nn.sigmoid(gates[:, 3 * H:4 * H])
        c_new = f * c_prev + i * g
        h_new = o * jnp.tanh(c_new)
        return h_new, c_new

    # h0/c0 = zeros (matches torch.zeros init in forward()). State stays in
    # vregs for the whole recurrence -- no VMEM scratch round-trips.
    h0 = jnp.zeros((B, H), jnp.float32)
    c0 = jnp.zeros((B, H), jnp.float32)
    h1 = jnp.zeros((B, H), jnp.float32)
    c1 = jnp.zeros((B, H), jnp.float32)

    # Fully unrolled time loop (T is small and static). RHS weights are read
    # from their VMEM refs at each use (not pinned in vregs across the body).
    for t in range(T):
        # Layer-1 recurrent term depends only on h1_{t-1}: issue it first so
        # it can be scheduled to overlap with layer-0 of this step.
        g1_rec = jnp.dot(h1, whh1_ref[...],
                         preferred_element_type=jnp.float32)

        # Layer 0: input projection was hoisted; only the recurrent dot left.
        g0 = xp_ref[t] + jnp.dot(h0, whh0_ref[...],
                                 preferred_element_type=jnp.float32)
        h0, c0 = gates_to_hc(g0, c0)

        # Layer 1: only this K=H dot sits on the critical path after h0_t.
        g1 = (jnp.dot(h0, wih1_ref[...], preferred_element_type=jnp.float32)
              + g1_rec + b1_ref[...])
        h1, c1 = gates_to_hc(g1, c1)

    # Lane-dense (B, H) store; Linear(H, 1) happens in the XLA epilogue.
    h_out_ref[...] = h1


def lstm_net_forward(x, params):
    """x: (B, T, 6) float32 (features 0..4 continuous, feature 5 = month id).
    Returns (B, 1) float32."""
    H = params["whh0T"].shape[0]
    B, T, _ = x.shape

    month = x[:, :, 5].astype(jnp.int32)                    # (B, T)
    feats = x[:, :, :5].astype(jnp.float32)                 # (B, T, 5)

    # Only input-dependent prep here; emb_proj (= emb @ Wih0[:E] + b0) and
    # feat_wT (= Wih0[E:]) are precomputed constants from init_params.
    #   X_proj[b,t] = emb_proj[month[b,t]] + feats[b,t] @ feat_wT
    feat_proj = jnp.einsum("btf,fg->btg", feats, params["feat_wT"])
    x_proj = params["emb_proj"][month] + feat_proj           # (B, T, 4H)
    x_proj_tm = jnp.transpose(x_proj, (1, 0, 2))              # (T, B, 4H)

    h_last = pl.pallas_call(
        _lstm_net_kernel,
        out_shape=jax.ShapeDtypeStruct((B, H), jnp.float32),
        in_specs=[pl.BlockSpec(memory_space=pltpu.MemorySpace.VMEM)] * 5,
        out_specs=pl.BlockSpec(memory_space=pltpu.MemorySpace.VMEM),
    )(x_proj_tm, params["whh0T"], params["wih1T"], params["whh1T"],
      params["b1"])

    # self.out(out[:, -1, :]) with out_features=1 — done lane-dense in XLA.
    return h_last @ params["woutT"] + params["bout"]


lstm_net_forward_jit = jax.jit(lstm_net_forward)


def reference_forward(x, params):
    """Pure-JAX reference mirroring the PyTorch forward exactly."""
    month = x[:, :, 5].astype(jnp.int32)
    emb = jnp.take(params["emb"], month, axis=0)
    inp = jnp.concatenate([emb, x[:, :, :5]], axis=2)
    B, T, _ = inp.shape
    H = params["whh0T"].shape[0]

    def cell(x_t, h, c, wihT, whhT, b):
        gates = x_t @ wihT + h @ whhT + b
        i = jax.nn.sigmoid(gates[:, :H])
        f = jax.nn.sigmoid(gates[:, H:2 * H])
        g = jnp.tanh(gates[:, 2 * H:3 * H])
        o = jax.nn.sigmoid(gates[:, 3 * H:])
        c = f * c + i * g
        h = o * jnp.tanh(c)
        return h, c

    h0 = jnp.zeros((B, H), jnp.float32)
    c0 = jnp.zeros((B, H), jnp.float32)
    h1 = jnp.zeros((B, H), jnp.float32)
    c1 = jnp.zeros((B, H), jnp.float32)

    def step(carry, x_t):
        h0, c0, h1, c1 = carry
        h0, c0 = cell(x_t, h0, c0, params["wih0T"], params["whh0T"],
                      params["b0"])
        h1, c1 = cell(h0, h1, c1, params["wih1T"], params["whh1T"],
                      params["b1"])
        return (h0, c0, h1, c1), None

    (h0, c0, h1, c1), _ = lax.scan(step, (h0, c0, h1, c1),
                                   jnp.transpose(inp, (1, 0, 2)))
    return h1 @ params["woutT"] + params["bout"]


def init_params(key, in_dim=5, embedding_dim=11, hidden_dim=128):
    """Deterministic init matching PyTorch parameter shapes (weights stored
    pre-transposed for x @ W.T-style matmuls).  b = b_ih + b_hh folded.
    All input-independent kernel prep (emb_proj, feat_wT) is computed here
    once, not per forward call."""
    NUM_MONTH = 12
    din = in_dim + embedding_dim
    H = hidden_dim
    E = embedding_dim
    k = 1.0 / np.sqrt(H)
    keys = jax.random.split(key, 10)

    def u(key, shape):
        return jax.random.uniform(key, shape, jnp.float32, -k, k)

    emb = jax.random.normal(keys[0], (NUM_MONTH + 1, E), jnp.float32)
    wih0T = u(keys[1], (din, 4 * H))          # weight_ih_l0.T  (Din, 4H)
    whh0T = u(keys[2], (H, 4 * H))            # weight_hh_l0.T  (H, 4H)
    b0 = u(keys[3], (1, 4 * H)) + u(keys[4], (1, 4 * H))
    wih1T = u(keys[5], (H, 4 * H))            # weight_ih_l1.T  (H, 4H)
    whh1T = u(keys[6], (H, 4 * H))            # weight_hh_l1.T  (H, 4H)
    b1 = u(keys[7], (1, 4 * H)) + u(keys[8], (1, 4 * H))
    woutT = u(keys[9], (H, 1))                # Linear(H, 1).weight.T
    bout = jnp.zeros((1, 1), jnp.float32)

    params = {
        # raw (reference) parameters
        "emb": emb, "wih0T": wih0T, "whh0T": whh0T, "b0": b0,
        "wih1T": wih1T, "whh1T": whh1T, "b1": b1,
        "woutT": woutT, "bout": bout,
        # precomputed constants for the kernel path:
        #   emb_proj[m] = emb[m] @ Wih0[:E] + b0      (13, 4H)
        #   feat_wT     = Wih0[E:]                    (5, 4H)
        "emb_proj": emb @ wih0T[:E] + b0,
        "feat_wT": wih0T[E:],
    }
    return params


if __name__ == "__main__":
    B, T = 2, 8
    in_dim, embedding_dim, hidden_dim = 5, 11, 128

    key = jax.random.PRNGKey(0)
    k_param, k_feat, k_month = jax.random.split(key, 3)

    params = init_params(k_param, in_dim, embedding_dim, hidden_dim)

    feats = jax.random.normal(k_feat, (B, T, in_dim), jnp.float32)
    month = jax.random.randint(k_month, (B, T), 0, 13).astype(jnp.float32)
    x = jnp.concatenate([feats, month[..., None]], axis=2)      # (B, T, 6)

    out = jax.block_until_ready(lstm_net_forward_jit(x, params))
    ref = jax.block_until_ready(reference_forward(x, params))

    assert out.shape == (B, 1), out.shape
    np.testing.assert_allclose(np.asarray(out), np.asarray(ref),
                               rtol=1e-4, atol=1e-4)
    print("KERNEL_OK")
</pallas_src>

<mosaic_0001>
module attributes {stable_mosaic.version = 11 : i64} {
  func.func @_lstm_net_kernel(%arg0: memref<8x2x512xf32, #tpu.memory_space<vmem>>, %arg1: memref<128x512xf32, #tpu.memory_space<vmem>>, %arg2: memref<128x512xf32, #tpu.memory_space<vmem>>, %arg3: memref<128x512xf32, #tpu.memory_space<vmem>>, %arg4: memref<1x512xf32, #tpu.memory_space<vmem>>, %arg5: memref<2x128xf32, #tpu.memory_space<vmem>>) attributes {dimension_semantics = [], scalar_prefetch = 0 : i64, scratch_operands = 0 : i64, tpu.core_type = #tpu.core_type<tc>} {
    %cst = arith.constant 0.000000e+00 : f32
    %0 = vector.broadcast %cst : f32 to vector<2x128xf32>
    %cst_0 = arith.constant 0.000000e+00 : f32
    %1 = vector.broadcast %cst_0 : f32 to vector<2x128xf32>
    %cst_1 = arith.constant 0.000000e+00 : f32
    %2 = vector.broadcast %cst_1 : f32 to vector<2x128xf32>
    %cst_2 = arith.constant 0.000000e+00 : f32
    %3 = vector.broadcast %cst_2 : f32 to vector<2x128xf32>
    %c0 = arith.constant 0 : index
    %c0_3 = arith.constant 0 : index
    %4 = vector.load %arg3[%c0, %c0_3] : memref<128x512xf32, #tpu.memory_space<vmem>>, vector<128x512xf32>
    %cst_4 = arith.constant dense<0.000000e+00> : vector<2x512xf32>
    %5 = tpu.matmul %2, %4, %cst_4 {dimension_numbers = #tpu.dot_dimension_numbers<[1], [0], [0], [1], [0, 0, 1, 1], [], []>} : vector<2x128xf32>, vector<128x512xf32>, vector<2x512xf32> -> vector<2x512xf32>
    %c0_5 = arith.constant 0 : index
    %c0_6 = arith.constant 0 : index
    %c0_7 = arith.constant 0 : index
    %6 = vector.load %arg0[%c0_5, %c0_6, %c0_7] : memref<8x2x512xf32, #tpu.memory_space<vmem>>, vector<1x2x512xf32>
    %7 = vector.shape_cast %6 : vector<1x2x512xf32> to vector<2x512xf32>
    %c0_8 = arith.constant 0 : index
    %c0_9 = arith.constant 0 : index
    %8 = vector.load %arg1[%c0_8, %c0_9] : memref<128x512xf32, #tpu.memory_space<vmem>>, vector<128x512xf32>
    %cst_10 = arith.constant dense<0.000000e+00> : vector<2x512xf32>
    %9 = tpu.matmul %0, %8, %cst_10 {dimension_numbers = #tpu.dot_dimension_numbers<[1], [0], [0], [1], [0, 0, 1, 1], [], []>} : vector<2x128xf32>, vector<128x512xf32>, vector<2x512xf32> -> vector<2x512xf32>
    %10 = arith.addf %7, %9 : vector<2x512xf32>
    %11 = vector.extract_strided_slice %10 {offsets = [0, 0], sizes = [2, 128], strides = [1, 1]} : vector<2x512xf32> to vector<2x128xf32>
    %12 = arith.negf %11 : vector<2x128xf32>
    %13 = math.exp %12 : vector<2x128xf32>
    %cst_11 = arith.constant 1.000000e+00 : f32
    %14 = vector.broadcast %cst_11 : f32 to vector<2x128xf32>
    %15 = arith.addf %14, %13 : vector<2x128xf32>
    %16 = arith.divf %14, %15 : vector<2x128xf32>
    %17 = vector.extract_strided_slice %10 {offsets = [0, 128], sizes = [2, 128], strides = [1, 1]} : vector<2x512xf32> to vector<2x128xf32>
    %18 = arith.negf %17 : vector<2x128xf32>
    %19 = math.exp %18 : vector<2x128xf32>
    %cst_12 = arith.constant 1.000000e+00 : f32
    %20 = vector.broadcast %cst_12 : f32 to vector<2x128xf32>
    %21 = arith.addf %20, %19 : vector<2x128xf32>
    %22 = arith.divf %20, %21 : vector<2x128xf32>
    %23 = vector.extract_strided_slice %10 {offsets = [0, 256], sizes = [2, 128], strides = [1, 1]} : vector<2x512xf32> to vector<2x128xf32>
    %24 = math.tanh %23 : vector<2x128xf32>
    %25 = vector.extract_strided_slice %10 {offsets = [0, 384], sizes = [2, 128], strides = [1, 1]} : vector<2x512xf32> to vector<2x128xf32>
    %26 = arith.negf %25 : vector<2x128xf32>
    %27 = math.exp %26 : vector<2x128xf32>
    %cst_13 = arith.constant 1.000000e+00 : f32
    %28 = vector.broadcast %cst_13 : f32 to vector<2x128xf32>
    %29 = arith.addf %28, %27 : vector<2x128xf32>
    %30 = arith.divf %28, %29 : vector<2x128xf32>
    %31 = arith.mulf %22, %1 : vector<2x128xf32>
    %32 = arith.mulf %16, %24 : vector<2x128xf32>
    %33 = arith.addf %31, %32 : vector<2x128xf32>
    %34 = math.tanh %33 : vector<2x128xf32>
    %35 = arith.mulf %30, %34 : vector<2x128xf32>
    %c0_14 = arith.constant 0 : index
    %c0_15 = arith.constant 0 : index
    %36 = vector.load %arg2[%c0_14, %c0_15] : memref<128x512xf32, #tpu.memory_space<vmem>>, vector<128x512xf32>
    %cst_16 = arith.constant dense<0.000000e+00> : vector<2x512xf32>
    %37 = tpu.matmul %35, %36, %cst_16 {dimension_numbers = #tpu.dot_dimension_numbers<[1], [0], [0], [1], [0, 0, 1, 1], [], []>} : vector<2x128xf32>, vector<128x512xf32>, vector<2x512xf32> -> vector<2x512xf32>
    %38 = arith.addf %37, %5 : vector<2x512xf32>
    %c0_17 = arith.constant 0 : index
    %c0_18 = arith.constant 0 : index
    %39 = vector.load %arg4[%c0_17, %c0_18] : memref<1x512xf32, #tpu.memory_space<vmem>>, vector<1x512xf32>
    %40 = vector.broadcast %39 : vector<1x512xf32> to vector<2x512xf32>
    %41 = arith.addf %38, %40 : vector<2x512xf32>
    %42 = vector.extract_strided_slice %41 {offsets = [0, 0], sizes = [2, 128], strides = [1, 1]} : vector<2x512xf32> to vector<2x128xf32>
    %43 = arith.negf %42 : vector<2x128xf32>
    %44 = math.exp %43 : vector<2x128xf32>
    %cst_19 = arith.constant 1.000000e+00 : f32
    %45 = vector.broadcast %cst_19 : f32 to vector<2x128xf32>
    %46 = arith.addf %45, %44 : vector<2x128xf32>
    %47 = arith.divf %45, %46 : vector<2x128xf32>
    %48 = vector.extract_strided_slice %41 {offsets = [0, 128], sizes = [2, 128], strides = [1, 1]} : vector<2x512xf32> to vector<2x128xf32>
    %49 = arith.negf %48 : vector<2x128xf32>
    %50 = math.exp %49 : vector<2x128xf32>
    %cst_20 = arith.constant 1.000000e+00 : f32
    %51 = vector.broadcast %cst_20 : f32 to vector<2x128xf32>
    %52 = arith.addf %51, %50 : vector<2x128xf32>
    %53 = arith.divf %51, %52 : vector<2x128xf32>
    %54 = vector.extract_strided_slice %41 {offsets = [0, 256], sizes = [2, 128], strides = [1, 1]} : vector<2x512xf32> to vector<2x128xf32>
    %55 = math.tanh %54 : vector<2x128xf32>
    %56 = vector.extract_strided_slice %41 {offsets = [0, 384], sizes = [2, 128], strides = [1, 1]} : vector<2x512xf32> to vector<2x128xf32>
    %57 = arith.negf %56 : vector<2x128xf32>
    %58 = math.exp %57 : vector<2x128xf32>
    %cst_21 = arith.constant 1.000000e+00 : f32
    %59 = vector.broadcast %cst_21 : f32 to vector<2x128xf32>
    %60 = arith.addf %59, %58 : vector<2x128xf32>
    %61 = arith.divf %59, %60 : vector<2x128xf32>
    %62 = arith.mulf %53, %3 : vector<2x128xf32>
    %63 = arith.mulf %47, %55 : vector<2x128xf32>
    %64 = arith.addf %62, %63 : vector<2x128xf32>
    %65 = math.tanh %64 : vector<2x128xf32>
    %66 = arith.mulf %61, %65 : vector<2x128xf32>
    %c0_22 = arith.constant 0 : index
    %c0_23 = arith.constant 0 : index
    %67 = vector.load %arg3[%c0_22, %c0_23] : memref<128x512xf32, #tpu.memory_space<vmem>>, vector<128x512xf32>
    %cst_24 = arith.constant dense<0.000000e+00> : vector<2x512xf32>
    %68 = tpu.matmul %66, %67, %cst_24 {dimension_numbers = #tpu.dot_dimension_numbers<[1], [0], [0], [1], [0, 0, 1, 1], [], []>} : vector<2x128xf32>, vector<128x512xf32>, vector<2x512xf32> -> vector<2x512xf32>
    %c1 = arith.constant 1 : index
    %c0_25 = arith.constant 0 : index
    %c0_26 = arith.constant 0 : index
    %69 = vector.load %arg0[%c1, %c0_25, %c0_26] : memref<8x2x512xf32, #tpu.memory_space<vmem>>, vector<1x2x512xf32>
    %70 = vector.shape_cast %69 : vector<1x2x512xf32> to vector<2x512xf32>
    %c0_27 = arith.constant 0 : index
    %c0_28 = arith.constant 0 : index
    %71 = vector.load %arg1[%c0_27, %c0_28] : memref<128x512xf32, #tpu.memory_space<vmem>>, vector<128x512xf32>
    %cst_29 = arith.constant dense<0.000000e+00> : vector<2x512xf32>
    %72 = tpu.matmul %35, %71, %cst_29 {dimension_numbers = #tpu.dot_dimension_numbers<[1], [0], [0], [1], [0, 0, 1, 1], [], []>} : vector<2x128xf32>, vector<128x512xf32>, vector<2x512xf32> -> vector<2x512xf32>
    %73 = arith.addf %70, %72 : vector<2x512xf32>
    %74 = vector.extract_strided_slice %73 {offsets = [0, 0], sizes = [2, 128], strides = [1, 1]} : vector<2x512xf32> to vector<2x128xf32>
    %75 = arith.negf %74 : vector<2x128xf32>
    %76 = math.exp %75 : vector<2x128xf32>
    %cst_30 = arith.constant 1.000000e+00 : f32
    %77 = vector.broadcast %cst_30 : f32 to vector<2x128xf32>
    %78 = arith.addf %77, %76 : vector<2x128xf32>
    %79 = arith.divf %77, %78 : vector<2x128xf32>
    %80 = vector.extract_strided_slice %73 {offsets = [0, 128], sizes = [2, 128], strides = [1, 1]} : vector<2x512xf32> to vector<2x128xf32>
    %81 = arith.negf %80 : vector<2x128xf32>
    %82 = math.exp %81 : vector<2x128xf32>
    %cst_31 = arith.constant 1.000000e+00 : f32
    %83 = vector.broadcast %cst_31 : f32 to vector<2x128xf32>
    %84 = arith.addf %83, %82 : vector<2x128xf32>
    %85 = arith.divf %83, %84 : vector<2x128xf32>
    %86 = vector.extract_strided_slice %73 {offsets = [0, 256], sizes = [2, 128], strides = [1, 1]} : vector<2x512xf32> to vector<2x128xf32>
    %87 = math.tanh %86 : vector<2x128xf32>
    %88 = vector.extract_strided_slice %73 {offsets = [0, 384], sizes = [2, 128], strides = [1, 1]} : vector<2x512xf32> to vector<2x128xf32>
    %89 = arith.negf %88 : vector<2x128xf32>
    %90 = math.exp %89 : vector<2x128xf32>
    %cst_32 = arith.constant 1.000000e+00 : f32
    %91 = vector.broadcast %cst_32 : f32 to vector<2x128xf32>
    %92 = arith.addf %91, %90 : vector<2x128xf32>
    %93 = arith.divf %91, %92 : vector<2x128xf32>
    %94 = arith.mulf %85, %33 : vector<2x128xf32>
    %95 = arith.mulf %79, %87 : vector<2x128xf32>
    %96 = arith.addf %94, %95 : vector<2x128xf32>
    %97 = math.tanh %96 : vector<2x128xf32>
    %98 = arith.mulf %93, %97 : vector<2x128xf32>
    %c0_33 = arith.constant 0 : index
    %c0_34 = arith.constant 0 : index
    %99 = vector.load %arg2[%c0_33, %c0_34] : memref<128x512xf32, #tpu.memory_space<vmem>>, vector<128x512xf32>
    %cst_35 = arith.constant dense<0.000000e+00> : vector<2x512xf32>
    %100 = tpu.matmul %98, %99, %cst_35 {dimension_numbers = #tpu.dot_dimension_numbers<[1], [0], [0], [1], [0, 0, 1, 1], [], []>} : vector<2x128xf32>, vector<128x512xf32>, vector<2x512xf32> -> vector<2x512xf32>
    %101 = arith.addf %100, %68 : vector<2x512xf32>
    %c0_36 = arith.constant 0 : index
    %c0_37 = arith.constant 0 : index
    %102 = vector.load %arg4[%c0_36, %c0_37] : memref<1x512xf32, #tpu.memory_space<vmem>>, vector<1x512xf32>
    %103 = vector.broadcast %102 : vector<1x512xf32> to vector<2x512xf32>
    %104 = arith.addf %101, %103 : vector<2x512xf32>
    %105 = vector.extract_strided_slice %104 {offsets = [0, 0], sizes = [2, 128], strides = [1, 1]} : vector<2x512xf32> to vector<2x128xf32>
    %106 = arith.negf %105 : vector<2x128xf32>
    %107 = math.exp %106 : vector<2x128xf32>
    %cst_38 = arith.constant 1.000000e+00 : f32
    %108 = vector.broadcast %cst_38 : f32 to vector<2x128xf32>
    %109 = arith.addf %108, %107 : vector<2x128xf32>
    %110 = arith.divf %108, %109 : vector<2x128xf32>
    %111 = vector.extract_strided_slice %104 {offsets = [0, 128], sizes = [2, 128], strides = [1, 1]} : vector<2x512xf32> to vector<2x128xf32>
    %112 = arith.negf %111 : vector<2x128xf32>
    %113 = math.exp %112 : vector<2x128xf32>
    %cst_39 = arith.constant 1.000000e+00 : f32
    %114 = vector.broadcast %cst_39 : f32 to vector<2x128xf32>
    %115 = arith.addf %114, %113 : vector<2x128xf32>
    %116 = arith.divf %114, %115 : vector<2x128xf32>
    %117 = vector.extract_strided_slice %104 {offsets = [0, 256], sizes = [2, 128], strides = [1, 1]} : vector<2x512xf32> to vector<2x128xf32>
    %118 = math.tanh %117 : vector<2x128xf32>
    %119 = vector.extract_strided_slice %104 {offsets = [0, 384], sizes = [2, 128], strides = [1, 1]} : vector<2x512xf32> to vector<2x128xf32>
    %120 = arith.negf %119 : vector<2x128xf32>
    %121 = math.exp %120 : vector<2x128xf32>
    %cst_40 = arith.constant 1.000000e+00 : f32
    %122 = vector.broadcast %cst_40 : f32 to vector<2x128xf32>
    %123 = arith.addf %122, %121 : vector<2x128xf32>
    %124 = arith.divf %122, %123 : vector<2x128xf32>
    %125 = arith.mulf %116, %64 : vector<2x128xf32>
    %126 = arith.mulf %110, %118 : vector<2x128xf32>
    %127 = arith.addf %125, %126 : vector<2x128xf32>
    %128 = math.tanh %127 : vector<2x128xf32>
    %129 = arith.mulf %124, %128 : vector<2x128xf32>
    %c0_41 = arith.constant 0 : index
    %c0_42 = arith.constant 0 : index
    %130 = vector.load %arg3[%c0_41, %c0_42] : memref<128x512xf32, #tpu.memory_space<vmem>>, vector<128x512xf32>
    %cst_43 = arith.constant dense<0.000000e+00> : vector<2x512xf32>
    %131 = tpu.matmul %129, %130, %cst_43 {dimension_numbers = #tpu.dot_dimension_numbers<[1], [0], [0], [1], [0, 0, 1, 1], [], []>} : vector<2x128xf32>, vector<128x512xf32>, vector<2x512xf32> -> vector<2x512xf32>
    %c2 = arith.constant 2 : index
    %c0_44 = arith.constant 0 : index
    %c0_45 = arith.constant 0 : index
    %132 = vector.load %arg0[%c2, %c0_44, %c0_45] : memref<8x2x512xf32, #tpu.memory_space<vmem>>, vector<1x2x512xf32>
    %133 = vector.shape_cast %132 : vector<1x2x512xf32> to vector<2x512xf32>
    %c0_46 = arith.constant 0 : index
    %c0_47 = arith.constant 0 : index
    %134 = vector.load %arg1[%c0_46, %c0_47] : memref<128x512xf32, #tpu.memory_space<vmem>>, vector<128x512xf32>
    %cst_48 = arith.constant dense<0.000000e+00> : vector<2x512xf32>
    %135 = tpu.matmul %98, %134, %cst_48 {dimension_numbers = #tpu.dot_dimension_numbers<[1], [0], [0], [1], [0, 0, 1, 1], [], []>} : vector<2x128xf32>, vector<128x512xf32>, vector<2x512xf32> -> vector<2x512xf32>
    %136 = arith.addf %133, %135 : vector<2x512xf32>
    %137 = vector.extract_strided_slice %136 {offsets = [0, 0], sizes = [2, 128], strides = [1, 1]} : vector<2x512xf32> to vector<2x128xf32>
    %138 = arith.negf %137 : vector<2x128xf32>
    %139 = math.exp %138 : vector<2x128xf32>
    %cst_49 = arith.constant 1.000000e+00 : f32
    %140 = vector.broadcast %cst_49 : f32 to vector<2x128xf32>
    %141 = arith.addf %140, %139 : vector<2x128xf32>
    %142 = arith.divf %140, %141 : vector<2x128xf32>
    %143 = vector.extract_strided_slice %136 {offsets = [0, 128], sizes = [2, 128], strides = [1, 1]} : vector<2x512xf32> to vector<2x128xf32>
    %144 = arith.negf %143 : vector<2x128xf32>
    %145 = math.exp %144 : vector<2x128xf32>
    %cst_50 = arith.constant 1.000000e+00 : f32
    %146 = vector.broadcast %cst_50 : f32 to vector<2x128xf32>
    %147 = arith.addf %146, %145 : vector<2x128xf32>
    %148 = arith.divf %146, %147 : vector<2x128xf32>
    %149 = vector.extract_strided_slice %136 {offsets = [0, 256], sizes = [2, 128], strides = [1, 1]} : vector<2x512xf32> to vector<2x128xf32>
    %150 = math.tanh %149 : vector<2x128xf32>
    %151 = vector.extract_strided_slice %136 {offsets = [0, 384], sizes = [2, 128], strides = [1, 1]} : vector<2x512xf32> to vector<2x128xf32>
    %152 = arith.negf %151 : vector<2x128xf32>
    %153 = math.exp %152 : vector<2x128xf32>
    %cst_51 = arith.constant 1.000000e+00 : f32
    %154 = vector.broadcast %cst_51 : f32 to vector<2x128xf32>
    %155 = arith.addf %154, %153 : vector<2x128xf32>
    %156 = arith.divf %154, %155 : vector<2x128xf32>
    %157 = arith.mulf %148, %96 : vector<2x128xf32>
    %158 = arith.mulf %142, %150 : vector<2x128xf32>
    %159 = arith.addf %157, %158 : vector<2x128xf32>
    %160 = math.tanh %159 : vector<2x128xf32>
    %161 = arith.mulf %156, %160 : vector<2x128xf32>
    %c0_52 = arith.constant 0 : index
    %c0_53 = arith.constant 0 : index
    %162 = vector.load %arg2[%c0_52, %c0_53] : memref<128x512xf32, #tpu.memory_space<vmem>>, vector<128x512xf32>
    %cst_54 = arith.constant dense<0.000000e+00> : vector<2x512xf32>
    %163 = tpu.matmul %161, %162, %cst_54 {dimension_numbers = #tpu.dot_dimension_numbers<[1], [0], [0], [1], [0, 0, 1, 1], [], []>} : vector<2x128xf32>, vector<128x512xf32>, vector<2x512xf32> -> vector<2x512xf32>
    %164 = arith.addf %163, %131 : vector<2x512xf32>
    %c0_55 = arith.constant 0 : index
    %c0_56 = arith.constant 0 : index
    %165 = vector.load %arg4[%c0_55, %c0_56] : memref<1x512xf32, #tpu.memory_space<vmem>>, vector<1x512xf32>
    %166 = vector.broadcast %165 : vector<1x512xf32> to vector<2x512xf32>
    %167 = arith.addf %164, %166 : vector<2x512xf32>
    %168 = vector.extract_strided_slice %167 {offsets = [0, 0], sizes = [2, 128], strides = [1, 1]} : vector<2x512xf32> to vector<2x128xf32>
    %169 = arith.negf %168 : vector<2x128xf32>
    %170 = math.exp %169 : vector<2x128xf32>
    %cst_57 = arith.constant 1.000000e+00 : f32
    %171 = vector.broadcast %cst_57 : f32 to vector<2x128xf32>
    %172 = arith.addf %171, %170 : vector<2x128xf32>
    %173 = arith.divf %171, %172 : vector<2x128xf32>
    %174 = vector.extract_strided_slice %167 {offsets = [0, 128], sizes = [2, 128], strides = [1, 1]} : vector<2x512xf32> to vector<2x128xf32>
    %175 = arith.negf %174 : vector<2x128xf32>
    %176 = math.exp %175 : vector<2x128xf32>
    %cst_58 = arith.constant 1.000000e+00 : f32
    %177 = vector.broadcast %cst_58 : f32 to vector<2x128xf32>
    %178 = arith.addf %177, %176 : vector<2x128xf32>
    %179 = arith.divf %177, %178 : vector<2x128xf32>
    %180 = vector.extract_strided_slice %167 {offsets = [0, 256], sizes = [2, 128], strides = [1, 1]} : vector<2x512xf32> to vector<2x128xf32>
    %181 = math.tanh %180 : vector<2x128xf32>
    %182 = vector.extract_strided_slice %167 {offsets = [0, 384], sizes = [2, 128], strides = [1, 1]} : vector<2x512xf32> to vector<2x128xf32>
    %183 = arith.negf %182 : vector<2x128xf32>
    %184 = math.exp %183 : vector<2x128xf32>
    %cst_59 = arith.constant 1.000000e+00 : f32
    %185 = vector.broadcast %cst_59 : f32 to vector<2x128xf32>
    %186 = arith.addf %185, %184 : vector<2x128xf32>
    %187 = arith.divf %185, %186 : vector<2x128xf32>
    %188 = arith.mulf %179, %127 : vector<2x128xf32>
    %189 = arith.mulf %173, %181 : vector<2x128xf32>
    %190 = arith.addf %188, %189 : vector<2x128xf32>
    %191 = math.tanh %190 : vector<2x128xf32>
    %192 = arith.mulf %187, %191 : vector<2x128xf32>
    %c0_60 = arith.constant 0 : index
    %c0_61 = arith.constant 0 : index
    %193 = vector.load %arg3[%c0_60, %c0_61] : memref<128x512xf32, #tpu.memory_space<vmem>>, vector<128x512xf32>
    %cst_62 = arith.constant dense<0.000000e+00> : vector<2x512xf32>
    %194 = tpu.matmul %192, %193, %cst_62 {dimension_numbers = #tpu.dot_dimension_numbers<[1], [0], [0], [1], [0, 0, 1, 1], [], []>} : vector<2x128xf32>, vector<128x512xf32>, vector<2x512xf32> -> vector<2x512xf32>
    %c3 = arith.constant 3 : index
    %c0_63 = arith.constant 0 : index
    %c0_64 = arith.constant 0 : index
    %195 = vector.load %arg0[%c3, %c0_63, %c0_64] : memref<8x2x512xf32, #tpu.memory_space<vmem>>, vector<1x2x512xf32>
    %196 = vector.shape_cast %195 : vector<1x2x512xf32> to vector<2x512xf32>
    %c0_65 = arith.constant 0 : index
    %c0_66 = arith.constant 0 : index
    %197 = vector.load %arg1[%c0_65, %c0_66] : memref<128x512xf32, #tpu.memory_space<vmem>>, vector<128x512xf32>
    %cst_67 = arith.constant dense<0.000000e+00> : vector<2x512xf32>
    %198 = tpu.matmul %161, %197, %cst_67 {dimension_numbers = #tpu.dot_dimension_numbers<[1], [0], [0], [1], [0, 0, 1, 1], [], []>} : vector<2x128xf32>, vector<128x512xf32>, vector<2x512xf32> -> vector<2x512xf32>
    %199 = arith.addf %196, %198 : vector<2x512xf32>
    %200 = vector.extract_strided_slice %199 {offsets = [0, 0], sizes = [2, 128], strides = [1, 1]} : vector<2x512xf32> to vector<2x128xf32>
    %201 = arith.negf %200 : vector<2x128xf32>
    %202 = math.exp %201 : vector<2x128xf32>
    %cst_68 = arith.constant 1.000000e+00 : f32
    %203 = vector.broadcast %cst_68 : f32 to vector<2x128xf32>
    %204 = arith.addf %203, %202 : vector<2x128xf32>
    %205 = arith.divf %203, %204 : vector<2x128xf32>
    %206 = vector.extract_strided_slice %199 {offsets = [0, 128], sizes = [2, 128], strides = [1, 1]} : vector<2x512xf32> to vector<2x128xf32>
    %207 = arith.negf %206 : vector<2x128xf32>
    %208 = math.exp %207 : vector<2x128xf32>
    %cst_69 = arith.constant 1.000000e+00 : f32
    %209 = vector.broadcast %cst_69 : f32 to vector<2x128xf32>
    %210 = arith.addf %209, %208 : vector<2x128xf32>
    %211 = arith.divf %209, %210 : vector<2x128xf32>
    %212 = vector.extract_strided_slice %199 {offsets = [0, 256], sizes = [2, 128], strides = [1, 1]} : vector<2x512xf32> to vector<2x128xf32>
    %213 = math.tanh %212 : vector<2x128xf32>
    %214 = vector.extract_strided_slice %199 {offsets = [0, 384], sizes = [2, 128], strides = [1, 1]} : vector<2x512xf32> to vector<2x128xf32>
    %215 = arith.negf %214 : vector<2x128xf32>
    %216 = math.exp %215 : vector<2x128xf32>
    %cst_70 = arith.constant 1.000000e+00 : f32
    %217 = vector.broadcast %cst_70 : f32 to vector<2x128xf32>
    %218 = arith.addf %217, %216 : vector<2x128xf32>
    %219 = arith.divf %217, %218 : vector<2x128xf32>
    %220 = arith.mulf %211, %159 : vector<2x128xf32>
    %221 = arith.mulf %205, %213 : vector<2x128xf32>
    %222 = arith.addf %220, %221 : vector<2x128xf32>
    %223 = math.tanh %222 : vector<2x128xf32>
    %224 = arith.mulf %219, %223 : vector<2x128xf32>
    %c0_71 = arith.constant 0 : index
    %c0_72 = arith.constant 0 : index
    %225 = vector.load %arg2[%c0_71, %c0_72] : memref<128x512xf32, #tpu.memory_space<vmem>>, vector<128x512xf32>
    %cst_73 = arith.constant dense<0.000000e+00> : vector<2x512xf32>
    %226 = tpu.matmul %224, %225, %cst_73 {dimension_numbers = #tpu.dot_dimension_numbers<[1], [0], [0], [1], [0, 0, 1, 1], [], []>} : vector<2x128xf32>, vector<128x512xf32>, vector<2x512xf32> -> vector<2x512xf32>
    %227 = arith.addf %226, %194 : vector<2x512xf32>
    %c0_74 = arith.constant 0 : index
    %c0_75 = arith.constant 0 : index
    %228 = vector.load %arg4[%c0_74, %c0_75] : memref<1x512xf32, #tpu.memory_space<vmem>>, vector<1x512xf32>
    %229 = vector.broadcast %228 : vector<1x512xf32> to vector<2x512xf32>
    %230 = arith.addf %227, %229 : vector<2x512xf32>
    %231 = vector.extract_strided_slice %230 {offsets = [0, 0], sizes = [2, 128], strides = [1, 1]} : vector<2x512xf32> to vector<2x128xf32>
    %232 = arith.negf %231 : vector<2x128xf32>
    %233 = math.exp %232 : vector<2x128xf32>
    %cst_76 = arith.constant 1.000000e+00 : f32
    %234 = vector.broadcast %cst_76 : f32 to vector<2x128xf32>
    %235 = arith.addf %234, %233 : vector<2x128xf32>
    %236 = arith.divf %234, %235 : vector<2x128xf32>
    %237 = vector.extract_strided_slice %230 {offsets = [0, 128], sizes = [2, 128], strides = [1, 1]} : vector<2x512xf32> to vector<2x128xf32>
    %238 = arith.negf %237 : vector<2x128xf32>
    %239 = math.exp %238 : vector<2x128xf32>
    %cst_77 = arith.constant 1.000000e+00 : f32
    %240 = vector.broadcast %cst_77 : f32 to vector<2x128xf32>
    %241 = arith.addf %240, %239 : vector<2x128xf32>
    %242 = arith.divf %240, %241 : vector<2x128xf32>
    %243 = vector.extract_strided_slice %230 {offsets = [0, 256], sizes = [2, 128], strides = [1, 1]} : vector<2x512xf32> to vector<2x128xf32>
    %244 = math.tanh %243 : vector<2x128xf32>
    %245 = vector.extract_strided_slice %230 {offsets = [0, 384], sizes = [2, 128], strides = [1, 1]} : vector<2x512xf32> to vector<2x128xf32>
    %246 = arith.negf %245 : vector<2x128xf32>
    %247 = math.exp %246 : vector<2x128xf32>
    %cst_78 = arith.constant 1.000000e+00 : f32
    %248 = vector.broadcast %cst_78 : f32 to vector<2x128xf32>
    %249 = arith.addf %248, %247 : vector<2x128xf32>
    %250 = arith.divf %248, %249 : vector<2x128xf32>
    %251 = arith.mulf %242, %190 : vector<2x128xf32>
    %252 = arith.mulf %236, %244 : vector<2x128xf32>
    %253 = arith.addf %251, %252 : vector<2x128xf32>
    %254 = math.tanh %253 : vector<2x128xf32>
    %255 = arith.mulf %250, %254 : vector<2x128xf32>
    %c0_79 = arith.constant 0 : index
    %c0_80 = arith.constant 0 : index
    %256 = vector.load %arg3[%c0_79, %c0_80] : memref<128x512xf32, #tpu.memory_space<vmem>>, vector<128x512xf32>
    %cst_81 = arith.constant dense<0.000000e+00> : vector<2x512xf32>
    %257 = tpu.matmul %255, %256, %cst_81 {dimension_numbers = #tpu.dot_dimension_numbers<[1], [0], [0], [1], [0, 0, 1, 1], [], []>} : vector<2x128xf32>, vector<128x512xf32>, vector<2x512xf32> -> vector<2x512xf32>
    %c4 = arith.constant 4 : index
    %c0_82 = arith.constant 0 : index
    %c0_83 = arith.constant 0 : index
    %258 = vector.load %arg0[%c4, %c0_82, %c0_83] : memref<8x2x512xf32, #tpu.memory_space<vmem>>, vector<1x2x512xf32>
    %259 = vector.shape_cast %258 : vector<1x2x512xf32> to vector<2x512xf32>
    %c0_84 = arith.constant 0 : index
    %c0_85 = arith.constant 0 : index
    %260 = vector.load %arg1[%c0_84, %c0_85] : memref<128x512xf32, #tpu.memory_space<vmem>>, vector<128x512xf32>
    %cst_86 = arith.constant dense<0.000000e+00> : vector<2x512xf32>
    %261 = tpu.matmul %224, %260, %cst_86 {dimension_numbers = #tpu.dot_dimension_numbers<[1], [0], [0], [1], [0, 0, 1, 1], [], []>} : vector<2x128xf32>, vector<128x512xf32>, vector<2x512xf32> -> vector<2x512xf32>
    %262 = arith.addf %259, %261 : vector<2x512xf32>
    %263 = vector.extract_strided_slice %262 {offsets = [0, 0], sizes = [2, 128], strides = [1, 1]} : vector<2x512xf32> to vector<2x128xf32>
    %264 = arith.negf %263 : vector<2x128xf32>
    %265 = math.exp %264 : vector<2x128xf32>
    %cst_87 = arith.constant 1.000000e+00 : f32
    %266 = vector.broadcast %cst_87 : f32 to vector<2x128xf32>
    %267 = arith.addf %266, %265 : vector<2x128xf32>
    %268 = arith.divf %266, %267 : vector<2x128xf32>
    %269 = vector.extract_strided_slice %262 {offsets = [0, 128], sizes = [2, 128], strides = [1, 1]} : vector<2x512xf32> to vector<2x128xf32>
    %270 = arith.negf %269 : vector<2x128xf32>
    %271 = math.exp %270 : vector<2x128xf32>
    %cst_88 = arith.constant 1.000000e+00 : f32
    %272 = vector.broadcast %cst_88 : f32 to vector<2x128xf32>
    %273 = arith.addf %272, %271 : vector<2x128xf32>
    %274 = arith.divf %272, %273 : vector<2x128xf32>
    %275 = vector.extract_strided_slice %262 {offsets = [0, 256], sizes = [2, 128], strides = [1, 1]} : vector<2x512xf32> to vector<2x128xf32>
    %276 = math.tanh %275 : vector<2x128xf32>
    %277 = vector.extract_strided_slice %262 {offsets = [0, 384], sizes = [2, 128], strides = [1, 1]} : vector<2x512xf32> to vector<2x128xf32>
    %278 = arith.negf %277 : vector<2x128xf32>
    %279 = math.exp %278 : vector<2x128xf32>
    %cst_89 = arith.constant 1.000000e+00 : f32
    %280 = vector.broadcast %cst_89 : f32 to vector<2x128xf32>
    %281 = arith.addf %280, %279 : vector<2x128xf32>
    %282 = arith.divf %280, %281 : vector<2x128xf32>
    %283 = arith.mulf %274, %222 : vector<2x128xf32>
    %284 = arith.mulf %268, %276 : vector<2x128xf32>
    %285 = arith.addf %283, %284 : vector<2x128xf32>
    %286 = math.tanh %285 : vector<2x128xf32>
    %287 = arith.mulf %282, %286 : vector<2x128xf32>
    %c0_90 = arith.constant 0 : index
    %c0_91 = arith.constant 0 : index
    %288 = vector.load %arg2[%c0_90, %c0_91] : memref<128x512xf32, #tpu.memory_space<vmem>>, vector<128x512xf32>
    %cst_92 = arith.constant dense<0.000000e+00> : vector<2x512xf32>
    %289 = tpu.matmul %287, %288, %cst_92 {dimension_numbers = #tpu.dot_dimension_numbers<[1], [0], [0], [1], [0, 0, 1, 1], [], []>} : vector<2x128xf32>, vector<128x512xf32>, vector<2x512xf32> -> vector<2x512xf32>
    %290 = arith.addf %289, %257 : vector<2x512xf32>
    %c0_93 = arith.constant 0 : index
    %c0_94 = arith.constant 0 : index
    %291 = vector.load %arg4[%c0_93, %c0_94] : memref<1x512xf32, #tpu.memory_space<vmem>>, vector<1x512xf32>
    %292 = vector.broadcast %291 : vector<1x512xf32> to vector<2x512xf32>
    %293 = arith.addf %290, %292 : vector<2x512xf32>
    %294 = vector.extract_strided_slice %293 {offsets = [0, 0], sizes = [2, 128], strides = [1, 1]} : vector<2x512xf32> to vector<2x128xf32>
    %295 = arith.negf %294 : vector<2x128xf32>
    %296 = math.exp %295 : vector<2x128xf32>
    %cst_95 = arith.constant 1.000000e+00 : f32
    %297 = vector.broadcast %cst_95 : f32 to vector<2x128xf32>
    %298 = arith.addf %297, %296 : vector<2x128xf32>
    %299 = arith.divf %297, %298 : vector<2x128xf32>
    %300 = vector.extract_strided_slice %293 {offsets = [0, 128], sizes = [2, 128], strides = [1, 1]} : vector<2x512xf32> to vector<2x128xf32>
    %301 = arith.negf %300 : vector<2x128xf32>
    %302 = math.exp %301 : vector<2x128xf32>
    %cst_96 = arith.constant 1.000000e+00 : f32
    %303 = vector.broadcast %cst_96 : f32 to vector<2x128xf32>
    %304 = arith.addf %303, %302 : vector<2x128xf32>
    %305 = arith.divf %303, %304 : vector<2x128xf32>
    %306 = vector.extract_strided_slice %293 {offsets = [0, 256], sizes = [2, 128], strides = [1, 1]} : vector<2x512xf32> to vector<2x128xf32>
    %307 = math.tanh %306 : vector<2x128xf32>
    %308 = vector.extract_strided_slice %293 {offsets = [0, 384], sizes = [2, 128], strides = [1, 1]} : vector<2x512xf32> to vector<2x128xf32>
    %309 = arith.negf %308 : vector<2x128xf32>
    %310 = math.exp %309 : vector<2x128xf32>
    %cst_97 = arith.constant 1.000000e+00 : f32
    %311 = vector.broadcast %cst_97 : f32 to vector<2x128xf32>
    %312 = arith.addf %311, %310 : vector<2x128xf32>
    %313 = arith.divf %311, %312 : vector<2x128xf32>
    %314 = arith.mulf %305, %253 : vector<2x128xf32>
    %315 = arith.mulf %299, %307 : vector<2x128xf32>
    %316 = arith.addf %314, %315 : vector<2x128xf32>
    %317 = math.tanh %316 : vector<2x128xf32>
    %318 = arith.mulf %313, %317 : vector<2x128xf32>
    %c0_98 = arith.constant 0 : index
    %c0_99 = arith.constant 0 : index
    %319 = vector.load %arg3[%c0_98, %c0_99] : memref<128x512xf32, #tpu.memory_space<vmem>>, vector<128x512xf32>
    %cst_100 = arith.constant dense<0.000000e+00> : vector<2x512xf32>
    %320 = tpu.matmul %318, %319, %cst_100 {dimension_numbers = #tpu.dot_dimension_numbers<[1], [0], [0], [1], [0, 0, 1, 1], [], []>} : vector<2x128xf32>, vector<128x512xf32>, vector<2x512xf32> -> vector<2x512xf32>
    %c5 = arith.constant 5 : index
    %c0_101 = arith.constant 0 : index
    %c0_102 = arith.constant 0 : index
    %321 = vector.load %arg0[%c5, %c0_101, %c0_102] : memref<8x2x512xf32, #tpu.memory_space<vmem>>, vector<1x2x512xf32>
    %322 = vector.shape_cast %321 : vector<1x2x512xf32> to vector<2x512xf32>
    %c0_103 = arith.constant 0 : index
    %c0_104 = arith.constant 0 : index
    %323 = vector.load %arg1[%c0_103, %c0_104] : memref<128x512xf32, #tpu.memory_space<vmem>>, vector<128x512xf32>
    %cst_105 = arith.constant dense<0.000000e+00> : vector<2x512xf32>
    %324 = tpu.matmul %287, %323, %cst_105 {dimension_numbers = #tpu.dot_dimension_numbers<[1], [0], [0], [1], [0, 0, 1, 1], [], []>} : vector<2x128xf32>, vector<128x512xf32>, vector<2x512xf32> -> vector<2x512xf32>
    %325 = arith.addf %322, %324 : vector<2x512xf32>
    %326 = vector.extract_strided_slice %325 {offsets = [0, 0], sizes = [2, 128], strides = [1, 1]} : vector<2x512xf32> to vector<2x128xf32>
    %327 = arith.negf %326 : vector<2x128xf32>
    %328 = math.exp %327 : vector<2x128xf32>
    %cst_106 = arith.constant 1.000000e+00 : f32
    %329 = vector.broadcast %cst_106 : f32 to vector<2x128xf32>
    %330 = arith.addf %329, %328 : vector<2x128xf32>
    %331 = arith.divf %329, %330 : vector<2x128xf32>
    %332 = vector.extract_strided_slice %325 {offsets = [0, 128], sizes = [2, 128], strides = [1, 1]} : vector<2x512xf32> to vector<2x128xf32>
    %333 = arith.negf %332 : vector<2x128xf32>
    %334 = math.exp %333 : vector<2x128xf32>
    %cst_107 = arith.constant 1.000000e+00 : f32
    %335 = vector.broadcast %cst_107 : f32 to vector<2x128xf32>
    %336 = arith.addf %335, %334 : vector<2x128xf32>
    %337 = arith.divf %335, %336 : vector<2x128xf32>
    %338 = vector.extract_strided_slice %325 {offsets = [0, 256], sizes = [2, 128], strides = [1, 1]} : vector<2x512xf32> to vector<2x128xf32>
    %339 = math.tanh %338 : vector<2x128xf32>
    %340 = vector.extract_strided_slice %325 {offsets = [0, 384], sizes = [2, 128], strides = [1, 1]} : vector<2x512xf32> to vector<2x128xf32>
    %341 = arith.negf %340 : vector<2x128xf32>
    %342 = math.exp %341 : vector<2x128xf32>
    %cst_108 = arith.constant 1.000000e+00 : f32
    %343 = vector.broadcast %cst_108 : f32 to vector<2x128xf32>
    %344 = arith.addf %343, %342 : vector<2x128xf32>
    %345 = arith.divf %343, %344 : vector<2x128xf32>
    %346 = arith.mulf %337, %285 : vector<2x128xf32>
    %347 = arith.mulf %331, %339 : vector<2x128xf32>
    %348 = arith.addf %346, %347 : vector<2x128xf32>
    %349 = math.tanh %348 : vector<2x128xf32>
    %350 = arith.mulf %345, %349 : vector<2x128xf32>
    %c0_109 = arith.constant 0 : index
    %c0_110 = arith.constant 0 : index
    %351 = vector.load %arg2[%c0_109, %c0_110] : memref<128x512xf32, #tpu.memory_space<vmem>>, vector<128x512xf32>
    %cst_111 = arith.constant dense<0.000000e+00> : vector<2x512xf32>
    %352 = tpu.matmul %350, %351, %cst_111 {dimension_numbers = #tpu.dot_dimension_numbers<[1], [0], [0], [1], [0, 0, 1, 1], [], []>} : vector<2x128xf32>, vector<128x512xf32>, vector<2x512xf32> -> vector<2x512xf32>
    %353 = arith.addf %352, %320 : vector<2x512xf32>
    %c0_112 = arith.constant 0 : index
    %c0_113 = arith.constant 0 : index
    %354 = vector.load %arg4[%c0_112, %c0_113] : memref<1x512xf32, #tpu.memory_space<vmem>>, vector<1x512xf32>
    %355 = vector.broadcast %354 : vector<1x512xf32> to vector<2x512xf32>
    %356 = arith.addf %353, %355 : vector<2x512xf32>
    %357 = vector.extract_strided_slice %356 {offsets = [0, 0], sizes = [2, 128], strides = [1, 1]} : vector<2x512xf32> to vector<2x128xf32>
    %358 = arith.negf %357 : vector<2x128xf32>
    %359 = math.exp %358 : vector<2x128xf32>
    %cst_114 = arith.constant 1.000000e+00 : f32
    %360 = vector.broadcast %cst_114 : f32 to vector<2x128xf32>
    %361 = arith.addf %360, %359 : vector<2x128xf32>
    %362 = arith.divf %360, %361 : vector<2x128xf32>
    %363 = vector.extract_strided_slice %356 {offsets = [0, 128], sizes = [2, 128], strides = [1, 1]} : vector<2x512xf32> to vector<2x128xf32>
    %364 = arith.negf %363 : vector<2x128xf32>
    %365 = math.exp %364 : vector<2x128xf32>
    %cst_115 = arith.constant 1.000000e+00 : f32
    %366 = vector.broadcast %cst_115 : f32 to vector<2x128xf32>
    %367 = arith.addf %366, %365 : vector<2x128xf32>
    %368 = arith.divf %366, %367 : vector<2x128xf32>
    %369 = vector.extract_strided_slice %356 {offsets = [0, 256], sizes = [2, 128], strides = [1, 1]} : vector<2x512xf32> to vector<2x128xf32>
    %370 = math.tanh %369 : vector<2x128xf32>
    %371 = vector.extract_strided_slice %356 {offsets = [0, 384], sizes = [2, 128], strides = [1, 1]} : vector<2x512xf32> to vector<2x128xf32>
    %372 = arith.negf %371 : vector<2x128xf32>
    %373 = math.exp %372 : vector<2x128xf32>
    %cst_116 = arith.constant 1.000000e+00 : f32
    %374 = vector.broadcast %cst_116 : f32 to vector<2x128xf32>
    %375 = arith.addf %374, %373 : vector<2x128xf32>
    %376 = arith.divf %374, %375 : vector<2x128xf32>
    %377 = arith.mulf %368, %316 : vector<2x128xf32>
    %378 = arith.mulf %362, %370 : vector<2x128xf32>
    %379 = arith.addf %377, %378 : vector<2x128xf32>
    %380 = math.tanh %379 : vector<2x128xf32>
    %381 = arith.mulf %376, %380 : vector<2x128xf32>
    %c0_117 = arith.constant 0 : index
    %c0_118 = arith.constant 0 : index
    %382 = vector.load %arg3[%c0_117, %c0_118] : memref<128x512xf32, #tpu.memory_space<vmem>>, vector<128x512xf32>
    %cst_119 = arith.constant dense<0.000000e+00> : vector<2x512xf32>
    %383 = tpu.matmul %381, %382, %cst_119 {dimension_numbers = #tpu.dot_dimension_numbers<[1], [0], [0], [1], [0, 0, 1, 1], [], []>} : vector<2x128xf32>, vector<128x512xf32>, vector<2x512xf32> -> vector<2x512xf32>
    %c6 = arith.constant 6 : index
    %c0_120 = arith.constant 0 : index
    %c0_121 = arith.constant 0 : index
    %384 = vector.load %arg0[%c6, %c0_120, %c0_121] : memref<8x2x512xf32, #tpu.memory_space<vmem>>, vector<1x2x512xf32>
    %385 = vector.shape_cast %384 : vector<1x2x512xf32> to vector<2x512xf32>
    %c0_122 = arith.constant 0 : index
    %c0_123 = arith.constant 0 : index
    %386 = vector.load %arg1[%c0_122, %c0_123] : memref<128x512xf32, #tpu.memory_space<vmem>>, vector<128x512xf32>
    %cst_124 = arith.constant dense<0.000000e+00> : vector<2x512xf32>
    %387 = tpu.matmul %350, %386, %cst_124 {dimension_numbers = #tpu.dot_dimension_numbers<[1], [0], [0], [1], [0, 0, 1, 1], [], []>} : vector<2x128xf32>, vector<128x512xf32>, vector<2x512xf32> -> vector<2x512xf32>
    %388 = arith.addf %385, %387 : vector<2x512xf32>
    %389 = vector.extract_strided_slice %388 {offsets = [0, 0], sizes = [2, 128], strides = [1, 1]} : vector<2x512xf32> to vector<2x128xf32>
    %390 = arith.negf %389 : vector<2x128xf32>
    %391 = math.exp %390 : vector<2x128xf32>
    %cst_125 = arith.constant 1.000000e+00 : f32
    %392 = vector.broadcast %cst_125 : f32 to vector<2x128xf32>
    %393 = arith.addf %392, %391 : vector<2x128xf32>
    %394 = arith.divf %392, %393 : vector<2x128xf32>
    %395 = vector.extract_strided_slice %388 {offsets = [0, 128], sizes = [2, 128], strides = [1, 1]} : vector<2x512xf32> to vector<2x128xf32>
    %396 = arith.negf %395 : vector<2x128xf32>
    %397 = math.exp %396 : vector<2x128xf32>
    %cst_126 = arith.constant 1.000000e+00 : f32
    %398 = vector.broadcast %cst_126 : f32 to vector<2x128xf32>
    %399 = arith.addf %398, %397 : vector<2x128xf32>
    %400 = arith.divf %398, %399 : vector<2x128xf32>
    %401 = vector.extract_strided_slice %388 {offsets = [0, 256], sizes = [2, 128], strides = [1, 1]} : vector<2x512xf32> to vector<2x128xf32>
    %402 = math.tanh %401 : vector<2x128xf32>
    %403 = vector.extract_strided_slice %388 {offsets = [0, 384], sizes = [2, 128], strides = [1, 1]} : vector<2x512xf32> to vector<2x128xf32>
    %404 = arith.negf %403 : vector<2x128xf32>
    %405 = math.exp %404 : vector<2x128xf32>
    %cst_127 = arith.constant 1.000000e+00 : f32
    %406 = vector.broadcast %cst_127 : f32 to vector<2x128xf32>
    %407 = arith.addf %406, %405 : vector<2x128xf32>
    %408 = arith.divf %406, %407 : vector<2x128xf32>
    %409 = arith.mulf %400, %348 : vector<2x128xf32>
    %410 = arith.mulf %394, %402 : vector<2x128xf32>
    %411 = arith.addf %409, %410 : vector<2x128xf32>
    %412 = math.tanh %411 : vector<2x128xf32>
    %413 = arith.mulf %408, %412 : vector<2x128xf32>
    %c0_128 = arith.constant 0 : index
    %c0_129 = arith.constant 0 : index
    %414 = vector.load %arg2[%c0_128, %c0_129] : memref<128x512xf32, #tpu.memory_space<vmem>>, vector<128x512xf32>
    %cst_130 = arith.constant dense<0.000000e+00> : vector<2x512xf32>
    %415 = tpu.matmul %413, %414, %cst_130 {dimension_numbers = #tpu.dot_dimension_numbers<[1], [0], [0], [1], [0, 0, 1, 1], [], []>} : vector<2x128xf32>, vector<128x512xf32>, vector<2x512xf32> -> vector<2x512xf32>
    %416 = arith.addf %415, %383 : vector<2x512xf32>
    %c0_131 = arith.constant 0 : index
    %c0_132 = arith.constant 0 : index
    %417 = vector.load %arg4[%c0_131, %c0_132] : memref<1x512xf32, #tpu.memory_space<vmem>>, vector<1x512xf32>
    %418 = vector.broadcast %417 : vector<1x512xf32> to vector<2x512xf32>
    %419 = arith.addf %416, %418 : vector<2x512xf32>
    %420 = vector.extract_strided_slice %419 {offsets = [0, 0], sizes = [2, 128], strides = [1, 1]} : vector<2x512xf32> to vector<2x128xf32>
    %421 = arith.negf %420 : vector<2x128xf32>
    %422 = math.exp %421 : vector<2x128xf32>
    %cst_133 = arith.constant 1.000000e+00 : f32
    %423 = vector.broadcast %cst_133 : f32 to vector<2x128xf32>
    %424 = arith.addf %423, %422 : vector<2x128xf32>
    %425 = arith.divf %423, %424 : vector<2x128xf32>
    %426 = vector.extract_strided_slice %419 {offsets = [0, 128], sizes = [2, 128], strides = [1, 1]} : vector<2x512xf32> to vector<2x128xf32>
    %427 = arith.negf %426 : vector<2x128xf32>
    %428 = math.exp %427 : vector<2x128xf32>
    %cst_134 = arith.constant 1.000000e+00 : f32
    %429 = vector.broadcast %cst_134 : f32 to vector<2x128xf32>
    %430 = arith.addf %429, %428 : vector<2x128xf32>
    %431 = arith.divf %429, %430 : vector<2x128xf32>
    %432 = vector.extract_strided_slice %419 {offsets = [0, 256], sizes = [2, 128], strides = [1, 1]} : vector<2x512xf32> to vector<2x128xf32>
    %433 = math.tanh %432 : vector<2x128xf32>
    %434 = vector.extract_strided_slice %419 {offsets = [0, 384], sizes = [2, 128], strides = [1, 1]} : vector<2x512xf32> to vector<2x128xf32>
    %435 = arith.negf %434 : vector<2x128xf32>
    %436 = math.exp %435 : vector<2x128xf32>
    %cst_135 = arith.constant 1.000000e+00 : f32
    %437 = vector.broadcast %cst_135 : f32 to vector<2x128xf32>
    %438 = arith.addf %437, %436 : vector<2x128xf32>
    %439 = arith.divf %437, %438 : vector<2x128xf32>
    %440 = arith.mulf %431, %379 : vector<2x128xf32>
    %441 = arith.mulf %425, %433 : vector<2x128xf32>
    %442 = arith.addf %440, %441 : vector<2x128xf32>
    %443 = math.tanh %442 : vector<2x128xf32>
    %444 = arith.mulf %439, %443 : vector<2x128xf32>
    %c0_136 = arith.constant 0 : index
    %c0_137 = arith.constant 0 : index
    %445 = vector.load %arg3[%c0_136, %c0_137] : memref<128x512xf32, #tpu.memory_space<vmem>>, vector<128x512xf32>
    %cst_138 = arith.constant dense<0.000000e+00> : vector<2x512xf32>
    %446 = tpu.matmul %444, %445, %cst_138 {dimension_numbers = #tpu.dot_dimension_numbers<[1], [0], [0], [1], [0, 0, 1, 1], [], []>} : vector<2x128xf32>, vector<128x512xf32>, vector<2x512xf32> -> vector<2x512xf32>
    %c7 = arith.constant 7 : index
    %c0_139 = arith.constant 0 : index
    %c0_140 = arith.constant 0 : index
    %447 = vector.load %arg0[%c7, %c0_139, %c0_140] : memref<8x2x512xf32, #tpu.memory_space<vmem>>, vector<1x2x512xf32>
    %448 = vector.shape_cast %447 : vector<1x2x512xf32> to vector<2x512xf32>
    %c0_141 = arith.constant 0 : index
    %c0_142 = arith.constant 0 : index
    %449 = vector.load %arg1[%c0_141, %c0_142] : memref<128x512xf32, #tpu.memory_space<vmem>>, vector<128x512xf32>
    %cst_143 = arith.constant dense<0.000000e+00> : vector<2x512xf32>
    %450 = tpu.matmul %413, %449, %cst_143 {dimension_numbers = #tpu.dot_dimension_numbers<[1], [0], [0], [1], [0, 0, 1, 1], [], []>} : vector<2x128xf32>, vector<128x512xf32>, vector<2x512xf32> -> vector<2x512xf32>
    %451 = arith.addf %448, %450 : vector<2x512xf32>
    %452 = vector.extract_strided_slice %451 {offsets = [0, 0], sizes = [2, 128], strides = [1, 1]} : vector<2x512xf32> to vector<2x128xf32>
    %453 = arith.negf %452 : vector<2x128xf32>
    %454 = math.exp %453 : vector<2x128xf32>
    %cst_144 = arith.constant 1.000000e+00 : f32
    %455 = vector.broadcast %cst_144 : f32 to vector<2x128xf32>
    %456 = arith.addf %455, %454 : vector<2x128xf32>
    %457 = arith.divf %455, %456 : vector<2x128xf32>
    %458 = vector.extract_strided_slice %451 {offsets = [0, 128], sizes = [2, 128], strides = [1, 1]} : vector<2x512xf32> to vector<2x128xf32>
    %459 = arith.negf %458 : vector<2x128xf32>
    %460 = math.exp %459 : vector<2x128xf32>
    %cst_145 = arith.constant 1.000000e+00 : f32
    %461 = vector.broadcast %cst_145 : f32 to vector<2x128xf32>
    %462 = arith.addf %461, %460 : vector<2x128xf32>
    %463 = arith.divf %461, %462 : vector<2x128xf32>
    %464 = vector.extract_strided_slice %451 {offsets = [0, 256], sizes = [2, 128], strides = [1, 1]} : vector<2x512xf32> to vector<2x128xf32>
    %465 = math.tanh %464 : vector<2x128xf32>
    %466 = vector.extract_strided_slice %451 {offsets = [0, 384], sizes = [2, 128], strides = [1, 1]} : vector<2x512xf32> to vector<2x128xf32>
    %467 = arith.negf %466 : vector<2x128xf32>
    %468 = math.exp %467 : vector<2x128xf32>
    %cst_146 = arith.constant 1.000000e+00 : f32
    %469 = vector.broadcast %cst_146 : f32 to vector<2x128xf32>
    %470 = arith.addf %469, %468 : vector<2x128xf32>
    %471 = arith.divf %469, %470 : vector<2x128xf32>
    %472 = arith.mulf %463, %411 : vector<2x128xf32>
    %473 = arith.mulf %457, %465 : vector<2x128xf32>
    %474 = arith.addf %472, %473 : vector<2x128xf32>
    %475 = math.tanh %474 : vector<2x128xf32>
    %476 = arith.mulf %471, %475 : vector<2x128xf32>
    %c0_147 = arith.constant 0 : index
    %c0_148 = arith.constant 0 : index
    %477 = vector.load %arg2[%c0_147, %c0_148] : memref<128x512xf32, #tpu.memory_space<vmem>>, vector<128x512xf32>
    %cst_149 = arith.constant dense<0.000000e+00> : vector<2x512xf32>
    %478 = tpu.matmul %476, %477, %cst_149 {dimension_numbers = #tpu.dot_dimension_numbers<[1], [0], [0], [1], [0, 0, 1, 1], [], []>} : vector<2x128xf32>, vector<128x512xf32>, vector<2x512xf32> -> vector<2x512xf32>
    %479 = arith.addf %478, %446 : vector<2x512xf32>
    %c0_150 = arith.constant 0 : index
    %c0_151 = arith.constant 0 : index
    %480 = vector.load %arg4[%c0_150, %c0_151] : memref<1x512xf32, #tpu.memory_space<vmem>>, vector<1x512xf32>
    %481 = vector.broadcast %480 : vector<1x512xf32> to vector<2x512xf32>
    %482 = arith.addf %479, %481 : vector<2x512xf32>
    %483 = vector.extract_strided_slice %482 {offsets = [0, 0], sizes = [2, 128], strides = [1, 1]} : vector<2x512xf32> to vector<2x128xf32>
    %484 = arith.negf %483 : vector<2x128xf32>
    %485 = math.exp %484 : vector<2x128xf32>
    %cst_152 = arith.constant 1.000000e+00 : f32
    %486 = vector.broadcast %cst_152 : f32 to vector<2x128xf32>
    %487 = arith.addf %486, %485 : vector<2x128xf32>
    %488 = arith.divf %486, %487 : vector<2x128xf32>
    %489 = vector.extract_strided_slice %482 {offsets = [0, 128], sizes = [2, 128], strides = [1, 1]} : vector<2x512xf32> to vector<2x128xf32>
    %490 = arith.negf %489 : vector<2x128xf32>
    %491 = math.exp %490 : vector<2x128xf32>
    %cst_153 = arith.constant 1.000000e+00 : f32
    %492 = vector.broadcast %cst_153 : f32 to vector<2x128xf32>
    %493 = arith.addf %492, %491 : vector<2x128xf32>
    %494 = arith.divf %492, %493 : vector<2x128xf32>
    %495 = vector.extract_strided_slice %482 {offsets = [0, 256], sizes = [2, 128], strides = [1, 1]} : vector<2x512xf32> to vector<2x128xf32>
    %496 = math.tanh %495 : vector<2x128xf32>
    %497 = vector.extract_strided_slice %482 {offsets = [0, 384], sizes = [2, 128], strides = [1, 1]} : vector<2x512xf32> to vector<2x128xf32>
    %498 = arith.negf %497 : vector<2x128xf32>
    %499 = math.exp %498 : vector<2x128xf32>
    %cst_154 = arith.constant 1.000000e+00 : f32
    %500 = vector.broadcast %cst_154 : f32 to vector<2x128xf32>
    %501 = arith.addf %500, %499 : vector<2x128xf32>
    %502 = arith.divf %500, %501 : vector<2x128xf32>
    %503 = arith.mulf %494, %442 : vector<2x128xf32>
    %504 = arith.mulf %488, %496 : vector<2x128xf32>
    %505 = arith.addf %503, %504 : vector<2x128xf32>
    %506 = math.tanh %505 : vector<2x128xf32>
    %507 = arith.mulf %502, %506 : vector<2x128xf32>
    %c0_155 = arith.constant 0 : index
    %c0_156 = arith.constant 0 : index
    %508 = vector.load %arg5[%c0_155, %c0_156] : memref<2x128xf32, #tpu.memory_space<vmem>>, vector<2x128xf32>
    tpu.vector_store %arg5[%c0_155, %c0_156], %507 {strides = array<i32>} : memref<2x128xf32, #tpu.memory_space<vmem>>, vector<2x128xf32>,
    return
  }
}

</mosaic_0001>

<llo_original>
// kernel: lstm_net_forward.1
$region0: #{lstm_net_forward.1}
  #allocation0 [shape = 'u32[]', space=smem, size = 0x4, offset = 0x4, fixed_abs, tag = 'smem constant byte address 0x4 - core index']
  #allocation1 [shape = 'u32[144,128]{1,0:T(1,128)}', space=vmem, size = 0x12000, scoped, tag = 'internal scratch']
  %s0 = inlined_call_operand.vmem [shape: f32[8,2,512], index: 0, kind: input, shape index: {}]
  %s1 = inlined_call_operand.vmem [shape: f32[128,512], index: 1, kind: input, shape index: {}]
  %s2 = inlined_call_operand.hbm [shape: f32[128,512], index: 2, kind: input, shape index: {}]
  %s3 = inlined_call_operand.hbm [shape: f32[128,512], index: 3, kind: input, shape index: {}]
  %s4 = inlined_call_operand.vmem [shape: f32[1,512], index: 4, kind: input, shape index: {}]
  %s5 = inlined_call_operand.vmem [shape: f32[2,128], index: 5, kind: output, shape index: {}]
  %s6 = sld [smem:[#allocation0]]
  $region38: #{lstm_net_forward.1} parent=0
    _
  %s8 = ssub.s32 1, %s6
  %s9 = scalar_select 0, %s8, %s6
  $region1: #{lstm_net_forward.1} parent=0
    #allocation2 [shape = 'u8[262144]{0}', space=vmem, size = 0x40000, scoped, tag = 'input window, operand 2, single buffered']
    #allocation3 [shape = 's32[1]{0}', space=sflag, size = 0x4, scoped, tag = 'scoped memory for lstm_net_forward.1']
    #allocation4 [shape = 'u8[262144]{0}', space=vmem, size = 0x40000, scoped, tag = 'input window, operand 3, single buffered']
    #allocation5 [shape = 's32[1]{0}', space=sflag, size = 0x4, scoped, tag = 'scoped memory for lstm_net_forward.1']
    %10 = vsyncpa [#allocation3], 0
    %11 = vsyncpa [#allocation5], 0
    // Predicated region
    $region2: #{lstm_net_forward.1} parent=1 // pred_check
      _
    $region3: #{lstm_net_forward.1} parent=1 // pred_check_branch
      %13 = sbr.rel (0) target = $region5
    $region4: #{lstm_net_forward.1} parent=1 // pred_region
      _
    $region5: #{lstm_net_forward.1} parent=1 // pred_fallthru
      _
    // Predicated region
    $region6: #{lstm_net_forward.1} parent=1 // pred_check
      _
    $region7: #{lstm_net_forward.1} parent=1 // pred_check_branch
      %15 = sbr.rel (0) target = $region9
    $region8: #{lstm_net_forward.1} parent=1 // pred_region
      _
    $region9: #{lstm_net_forward.1} parent=1 // pred_fallthru
      _
    // Predicated region
    $region10: #{lstm_net_forward.1} parent=1 // pred_check
      _
    $region11: #{lstm_net_forward.1} parent=1 // pred_check_branch
      %17 = sbr.rel (0) target = $region13
    $region12: #{lstm_net_forward.1} parent=1 // pred_region
      %s19 = ssub.s32 8192, 8192
      %20 = vsyncadd [#allocation3], %s19
      %s21 = sshll.u32 [#allocation2], 4
      %s22 = int_to_ptr.vmem [resolvable:$true] %s21
      %27 = dma.hbm_to_vmem [thread:$0]  %s2, 8192, %s22, [#allocation3], 512, 512, 32
    $region13: #{lstm_net_forward.1} parent=1 // pred_fallthru
      _
    // Predicated region
    $region14: #{lstm_net_forward.1} parent=1 // pred_check
      _
    $region15: #{lstm_net_forward.1} parent=1 // pred_check_branch
      %29 = sbr.rel (0) target = $region17
    $region16: #{lstm_net_forward.1} parent=1 // pred_region
      %s31 = ssub.s32 8192, 8192
      %32 = vsyncadd [#allocation5], %s31
      %s33 = sshll.u32 [#allocation4], 4
      %s34 = int_to_ptr.vmem [resolvable:$true] %s33
      %39 = dma.hbm_to_vmem [thread:$0]  %s3, 8192, %s34, [#allocation5], 512, 512, 32
    $region17: #{lstm_net_forward.1} parent=1 // pred_fallthru
      _
    // Predicated region
    $region18: #{lstm_net_forward.1} parent=1 // pred_check
      _
    $region19: #{lstm_net_forward.1} parent=1 // pred_check_branch
      %41 = sbr.rel (0) target = $region21
    $region20: #{lstm_net_forward.1} parent=1 // pred_region
      _
    $region21: #{lstm_net_forward.1} parent=1 // pred_fallthru
      _
    // Predicated region
    $region22: #{lstm_net_forward.1} parent=1 // pred_check
      _
    $region23: #{lstm_net_forward.1} parent=1 // pred_check_branch
      %43 = sbr.rel (0) target = $region25
    $region24: #{lstm_net_forward.1} parent=1 // pred_region
      %44 = dma.done [#allocation3], 8192
    $region25: #{lstm_net_forward.1} parent=1 // pred_fallthru
      _
    // Predicated region
    $region26: #{lstm_net_forward.1} parent=1 // pred_check
      _
    $region27: #{lstm_net_forward.1} parent=1 // pred_check_branch
      %46 = sbr.rel (0) target = $region29
    $region28: #{lstm_net_forward.1} parent=1 // pred_region
      %47 = dma.done [#allocation5], 8192
    $region29: #{lstm_net_forward.1} parent=1 // pred_fallthru
      _
    %v48 = vld [vmem:[#allocation4] sm:$0xff]
    %v49 = vld [vmem:[#allocation4 + $0x8] sm:$0xff]
    %v50 = vld [vmem:[#allocation4 + $0x10] sm:$0xff]
    %v51 = vld [vmem:[#allocation4 + $0x18] sm:$0xff]
    %v52 = vld [vmem:[#allocation4 + $0x20] sm:$0xff]
    %v53 = vld [vmem:[#allocation4 + $0x28] sm:$0xff]
    %v54 = vld [vmem:[#allocation4 + $0x30] sm:$0xff]
    %v55 = vld [vmem:[#allocation4 + $0x38] sm:$0xff]
    %v56 = vld [vmem:[#allocation4 + $0x40] sm:$0xff]
    %v57 = vld [vmem:[#allocation4 + $0x48] sm:$0xff]
    %v58 = vld [vmem:[#allocation4 + $0x50] sm:$0xff]
    %v59 = vld [vmem:[#allocation4 + $0x58] sm:$0xff]
    %v60 = vld [vmem:[#allocation4 + $0x60] sm:$0xff]
    %v61 = vld [vmem:[#allocation4 + $0x68] sm:$0xff]
    %v62 = vld [vmem:[#allocation4 + $0x70] sm:$0xff]
    %v63 = vld [vmem:[#allocation4 + $0x78] sm:$0xff]
    %v64 = vld [vmem:[#allocation4 + $0x80] sm:$0xff]
    %v65 = vld [vmem:[#allocation4 + $0x88] sm:$0xff]
    %v66 = vld [vmem:[#allocation4 + $0x90] sm:$0xff]
    %v67 = vld [vmem:[#allocation4 + $0x98] sm:$0xff]
    %v68 = vld [vmem:[#allocation4 + $0xa0] sm:$0xff]
    %v69 = vld [vmem:[#allocation4 + $0xa8] sm:$0xff]
    %v70 = vld [vmem:[#allocation4 + $0xb0] sm:$0xff]
    %v71 = vld [vmem:[#allocation4 + $0xb8] sm:$0xff]
    %v72 = vld [vmem:[#allocation4 + $0xc0] sm:$0xff]
    %v73 = vld [vmem:[#allocation4 + $0xc8] sm:$0xff]
    %v74 = vld [vmem:[#allocation4 + $0xd0] sm:$0xff]
    %v75 = vld [vmem:[#allocation4 + $0xd8] sm:$0xff]
    %v76 = vld [vmem:[#allocation4 + $0xe0] sm:$0xff]
    %v77 = vld [vmem:[#allocation4 + $0xe8] sm:$0xff]
    %v78 = vld [vmem:[#allocation4 + $0xf0] sm:$0xff]
    %v79 = vld [vmem:[#allocation4 + $0xf8] sm:$0xff]
    %v80 = vld [vmem:[#allocation4 + $0x100] sm:$0xff]
    %v81 = vld [vmem:[#allocation4 + $0x108] sm:$0xff]
    %v82 = vld [vmem:[#allocation4 + $0x110] sm:$0xff]
    %v83 = vld [vmem:[#allocation4 + $0x118] sm:$0xff]
    %v84 = vld [vmem:[#allocation4 + $0x120] sm:$0xff]
    %v85 = vld [vmem:[#allocation4 + $0x128] sm:$0xff]
    %v86 = vld [vmem:[#allocation4 + $0x130] sm:$0xff]
    %v87 = vld [vmem:[#allocation4 + $0x138] sm:$0xff]
    %v88 = vld [vmem:[#allocation4 + $0x140] sm:$0xff]
    %v89 = vld [vmem:[#allocation4 + $0x148] sm:$0xff]
    %v90 = vld [vmem:[#allocation4 + $0x150] sm:$0xff]
    %v91 = vld [vmem:[#allocation4 + $0x158] sm:$0xff]
    %v92 = vld [vmem:[#allocation4 + $0x160] sm:$0xff]
    %v93 = vld [vmem:[#allocation4 + $0x168] sm:$0xff]
    %v94 = vld [vmem:[#allocation4 + $0x170] sm:$0xff]
    %v95 = vld [vmem:[#allocation4 + $0x178] sm:$0xff]
    %v96 = vld [vmem:[#allocation4 + $0x180] sm:$0xff]
    %v97 = vld [vmem:[#allocation4 + $0x188] sm:$0xff]
    %v98 = vld [vmem:[#allocation4 + $0x190] sm:$0xff]
    %v99 = vld [vmem:[#allocation4 + $0x198] sm:$0xff]
    %v100 = vld [vmem:[#allocation4 + $0x1a0] sm:$0xff]
    %v101 = vld [vmem:[#allocation4 + $0x1a8] sm:$0xff]
    %v102 = vld [vmem:[#allocation4 + $0x1b0] sm:$0xff]
    %v103 = vld [vmem:[#allocation4 + $0x1b8] sm:$0xff]
    %v104 = vld [vmem:[#allocation4 + $0x1c0] sm:$0xff]
    %v105 = vld [vmem:[#allocation4 + $0x1c8] sm:$0xff]
    %v106 = vld [vmem:[#allocation4 + $0x1d0] sm:$0xff]
    %v107 = vld [vmem:[#allocation4 + $0x1d8] sm:$0xff]
    %v108 = vld [vmem:[#allocation4 + $0x1e0] sm:$0xff]
    %v109 = vld [vmem:[#allocation4 + $0x1e8] sm:$0xff]
    %v110 = vld [vmem:[#allocation4 + $0x1f0] sm:$0xff]
    %v111 = vld [vmem:[#allocation4 + $0x1f8] sm:$0xff]
    %112 = vmatprep.subr.mxu0 %v49
    %113 = vmatpush1.msra.mxu0 %v48
    %114 = vmatprep.subr.mxu0 %v53
    %115 = vmatpush1.msra.mxu0 %v52
    %116 = vmatprep.subr.mxu0 %v57
    %117 = vmatpush1.msra.mxu0 %v56
    %118 = vmatprep.subr.mxu0 %v61
    %119 = vmatpush1.msra.mxu0 %v60
    %120 = vmatprep.subr.mxu0 %v65
    %121 = vmatpush1.msra.mxu0 %v64
    %122 = vmatprep.subr.mxu0 %v69
    %123 = vmatpush1.msra.mxu0 %v68
    %124 = vmatprep.subr.mxu0 %v73
    %125 = vmatpush1.msra.mxu0 %v72
    %126 = vmatprep.subr.mxu0 %v77
    %127 = vmatpush1.msra.mxu0 %v76
    %128 = vmatprep.subr.mxu0 %v81
    %129 = vmatpush1.msra.mxu0 %v80
    %130 = vmatprep.subr.mxu0 %v85
    %131 = vmatpush1.msra.mxu0 %v84
    %132 = vmatprep.subr.mxu0 %v89
    %133 = vmatpush1.msra.mxu0 %v88
    %134 = vmatprep.subr.mxu0 %v93
    %135 = vmatpush1.msra.mxu0 %v92
    %136 = vmatprep.subr.mxu0 %v97
    %137 = vmatpush1.msra.mxu0 %v96
    %138 = vmatprep.subr.mxu0 %v101
    %139 = vmatpush1.msra.mxu0 %v100
    %140 = vmatprep.subr.mxu0 %v105
    %141 = vmatpush1.msra.mxu0 %v104
    %142 = vmatprep.subr.mxu0 %v109
    %143 = vmatpush1.msra.mxu0 %v108
    %144 = vmatprep.subr.mxu0 0.0
    %145 = vmatpush1.msra.mxu0 0.0
    %146 = vmatprep.subr.mxu0 0.0
    %147 = vmatpush1.msra.mxu0 0.0
    %148 = vmatprep.subr.mxu0 0.0
    %149 = vmatpush1.msra.mxu0 0.0
    %150 = vmatprep.subr.mxu0 0.0
    %151 = vmatpush1.msra.mxu0 0.0
    %152 = vmatprep.subr.mxu0 0.0
    %153 = vmatpush1.msra.mxu0 0.0
    %154 = vmatprep.subr.mxu0 0.0
    %155 = vmatpush1.msra.mxu0 0.0
    %156 = vmatprep.subr.mxu0 0.0
    %157 = vmatpush1.msra.mxu0 0.0
    %158 = vmatprep.subr.mxu0 0.0
    %159 = vmatpush1.msra.mxu0 0.0
    %160 = vmatprep.subr.mxu0 0.0
    %161 = vmatpush1.msra.mxu0 0.0
    %162 = vmatprep.subr.mxu0 0.0
    %163 = vmatpush1.msra.mxu0 0.0
    %164 = vmatprep.subr.mxu0 0.0
    %165 = vmatpush1.msra.mxu0 0.0
    %166 = vmatprep.subr.mxu0 0.0
    %167 = vmatpush1.msra.mxu0 0.0
    %168 = vmatprep.subr.mxu0 0.0
    %169 = vmatpush1.msra.mxu0 0.0
    %170 = vmatprep.subr.mxu0 0.0
    %171 = vmatpush1.msra.mxu0 0.0
    %172 = vmatprep.subr.mxu0 0.0
    %173 = vmatpush1.msra.mxu0 0.0
    %174 = vmatprep.subr.mxu0 0.0
    %175 = vmatpush1.msra.mxu0 0.0
    %176 = vmatprep.mubr.f32.mxu0 0.0
    %177 = vmatmul.mubr.f32.gmra.mrb[0].mxu0 0.0
    %v178 = vpop.f32.mrb[0].mxu0
    %v179 = vadd.f32 0.0, %v178
    %v180 = vpop.f32.mrb[0].mxu0
    %v181 = vadd.f32 0.0, %v180
    %182 = vdwg.mxu0
    %183 = vmatprep.subr.mxu0 %v51
    %184 = vmatpush1.msra.mxu0 %v50
    %185 = vmatprep.subr.mxu0 %v55
    %186 = vmatpush1.msra.mxu0 %v54
    %187 = vmatprep.subr.mxu0 %v59
    %188 = vmatpush1.msra.mxu0 %v58
    %189 = vmatprep.subr.mxu0 %v63
    %190 = vmatpush1.msra.mxu0 %v62
    %191 = vmatprep.subr.mxu0 %v67
    %192 = vmatpush1.msra.mxu0 %v66
    %193 = vmatprep.subr.mxu0 %v71
    %194 = vmatpush1.msra.mxu0 %v70
    %195 = vmatprep.subr.mxu0 %v75
    %196 = vmatpush1.msra.mxu0 %v74
    %197 = vmatprep.subr.mxu0 %v79
    %198 = vmatpush1.msra.mxu0 %v78
    %199 = vmatprep.subr.mxu0 %v83
    %200 = vmatpush1.msra.mxu0 %v82
    %201 = vmatprep.subr.mxu0 %v87
    %202 = vmatpush1.msra.mxu0 %v86
    %203 = vmatprep.subr.mxu0 %v91
    %204 = vmatpush1.msra.mxu0 %v90
    %205 = vmatprep.subr.mxu0 %v95
    %206 = vmatpush1.msra.mxu0 %v94
    %207 = vmatprep.subr.mxu0 %v99
    %208 = vmatpush1.msra.mxu0 %v98
    %209 = vmatprep.subr.mxu0 %v103
    %210 = vmatpush1.msra.mxu0 %v102
    %211 = vmatprep.subr.mxu0 %v107
    %212 = vmatpush1.msra.mxu0 %v106
    %213 = vmatprep.subr.mxu0 %v111
    %214 = vmatpush1.msra.mxu0 %v110
    %215 = vmatprep.subr.mxu0 0.0
    %216 = vmatpush1.msra.mxu0 0.0
    %217 = vmatprep.subr.mxu0 0.0
    %218 = vmatpush1.msra.mxu0 0.0
    %219 = vmatprep.subr.mxu0 0.0
    %220 = vmatpush1.msra.mxu0 0.0
    %221 = vmatprep.subr.mxu0 0.0
    %222 = vmatpush1.msra.mxu0 0.0
    %223 = vmatprep.subr.mxu0 0.0
    %224 = vmatpush1.msra.mxu0 0.0
    %225 = vmatprep.subr.mxu0 0.0
    %226 = vmatpush1.msra.mxu0 0.0
    %227 = vmatprep.subr.mxu0 0.0
    %228 = vmatpush1.msra.mxu0 0.0
    %229 = vmatprep.subr.mxu0 0.0
    %230 = vmatpush1.msra.mxu0 0.0
    %231 = vmatprep.subr.mxu0 0.0
    %232 = vmatpush1.msra.mxu0 0.0
    %233 = vmatprep.subr.mxu0 0.0
    %234 = vmatpush1.msra.mxu0 0.0
    %235 = vmatprep.subr.mxu0 0.0
    %236 = vmatpush1.msra.mxu0 0.0
    %237 = vmatprep.subr.mxu0 0.0
    %238 = vmatpush1.msra.mxu0 0.0
    %239 = vmatprep.subr.mxu0 0.0
    %240 = vmatpush1.msra.mxu0 0.0
    %241 = vmatprep.subr.mxu0 0.0
    %242 = vmatpush1.msra.mxu0 0.0
    %243 = vmatprep.subr.mxu0 0.0
    %244 = vmatpush1.msra.mxu0 0.0
    %245 = vmatprep.subr.mxu0 0.0
    %246 = vmatpush1.msra.mxu0 0.0
    %247 = vmatprep.mubr.f32.mxu0 0.0
    %248 = vmatmul.mubr.f32.gmra.mrb[0].mxu0 0.0
    %v249 = vpop.f32.mrb[0].mxu0
    %v250 = vadd.f32 0.0, %v249
    %v251 = vpop.f32.mrb[0].mxu0
    %v252 = vadd.f32 0.0, %v251
    %253 = vdwg.mxu0
    %v254 = vld [vmem:[%s0] sm:$0xff]
    %v255 = vld [vmem:[%s1] sm:$0xff]
    %v256 = vld [vmem:[%s1 + $0x8] sm:$0xff]
    %v257 = vld [vmem:[%s1 + $0x10] sm:$0xff]
    %v258 = vld [vmem:[%s1 + $0x18] sm:$0xff]
    %v259 = vld [vmem:[%s1 + $0x20] sm:$0xff]
    %v260 = vld [vmem:[%s1 + $0x28] sm:$0xff]
    %v261 = vld [vmem:[%s1 + $0x30] sm:$0xff]
    %v262 = vld [vmem:[%s1 + $0x38] sm:$0xff]
    %v263 = vld [vmem:[%s1 + $0x40] sm:$0xff]
    %v264 = vld [vmem:[%s1 + $0x48] sm:$0xff]
    %v265 = vld [vmem:[%s1 + $0x50] sm:$0xff]
    %v266 = vld [vmem:[%s1 + $0x58] sm:$0xff]
    %v267 = vld [vmem:[%s1 + $0x60] sm:$0xff]
    %v268 = vld [vmem:[%s1 + $0x68] sm:$0xff]
    %v269 = vld [vmem:[%s1 + $0x70] sm:$0xff]
    %v270 = vld [vmem:[%s1 + $0x78] sm:$0xff]
    %v271 = vld [vmem:[%s1 + $0x80] sm:$0xff]
    %v272 = vld [vmem:[%s1 + $0x88] sm:$0xff]
    %v273 = vld [vmem:[%s1 + $0x90] sm:$0xff]
    %v274 = vld [vmem:[%s1 + $0x98] sm:$0xff]
    %v275 = vld [vmem:[%s1 + $0xa0] sm:$0xff]
    %v276 = vld [vmem:[%s1 + $0xa8] sm:$0xff]
    %v277 = vld [vmem:[%s1 + $0xb0] sm:$0xff]
    %v278 = vld [vmem:[%s1 + $0xb8] sm:$0xff]
    %v279 = vld [vmem:[%s1 + $0xc0] sm:$0xff]
    %v280 = vld [vmem:[%s1 + $0xc8] sm:$0xff]
    %v281 = vld [vmem:[%s1 + $0xd0] sm:$0xff]
    %v282 = vld [vmem:[%s1 + $0xd8] sm:$0xff]
    %v283 = vld [vmem:[%s1 + $0xe0] sm:$0xff]
    %v284 = vld [vmem:[%s1 + $0xe8] sm:$0xff]
    %v285 = vld [vmem:[%s1 + $0xf0] sm:$0xff]
    %v286 = vld [vmem:[%s1 + $0xf8] sm:$0xff]
    %v287 = vld [vmem:[%s1 + $0x100] sm:$0xff]
    %v288 = vld [vmem:[%s1 + $0x108] sm:$0xff]
    %v289 = vld [vmem:[%s1 + $0x110] sm:$0xff]
    %v290 = vld [vmem:[%s1 + $0x118] sm:$0xff]
    %v291 = vld [vmem:[%s1 + $0x120] sm:$0xff]
    %v292 = vld [vmem:[%s1 + $0x128] sm:$0xff]
    %v293 = vld [vmem:[%s1 + $0x130] sm:$0xff]
    %v294 = vld [vmem:[%s1 + $0x138] sm:$0xff]
    %v295 = vld [vmem:[%s1 + $0x140] sm:$0xff]
    %v296 = vld [vmem:[%s1 + $0x148] sm:$0xff]
    %v297 = vld [vmem:[%s1 + $0x150] sm:$0xff]
    %v298 = vld [vmem:[%s1 + $0x158] sm:$0xff]
    %v299 = vld [vmem:[%s1 + $0x160] sm:$0xff]
    %v300 = vld [vmem:[%s1 + $0x168] sm:$0xff]
    %v301 = vld [vmem:[%s1 + $0x170] sm:$0xff]
    %v302 = vld [vmem:[%s1 + $0x178] sm:$0xff]
    %v303 = vld [vmem:[%s1 + $0x180] sm:$0xff]
    %v304 = vld [vmem:[%s1 + $0x188] sm:$0xff]
    %v305 = vld [vmem:[%s1 + $0x190] sm:$0xff]
    %v306 = vld [vmem:[%s1 + $0x198] sm:$0xff]
    %v307 = vld [vmem:[%s1 + $0x1a0] sm:$0xff]
    %v308 = vld [vmem:[%s1 + $0x1a8] sm:$0xff]
    %v309 = vld [vmem:[%s1 + $0x1b0] sm:$0xff]
    %v310 = vld [vmem:[%s1 + $0x1b8] sm:$0xff]
    %v311 = vld [vmem:[%s1 + $0x1c0] sm:$0xff]
    %v312 = vld [vmem:[%s1 + $0x1c8] sm:$0xff]
    %v313 = vld [vmem:[%s1 + $0x1d0] sm:$0xff]
    %v314 = vld [vmem:[%s1 + $0x1d8] sm:$0xff]
    %v315 = vld [vmem:[%s1 + $0x1e0] sm:$0xff]
    %v316 = vld [vmem:[%s1 + $0x1e8] sm:$0xff]
    %v317 = vld [vmem:[%s1 + $0x1f0] sm:$0xff]
    %v318 = vld [vmem:[%s1 + $0x1f8] sm:$0xff]
    %319 = vmatprep.subr.mxu0 %v256
    %320 = vmatpush1.msra.mxu0 %v255
    %321 = vmatprep.subr.mxu0 %v260
    %322 = vmatpush1.msra.mxu0 %v259
    %323 = vmatprep.subr.mxu0 %v264
    %324 = vmatpush1.msra.mxu0 %v263
    %325 = vmatprep.subr.mxu0 %v268
    %326 = vmatpush1.msra.mxu0 %v267
    %327 = vmatprep.subr.mxu0 %v272
    %328 = vmatpush1.msra.mxu0 %v271
    %329 = vmatprep.subr.mxu0 %v276
    %330 = vmatpush1.msra.mxu0 %v275
    %331 = vmatprep.subr.mxu0 %v280
    %332 = vmatpush1.msra.mxu0 %v279
    %333 = vmatprep.subr.mxu0 %v284
    %334 = vmatpush1.msra.mxu0 %v283
    %335 = vmatprep.subr.mxu0 %v288
    %336 = vmatpush1.msra.mxu0 %v287
    %337 = vmatprep.subr.mxu0 %v292
    %338 = vmatpush1.msra.mxu0 %v291
    %339 = vmatprep.subr.mxu0 %v296
    %340 = vmatpush1.msra.mxu0 %v295
    %341 = vmatprep.subr.mxu0 %v300
    %342 = vmatpush1.msra.mxu0 %v299
    %343 = vmatprep.subr.mxu0 %v304
    %344 = vmatpush1.msra.mxu0 %v303
    %345 = vmatprep.subr.mxu0 %v308
    %346 = vmatpush1.msra.mxu0 %v307
    %347 = vmatprep.subr.mxu0 %v312
    %348 = vmatpush1.msra.mxu0 %v311
    %349 = vmatprep.subr.mxu0 %v316
    %350 = vmatpush1.msra.mxu0 %v315
    %351 = vmatprep.subr.mxu0 0.0
    %352 = vmatpush1.msra.mxu0 0.0
    %353 = vmatprep.subr.mxu0 0.0
    %354 = vmatpush1.msra.mxu0 0.0
    %355 = vmatprep.subr.mxu0 0.0
    %356 = vmatpush1.msra.mxu0 0.0
    %357 = vmatprep.subr.mxu0 0.0
    %358 = vmatpush1.msra.mxu0 0.0
    %359 = vmatprep.subr.mxu0 0.0
    %360 = vmatpush1.msra.mxu0 0.0
    %361 = vmatprep.subr.mxu0 0.0
    %362 = vmatpush1.msra.mxu0 0.0
    %363 = vmatprep.subr.mxu0 0.0
    %364 = vmatpush1.msra.mxu0 0.0
    %365 = vmatprep.subr.mxu0 0.0
    %366 = vmatpush1.msra.mxu0 0.0
    %367 = vmatprep.subr.mxu0 0.0
    %368 = vmatpush1.msra.mxu0 0.0
    %369 = vmatprep.subr.mxu0 0.0
    %370 = vmatpush1.msra.mxu0 0.0
    %371 = vmatprep.subr.mxu0 0.0
    %372 = vmatpush1.msra.mxu0 0.0
    %373 = vmatprep.subr.mxu0 0.0
    %374 = vmatpush1.msra.mxu0 0.0
    %375 = vmatprep.subr.mxu0 0.0
    %376 = vmatpush1.msra.mxu0 0.0
    %377 = vmatprep.subr.mxu0 0.0
    %378 = vmatpush1.msra.mxu0 0.0
    %379 = vmatprep.subr.mxu0 0.0
    %380 = vmatpush1.msra.mxu0 0.0
    %381 = vmatprep.subr.mxu0 0.0
    %382 = vmatpush1.msra.mxu0 0.0
    %383 = vmatprep.mubr.f32.mxu0 0.0
    %384 = vmatmul.mubr.f32.gmra.mrb[0].mxu0 0.0
    %v385 = vpop.f32.mrb[0].mxu0
    %v386 = vadd.f32 0.0, %v385
    %v387 = vpop.f32.mrb[0].mxu0
    %v388 = vadd.f32 0.0, %v387
    %389 = vdwg.mxu0
    %390 = vmatprep.subr.mxu0 %v258
    %391 = vmatpush1.msra.mxu0 %v257
    %392 = vmatprep.subr.mxu0 %v262
    %393 = vmatpush1.msra.mxu0 %v261
    %394 = vmatprep.subr.mxu0 %v266
    %395 = vmatpush1.msra.mxu0 %v265
    %396 = vmatprep.subr.mxu0 %v270
    %397 = vmatpush1.msra.mxu0 %v269
    %398 = vmatprep.subr.mxu0 %v274
    %399 = vmatpush1.msra.mxu0 %v273
    %400 = vmatprep.subr.mxu0 %v278
    %401 = vmatpush1.msra.mxu0 %v277
    %402 = vmatprep.subr.mxu0 %v282
    %403 = vmatpush1.msra.mxu0 %v281
    %404 = vmatprep.subr.mxu0 %v286
    %405 = vmatpush1.msra.mxu0 %v285
    %406 = vmatprep.subr.mxu0 %v290
    %407 = vmatpush1.msra.mxu0 %v289
    %408 = vmatprep.subr.mxu0 %v294
    %409 = vmatpush1.msra.mxu0 %v293
    %410 = vmatprep.subr.mxu0 %v298
    %411 = vmatpush1.msra.mxu0 %v297
    %412 = vmatprep.subr.mxu0 %v302
    %413 = vmatpush1.msra.mxu0 %v301
    %414 = vmatprep.subr.mxu0 %v306
    %415 = vmatpush1.msra.mxu0 %v305
    %416 = vmatprep.subr.mxu0 %v310
    %417 = vmatpush1.msra.mxu0 %v309
    %418 = vmatprep.subr.mxu0 %v314
    %419 = vmatpush1.msra.mxu0 %v313
    %420 = vmatprep.subr.mxu0 %v318
    %421 = vmatpush1.msra.mxu0 %v317
    %422 = vmatprep.subr.mxu0 0.0
    %423 = vmatpush1.msra.mxu0 0.0
    %424 = vmatprep.subr.mxu0 0.0
    %425 = vmatpush1.msra.mxu0 0.0
    %426 = vmatprep.subr.mxu0 0.0
    %427 = vmatpush1.msra.mxu0 0.0
    %428 = vmatprep.subr.mxu0 0.0
    %429 = vmatpush1.msra.mxu0 0.0
    %430 = vmatprep.subr.mxu0 0.0
    %431 = vmatpush1.msra.mxu0 0.0
    %432 = vmatprep.subr.mxu0 0.0
    %433 = vmatpush1.msra.mxu0 0.0
    %434 = vmatprep.subr.mxu0 0.0
    %435 = vmatpush1.msra.mxu0 0.0
    %436 = vmatprep.subr.mxu0 0.0
    %437 = vmatpush1.msra.mxu0 0.0
    %438 = vmatprep.subr.mxu0 0.0
    %439 = vmatpush1.msra.mxu0 0.0
    %440 = vmatprep.subr.mxu0 0.0
    %441 = vmatpush1.msra.mxu0 0.0
    %442 = vmatprep.subr.mxu0 0.0
    %443 = vmatpush1.msra.mxu0 0.0
    %444 = vmatprep.subr.mxu0 0.0
    %445 = vmatpush1.msra.mxu0 0.0
    %446 = vmatprep.subr.mxu0 0.0
    %447 = vmatpush1.msra.mxu0 0.0
    %448 = vmatprep.subr.mxu0 0.0
    %449 = vmatpush1.msra.mxu0 0.0
    %450 = vmatprep.subr.mxu0 0.0
    %451 = vmatpush1.msra.mxu0 0.0
    %452 = vmatprep.subr.mxu0 0.0
    %453 = vmatpush1.msra.mxu0 0.0
    %454 = vmatprep.mubr.f32.mxu0 0.0
    %455 = vmatmul.mubr.f32.gmra.mrb[0].mxu0 0.0
    %v456 = vpop.f32.mrb[0].mxu0
    %v457 = vadd.f32 0.0, %v456
    %v458 = vpop.f32.mrb[0].mxu0
    %v459 = vadd.f32 0.0, %v458
    %460 = vdwg.mxu0
    %v465 = vcombine.low %v386, %v388
    %v466 = vcombine.low %v457, %v459
    %v468 = vunpack.c.l.s4 1983009808
    %v469 = vunpack.c.0.s8 %v468
    %v470 = vlaneseq
    %v471 = vshrl.u32 %v470, 7
    %v472 = vsub.s32 %v469, %v471
    %v473 = vrot.slane %v465, %v472
    %v475 = vunpack.c.l.s4 1983009808
    %v476 = vunpack.c.0.s8 %v475
    %v477 = vlaneseq
    %v478 = vshrl.u32 %v477, 7
    %v479 = vsub.s32 %v476, %v478
    %v480 = vrot.slane %v466, %v479
    %v481 = vcombine.low %v473, %v480
    %v483 = vadd.f32 %v254, %v481
    %v484 = vxor.u32 %v483, 2147483648
    %v485 = vmul.f32 %v484, 1.442695
    %v486 = vpow.pop %v485
    %v487 = vadd.f32 %v486, 1.0
    %v488 = vrcp.pop %v487
    %v489 = vmul.f32 1.0, %v488
    %v491 = vrot.slane %v483, 2
    %v493 = vxor.u32 %v491, 2147483648
    %v494 = vmul.f32 %v493, 1.442695
    %v495 = vpow.pop %v494
    %v496 = vadd.f32 %v495, 1.0
    %v497 = vrcp.pop %v496
    %v498 = vmul.f32 1.0, %v497
    %v499 = vrot.slane %v483, 4
    %v501 = vtanh.pop %v499
    %v502 = vrot.slane %v483, 6
    %v504 = vxor.u32 %v502, 2147483648
    %v505 = vmul.f32 %v504, 1.442695
    %v506 = vpow.pop %v505
    %v507 = vadd.f32 %v506, 1.0
    %v508 = vrcp.pop %v507
    %v509 = vmul.f32 1.0, %v508
    %v510 = vmul.f32 %v498, 0.0
    %v511 = vmul.f32 %v489, %v501
    %v512 = vadd.f32 %v510, %v511
    %v513 = vtanh.pop %v512
    %v514 = vmul.f32 %v509, %v513
    %v515 = vld [vmem:[#allocation2] sm:$0xff]
    %v516 = vld [vmem:[#allocation2 + $0x8] sm:$0xff]
    %v517 = vld [vmem:[#allocation2 + $0x10] sm:$0xff]
    %v518 = vld [vmem:[#allocation2 + $0x18] sm:$0xff]
    %v519 = vld [vmem:[#allocation2 + $0x20] sm:$0xff]
    %v520 = vld [vmem:[#allocation2 + $0x28] sm:$0xff]
    %v521 = vld [vmem:[#allocation2 + $0x30] sm:$0xff]
    %v522 = vld [vmem:[#allocation2 + $0x38] sm:$0xff]
    %v523 = vld [vmem:[#allocation2 + $0x40] sm:$0xff]
    %v524 = vld [vmem:[#allocation2 + $0x48] sm:$0xff]
    %v525 = vld [vmem:[#allocation2 + $0x50] sm:$0xff]
    %v526 = vld [vmem:[#allocation2 + $0x58] sm:$0xff]
    %v527 = vld [vmem:[#allocation2 + $0x60] sm:$0xff]
    %v528 = vld [vmem:[#allocation2 + $0x68] sm:$0xff]
    %v529 = vld [vmem:[#allocation2 + $0x70] sm:$0xff]
    %v530 = vld [vmem:[#allocation2 + $0x78] sm:$0xff]
    %v531 = vld [vmem:[#allocation2 + $0x80] sm:$0xff]
    %v532 = vld [vmem:[#allocation2 + $0x88] sm:$0xff]
    %v533 = vld [vmem:[#allocation2 + $0x90] sm:$0xff]
    %v534 = vld [vmem:[#allocation2 + $0x98] sm:$0xff]
    %v535 = vld [vmem:[#allocation2 + $0xa0] sm:$0xff]
    %v536 = vld [vmem:[#allocation2 + $0xa8] sm:$0xff]
    %v537 = vld [vmem:[#allocation2 + $0xb0] sm:$0xff]
    %v538 = vld [vmem:[#allocation2 + $0xb8] sm:$0xff]
    %v539 = vld [vmem:[#allocation2 + $0xc0] sm:$0xff]
    %v540 = vld [vmem:[#allocation2 + $0xc8] sm:$0xff]
    %v541 = vld [vmem:[#allocation2 + $0xd0] sm:$0xff]
    %v542 = vld [vmem:[#allocation2 + $0xd8] sm:$0xff]
    %v543 = vld [vmem:[#allocation2 + $0xe0] sm:$0xff]
    %v544 = vld [vmem:[#allocation2 + $0xe8] sm:$0xff]
    %v545 = vld [vmem:[#allocation2 + $0xf0] sm:$0xff]
    %v546 = vld [vmem:[#allocation2 + $0xf8] sm:$0xff]
    %v547 = vld [vmem:[#allocation2 + $0x100] sm:$0xff]
    %v548 = vld [vmem:[#allocation2 + $0x108] sm:$0xff]
    %v549 = vld [vmem:[#allocation2 + $0x110] sm:$0xff]
    %v550 = vld [vmem:[#allocation2 + $0x118] sm:$0xff]
    %v551 = vld [vmem:[#allocation2 + $0x120] sm:$0xff]
    %v552 = vld [vmem:[#allocation2 + $0x128] sm:$0xff]
    %v553 = vld [vmem:[#allocation2 + $0x130] sm:$0xff]
    %v554 = vld [vmem:[#allocation2 + $0x138] sm:$0xff]
    %v555 = vld [vmem:[#allocation2 + $0x140] sm:$0xff]
    %v556 = vld [vmem:[#allocation2 + $0x148] sm:$0xff]
    %v557 = vld [vmem:[#allocation2 + $0x150] sm:$0xff]
    %v558 = vld [vmem:[#allocation2 + $0x158] sm:$0xff]
    %v559 = vld [vmem:[#allocation2 + $0x160] sm:$0xff]
    %v560 = vld [vmem:[#allocation2 + $0x168] sm:$0xff]
    %v561 = vld [vmem:[#allocation2 + $0x170] sm:$0xff]
    %v562 = vld [vmem:[#allocation2 + $0x178] sm:$0xff]
    %v563 = vld [vmem:[#allocation2 + $0x180] sm:$0xff]
    %v564 = vld [vmem:[#allocation2 + $0x188] sm:$0xff]
    %v565 = vld [vmem:[#allocation2 + $0x190] sm:$0xff]
    %v566 = vld [vmem:[#allocation2 + $0x198] sm:$0xff]
    %v567 = vld [vmem:[#allocation2 + $0x1a0] sm:$0xff]
    %v568 = vld [vmem:[#allocation2 + $0x1a8] sm:$0xff]
    %v569 = vld [vmem:[#allocation2 + $0x1b0] sm:$0xff]
    %v570 = vld [vmem:[#allocation2 + $0x1b8] sm:$0xff]
    %v571 = vld [vmem:[#allocation2 + $0x1c0] sm:$0xff]
    %v572 = vld [vmem:[#allocation2 + $0x1c8] sm:$0xff]
    %v573 = vld [vmem:[#allocation2 + $0x1d0] sm:$0xff]
    %v574 = vld [vmem:[#allocation2 + $0x1d8] sm:$0xff]
    %v575 = vld [vmem:[#allocation2 + $0x1e0] sm:$0xff]
    %v576 = vld [vmem:[#allocation2 + $0x1e8] sm:$0xff]
    %v577 = vld [vmem:[#allocation2 + $0x1f0] sm:$0xff]
    %v578 = vld [vmem:[#allocation2 + $0x1f8] sm:$0xff]
    %579 = vmatprep.subr.mxu0 %v516
    %580 = vmatpush1.msra.mxu0 %v515
    %581 = vmatprep.subr.mxu0 %v520
    %582 = vmatpush1.msra.mxu0 %v519
    %583 = vmatprep.subr.mxu0 %v524
    %584 = vmatpush1.msra.mxu0 %v523
    %585 = vmatprep.subr.mxu0 %v528
    %586 = vmatpush1.msra.mxu0 %v527
    %587 = vmatprep.subr.mxu0 %v532
    %588 = vmatpush1.msra.mxu0 %v531
    %589 = vmatprep.subr.mxu0 %v536
    %590 = vmatpush1.msra.mxu0 %v535
    %591 = vmatprep.subr.mxu0 %v540
    %592 = vmatpush1.msra.mxu0 %v539
    %593 = vmatprep.subr.mxu0 %v544
    %594 = vmatpush1.msra.mxu0 %v543
    %595 = vmatprep.subr.mxu0 %v548
    %596 = vmatpush1.msra.mxu0 %v547
    %597 = vmatprep.subr.mxu0 %v552
    %598 = vmatpush1.msra.mxu0 %v551
    %599 = vmatprep.subr.mxu0 %v556
    %600 = vmatpush1.msra.mxu0 %v555
    %601 = vmatprep.subr.mxu0 %v560
    %602 = vmatpush1.msra.mxu0 %v559
    %603 = vmatprep.subr.mxu0 %v564
    %604 = vmatpush1.msra.mxu0 %v563
    %605 = vmatprep.subr.mxu0 %v568
    %606 = vmatpush1.msra.mxu0 %v567
    %607 = vmatprep.subr.mxu0 %v572
    %608 = vmatpush1.msra.mxu0 %v571
    %609 = vmatprep.subr.mxu0 %v576
    %610 = vmatpush1.msra.mxu0 %v575
    %611 = vmatprep.subr.mxu0 0.0
    %612 = vmatpush1.msra.mxu0 0.0
    %613 = vmatprep.subr.mxu0 0.0
    %614 = vmatpush1.msra.mxu0 0.0
    %615 = vmatprep.subr.mxu0 0.0
    %616 = vmatpush1.msra.mxu0 0.0
    %617 = vmatprep.subr.mxu0 0.0
    %618 = vmatpush1.msra.mxu0 0.0
    %619 = vmatprep.subr.mxu0 0.0
    %620 = vmatpush1.msra.mxu0 0.0
    %621 = vmatprep.subr.mxu0 0.0
    %622 = vmatpush1.msra.mxu0 0.0
    %623 = vmatprep.subr.mxu0 0.0
    %624 = vmatpush1.msra.mxu0 0.0
    %625 = vmatprep.subr.mxu0 0.0
    %626 = vmatpush1.msra.mxu0 0.0
    %627 = vmatprep.subr.mxu0 0.0
    %628 = vmatpush1.msra.mxu0 0.0
    %629 = vmatprep.subr.mxu0 0.0
    %630 = vmatpush1.msra.mxu0 0.0
    %631 = vmatprep.subr.mxu0 0.0
    %632 = vmatpush1.msra.mxu0 0.0
    %633 = vmatprep.subr.mxu0 0.0
    %634 = vmatpush1.msra.mxu0 0.0
    %635 = vmatprep.subr.mxu0 0.0
    %636 = vmatpush1.msra.mxu0 0.0
    %637 = vmatprep.subr.mxu0 0.0
    %638 = vmatpush1.msra.mxu0 0.0
    %639 = vmatprep.subr.mxu0 0.0
    %640 = vmatpush1.msra.mxu0 0.0
    %641 = vmatprep.subr.mxu0 0.0
    %642 = vmatpush1.msra.mxu0 0.0
    %643 = vmatprep.mubr.f32.mxu0 0.0
    %644 = vmatmul.mubr.f32.gmra.mrb[0].mxu0 %v514
    %v645 = vpop.f32.mrb[0].mxu0
    %v646 = vadd.f32 %v179, %v645
    %v647 = vpop.f32.mrb[0].mxu0
    %v648 = vadd.f32 %v181, %v647
    %649 = vdwg.mxu0
    %650 = vmatprep.subr.mxu0 %v518
    %651 = vmatpush1.msra.mxu0 %v517
    %652 = vmatprep.subr.mxu0 %v522
    %653 = vmatpush1.msra.mxu0 %v521
    %654 = vmatprep.subr.mxu0 %v526
    %655 = vmatpush1.msra.mxu0 %v525
    %656 = vmatprep.subr.mxu0 %v530
    %657 = vmatpush1.msra.mxu0 %v529
    %658 = vmatprep.subr.mxu0 %v534
    %659 = vmatpush1.msra.mxu0 %v533
    %660 = vmatprep.subr.mxu0 %v538
    %661 = vmatpush1.msra.mxu0 %v537
    %662 = vmatprep.subr.mxu0 %v542
    %663 = vmatpush1.msra.mxu0 %v541
    %664 = vmatprep.subr.mxu0 %v546
    %665 = vmatpush1.msra.mxu0 %v545
    %666 = vmatprep.subr.mxu0 %v550
    %667 = vmatpush1.msra.mxu0 %v549
    %668 = vmatprep.subr.mxu0 %v554
    %669 = vmatpush1.msra.mxu0 %v553
    %670 = vmatprep.subr.mxu0 %v558
    %671 = vmatpush1.msra.mxu0 %v557
    %672 = vmatprep.subr.mxu0 %v562
    %673 = vmatpush1.msra.mxu0 %v561
    %674 = vmatprep.subr.mxu0 %v566
    %675 = vmatpush1.msra.mxu0 %v565
    %676 = vmatprep.subr.mxu0 %v570
    %677 = vmatpush1.msra.mxu0 %v569
    %678 = vmatprep.subr.mxu0 %v574
    %679 = vmatpush1.msra.mxu0 %v573
    %680 = vmatprep.subr.mxu0 %v578
    %681 = vmatpush1.msra.mxu0 %v577
    %682 = vmatprep.subr.mxu0 0.0
    %683 = vmatpush1.msra.mxu0 0.0
    %684 = vmatprep.subr.mxu0 0.0
    %685 = vmatpush1.msra.mxu0 0.0
    %686 = vmatprep.subr.mxu0 0.0
    %687 = vmatpush1.msra.mxu0 0.0
    %688 = vmatprep.subr.mxu0 0.0
    %689 = vmatpush1.msra.mxu0 0.0
    %690 = vmatprep.subr.mxu0 0.0
    %691 = vmatpush1.msra.mxu0 0.0
    %692 = vmatprep.subr.mxu0 0.0
    %693 = vmatpush1.msra.mxu0 0.0
    %694 = vmatprep.subr.mxu0 0.0
    %695 = vmatpush1.msra.mxu0 0.0
    %696 = vmatprep.subr.mxu0 0.0
    %697 = vmatpush1.msra.mxu0 0.0
    %698 = vmatprep.subr.mxu0 0.0
    %699 = vmatpush1.msra.mxu0 0.0
    %700 = vmatprep.subr.mxu0 0.0
    %701 = vmatpush1.msra.mxu0 0.0
    %702 = vmatprep.subr.mxu0 0.0
    %703 = vmatpush1.msra.mxu0 0.0
    %704 = vmatprep.subr.mxu0 0.0
    %705 = vmatpush1.msra.mxu0 0.0
    %706 = vmatprep.subr.mxu0 0.0
    %707 = vmatpush1.msra.mxu0 0.0
    %708 = vmatprep.subr.mxu0 0.0
    %709 = vmatpush1.msra.mxu0 0.0
    %710 = vmatprep.subr.mxu0 0.0
    %711 = vmatpush1.msra.mxu0 0.0
    %712 = vmatprep.subr.mxu0 0.0
    %713 = vmatpush1.msra.mxu0 0.0
    %714 = vmatprep.mubr.f32.mxu0 0.0
    %715 = vmatmul.mubr.f32.gmra.mrb[0].mxu0 %v514
    %v716 = vpop.f32.mrb[0].mxu0
    %v717 = vadd.f32 %v250, %v716
    %v718 = vpop.f32.mrb[0].mxu0
    %v719 = vadd.f32 %v252, %v718
    %720 = vdwg.mxu0
    %v721 = vld [vmem:[%s4] sm:$0xf]
    %v723 = vlaneseq
    %v724 = vshrl.u32 %v723, 7
    %v725 = vsub.s32 0, %v724
    %v726 = vrot.slane %v721, %v725
    %v727 = vlaneseq
    %v728 = vshrl.u32 %v727, 7
    %v729 = vsub.s32 1, %v728
    %v730 = vrot.slane %v721, %v729
    %v731 = vlaneseq
    %v732 = vshrl.u32 %v731, 7
    %v733 = vsub.s32 2, %v732
    %v734 = vrot.slane %v721, %v733
    %v735 = vlaneseq
    %v736 = vshrl.u32 %v735, 7
    %v737 = vsub.s32 3, %v736
    %v738 = vrot.slane %v721, %v737
    %v743 = vadd.f32 %v646, %v726
    %v744 = vadd.f32 %v648, %v730
    %v745 = vadd.f32 %v717, %v734
    %v746 = vadd.f32 %v719, %v738
    %v747 = vxor.u32 %v743, 2147483648
    %v748 = vmul.f32 %v747, 1.442695
    %v749 = vpow.pop %v748
    %v750 = vadd.f32 %v749, 1.0
    %v751 = vrcp.pop %v750
    %v752 = vmul.f32 1.0, %v751
    %v753 = vxor.u32 %v744, 2147483648
    %v754 = vmul.f32 %v753, 1.442695
    %v755 = vpow.pop %v754
    %v756 = vadd.f32 %v755, 1.0
    %v757 = vrcp.pop %v756
    %v758 = vmul.f32 1.0, %v757
    %v759 = vtanh.pop %v745
    %v760 = vxor.u32 %v746, 2147483648
    %v761 = vmul.f32 %v760, 1.442695
    %v762 = vpow.pop %v761
    %v763 = vadd.f32 %v762, 1.0
    %v764 = vrcp.pop %v763
    %v765 = vmul.f32 1.0, %v764
    %v766 = vmul.f32 %v758, 0.0
    %v767 = vmul.f32 %v752, %v759
    %v768 = vadd.f32 %v766, %v767
    %v769 = vtanh.pop %v768
    %v770 = vmul.f32 %v765, %v769
    %771 = vmatprep.subr.mxu0 %v49
    %772 = vmatpush1.msra.mxu0 %v48
    %773 = vmatprep.subr.mxu0 %v53
    %774 = vmatpush1.msra.mxu0 %v52
    %775 = vmatprep.subr.mxu0 %v57
    %776 = vmatpush1.msra.mxu0 %v56
    %777 = vmatprep.subr.mxu0 %v61
    %778 = vmatpush1.msra.mxu0 %v60
    %779 = vmatprep.subr.mxu0 %v65
    %780 = vmatpush1.msra.mxu0 %v64
    %781 = vmatprep.subr.mxu0 %v69
    %782 = vmatpush1.msra.mxu0 %v68
    %783 = vmatprep.subr.mxu0 %v73
    %784 = vmatpush1.msra.mxu0 %v72
    %785 = vmatprep.subr.mxu0 %v77
    %786 = vmatpush1.msra.mxu0 %v76
    %787 = vmatprep.subr.mxu0 %v81
    %788 = vmatpush1.msra.mxu0 %v80
    %789 = vmatprep.subr.mxu0 %v85
    %790 = vmatpush1.msra.mxu0 %v84
    %791 = vmatprep.subr.mxu0 %v89
    %792 = vmatpush1.msra.mxu0 %v88
    %793 = vmatprep.subr.mxu0 %v93
    %794 = vmatpush1.msra.mxu0 %v92
    %795 = vmatprep.subr.mxu0 %v97
    %796 = vmatpush1.msra.mxu0 %v96
    %797 = vmatprep.subr.mxu0 %v101
    %798 = vmatpush1.msra.mxu0 %v100
    %799 = vmatprep.subr.mxu0 %v105
    %800 = vmatpush1.msra.mxu0 %v104
    %801 = vmatprep.subr.mxu0 %v109
    %802 = vmatpush1.msra.mxu0 %v108
    %803 = vmatprep.subr.mxu0 0.0
    %804 = vmatpush1.msra.mxu0 0.0
    %805 = vmatprep.subr.mxu0 0.0
    %806 = vmatpush1.msra.mxu0 0.0
    %807 = vmatprep.subr.mxu0 0.0
    %808 = vmatpush1.msra.mxu0 0.0
    %809 = vmatprep.subr.mxu0 0.0
    %810 = vmatpush1.msra.mxu0 0.0
    %811 = vmatprep.subr.mxu0 0.0
    %812 = vmatpush1.msra.mxu0 0.0
    %813 = vmatprep.subr.mxu0 0.0
    %814 = vmatpush1.msra.mxu0 0.0
    %815 = vmatprep.subr.mxu0 0.0
    %816 = vmatpush1.msra.mxu0 0.0
    %817 = vmatprep.subr.mxu0 0.0
    %818 = vmatpush1.msra.mxu0 0.0
    %819 = vmatprep.subr.mxu0 0.0
    %820 = vmatpush1.msra.mxu0 0.0
    %821 = vmatprep.subr.mxu0 0.0
    %822 = vmatpush1.msra.mxu0 0.0
    %823 = vmatprep.subr.mxu0 0.0
    %824 = vmatpush1.msra.mxu0 0.0
    %825 = vmatprep.subr.mxu0 0.0
    %826 = vmatpush1.msra.mxu0 0.0
    %827 = vmatprep.subr.mxu0 0.0
    %828 = vmatpush1.msra.mxu0 0.0
    %829 = vmatprep.subr.mxu0 0.0
    %830 = vmatpush1.msra.mxu0 0.0
    %831 = vmatprep.subr.mxu0 0.0
    %832 = vmatpush1.msra.mxu0 0.0
    %833 = vmatprep.subr.mxu0 0.0
    %834 = vmatpush1.msra.mxu0 0.0
    %835 = vmatprep.mubr.f32.mxu0 0.0
    %836 = vmatmul.mubr.f32.gmra.mrb[0].mxu0 %v770
    %v837 = vpop.f32.mrb[0].mxu0
    %v838 = vadd.f32 0.0, %v837
    %v839 = vpop.f32.mrb[0].mxu0
    %v840 = vadd.f32 0.0, %v839
    %841 = vdwg.mxu0
    %842 = vmatprep.subr.mxu0 %v51
    %843 = vmatpush1.msra.mxu0 %v50
    %844 = vmatprep.subr.mxu0 %v55
    %845 = vmatpush1.msra.mxu0 %v54
    %846 = vmatprep.subr.mxu0 %v59
    %847 = vmatpush1.msra.mxu0 %v58
    %848 = vmatprep.subr.mxu0 %v63
    %849 = vmatpush1.msra.mxu0 %v62
    %850 = vmatprep.subr.mxu0 %v67
    %851 = vmatpush1.msra.mxu0 %v66
    %852 = vmatprep.subr.mxu0 %v71
    %853 = vmatpush1.msra.mxu0 %v70
    %854 = vmatprep.subr.mxu0 %v75
    %855 = vmatpush1.msra.mxu0 %v74
    %856 = vmatprep.subr.mxu0 %v79
    %857 = vmatpush1.msra.mxu0 %v78
    %858 = vmatprep.subr.mxu0 %v83
    %859 = vmatpush1.msra.mxu0 %v82
    %860 = vmatprep.subr.mxu0 %v87
    %861 = vmatpush1.msra.mxu0 %v86
    %862 = vmatprep.subr.mxu0 %v91
    %863 = vmatpush1.msra.mxu0 %v90
    %864 = vmatprep.subr.mxu0 %v95
    %865 = vmatpush1.msra.mxu0 %v94
    %866 = vmatprep.subr.mxu0 %v99
    %867 = vmatpush1.msra.mxu0 %v98
    %868 = vmatprep.subr.mxu0 %v103
    %869 = vmatpush1.msra.mxu0 %v102
    %870 = vmatprep.subr.mxu0 %v107
    %871 = vmatpush1.msra.mxu0 %v106
    %872 = vmatprep.subr.mxu0 %v111
    %873 = vmatpush1.msra.mxu0 %v110
    %874 = vmatprep.subr.mxu0 0.0
    %875 = vmatpush1.msra.mxu0 0.0
    %876 = vmatprep.subr.mxu0 0.0
    %877 = vmatpush1.msra.mxu0 0.0
    %878 = vmatprep.subr.mxu0 0.0
    %879 = vmatpush1.msra.mxu0 0.0
    %880 = vmatprep.subr.mxu0 0.0
    %881 = vmatpush1.msra.mxu0 0.0
    %882 = vmatprep.subr.mxu0 0.0
    %883 = vmatpush1.msra.mxu0 0.0
    %884 = vmatprep.subr.mxu0 0.0
    %885 = vmatpush1.msra.mxu0 0.0
    %886 = vmatprep.subr.mxu0 0.0
    %887 = vmatpush1.msra.mxu0 0.0
    %888 = vmatprep.subr.mxu0 0.0
    %889 = vmatpush1.msra.mxu0 0.0
    %890 = vmatprep.subr.mxu0 0.0
    %891 = vmatpush1.msra.mxu0 0.0
    %892 = vmatprep.subr.mxu0 0.0
    %893 = vmatpush1.msra.mxu0 0.0
    %894 = vmatprep.subr.mxu0 0.0
    %895 = vmatpush1.msra.mxu0 0.0
    %896 = vmatprep.subr.mxu0 0.0
    %897 = vmatpush1.msra.mxu0 0.0
    %898 = vmatprep.subr.mxu0 0.0
    %899 = vmatpush1.msra.mxu0 0.0
    %900 = vmatprep.subr.mxu0 0.0
    %901 = vmatpush1.msra.mxu0 0.0
    %902 = vmatprep.subr.mxu0 0.0
    %903 = vmatpush1.msra.mxu0 0.0
    %904 = vmatprep.subr.mxu0 0.0
    %905 = vmatpush1.msra.mxu0 0.0
    %906 = vmatprep.mubr.f32.mxu0 0.0
    %907 = vmatmul.mubr.f32.gmra.mrb[0].mxu0 %v770
    %v908 = vpop.f32.mrb[0].mxu0
    %v909 = vadd.f32 0.0, %v908
    %v910 = vpop.f32.mrb[0].mxu0
    %v911 = vadd.f32 0.0, %v910
    %912 = vdwg.mxu0
    %s913 = scalar_lea.vmem %s0, 8
    %v914 = vld [vmem:[%s913] sm:$0xff]
    %915 = vmatprep.subr.mxu0 %v256
    %916 = vmatpush1.msra.mxu0 %v255
    %917 = vmatprep.subr.mxu0 %v260
    %918 = vmatpush1.msra.mxu0 %v259
    %919 = vmatprep.subr.mxu0 %v264
    %920 = vmatpush1.msra.mxu0 %v263
    %921 = vmatprep.subr.mxu0 %v268
    %922 = vmatpush1.msra.mxu0 %v267
    %923 = vmatprep.subr.mxu0 %v272
    %924 = vmatpush1.msra.mxu0 %v271
    %925 = vmatprep.subr.mxu0 %v276
    %926 = vmatpush1.msra.mxu0 %v275
    %927 = vmatprep.subr.mxu0 %v280
    %928 = vmatpush1.msra.mxu0 %v279
    %929 = vmatprep.subr.mxu0 %v284
    %930 = vmatpush1.msra.mxu0 %v283
    %931 = vmatprep.subr.mxu0 %v288
    %932 = vmatpush1.msra.mxu0 %v287
    %933 = vmatprep.subr.mxu0 %v292
    %934 = vmatpush1.msra.mxu0 %v291
    %935 = vmatprep.subr.mxu0 %v296
    %936 = vmatpush1.msra.mxu0 %v295
    %937 = vmatprep.subr.mxu0 %v300
    %938 = vmatpush1.msra.mxu0 %v299
    %939 = vmatprep.subr.mxu0 %v304
    %940 = vmatpush1.msra.mxu0 %v303
    %941 = vmatprep.subr.mxu0 %v308
    %942 = vmatpush1.msra.mxu0 %v307
    %943 = vmatprep.subr.mxu0 %v312
    %944 = vmatpush1.msra.mxu0 %v311
    %945 = vmatprep.subr.mxu0 %v316
    %946 = vmatpush1.msra.mxu0 %v315
    %947 = vmatprep.subr.mxu0 0.0
    %948 = vmatpush1.msra.mxu0 0.0
    %949 = vmatprep.subr.mxu0 0.0
    %950 = vmatpush1.msra.mxu0 0.0
    %951 = vmatprep.subr.mxu0 0.0
    %952 = vmatpush1.msra.mxu0 0.0
    %953 = vmatprep.subr.mxu0 0.0
    %954 = vmatpush1.msra.mxu0 0.0
    %955 = vmatprep.subr.mxu0 0.0
    %956 = vmatpush1.msra.mxu0 0.0
    %957 = vmatprep.subr.mxu0 0.0
    %958 = vmatpush1.msra.mxu0 0.0
    %959 = vmatprep.subr.mxu0 0.0
    %960 = vmatpush1.msra.mxu0 0.0
    %961 = vmatprep.subr.mxu0 0.0
    %962 = vmatpush1.msra.mxu0 0.0
    %963 = vmatprep.subr.mxu0 0.0
    %964 = vmatpush1.msra.mxu0 0.0
    %965 = vmatprep.subr.mxu0 0.0
    %966 = vmatpush1.msra.mxu0 0.0
    %967 = vmatprep.subr.mxu0 0.0
    %968 = vmatpush1.msra.mxu0 0.0
    %969 = vmatprep.subr.mxu0 0.0
    %970 = vmatpush1.msra.mxu0 0.0
    %971 = vmatprep.subr.mxu0 0.0
    %972 = vmatpush1.msra.mxu0 0.0
    %973 = vmatprep.subr.mxu0 0.0
    %974 = vmatpush1.msra.mxu0 0.0
    %975 = vmatprep.subr.mxu0 0.0
    %976 = vmatpush1.msra.mxu0 0.0
    %977 = vmatprep.subr.mxu0 0.0
    %978 = vmatpush1.msra.mxu0 0.0
    %979 = vmatprep.mubr.f32.mxu0 0.0
    %980 = vmatmul.mubr.f32.gmra.mrb[0].mxu0 %v514
    %v981 = vpop.f32.mrb[0].mxu0
    %v982 = vadd.f32 0.0, %v981
    %v983 = vpop.f32.mrb[0].mxu0
    %v984 = vadd.f32 0.0, %v983
    %985 = vdwg.mxu0
    %986 = vmatprep.subr.mxu0 %v258
    %987 = vmatpush1.msra.mxu0 %v257
    %988 = vmatprep.subr.mxu0 %v262
    %989 = vmatpush1.msra.mxu0 %v261
    %990 = vmatprep.subr.mxu0 %v266
    %991 = vmatpush1.msra.mxu0 %v265
    %992 = vmatprep.subr.mxu0 %v270
    %993 = vmatpush1.msra.mxu0 %v269
    %994 = vmatprep.subr.mxu0 %v274
    %995 = vmatpush1.msra.mxu0 %v273
    %996 = vmatprep.subr.mxu0 %v278
    %997 = vmatpush1.msra.mxu0 %v277
    %998 = vmatprep.subr.mxu0 %v282
    %999 = vmatpush1.msra.mxu0 %v281
    %1000 = vmatprep.subr.mxu0 %v286
    %1001 = vmatpush1.msra.mxu0 %v285
    %1002 = vmatprep.subr.mxu0 %v290
    %1003 = vmatpush1.msra.mxu0 %v289
    %1004 = vmatprep.subr.mxu0 %v294
    %1005 = vmatpush1.msra.mxu0 %v293
    %1006 = vmatprep.subr.mxu0 %v298
    %1007 = vmatpush1.msra.mxu0 %v297
    %1008 = vmatprep.subr.mxu0 %v302
    %1009 = vmatpush1.msra.mxu0 %v301
    %1010 = vmatprep.subr.mxu0 %v306
    %1011 = vmatpush1.msra.mxu0 %v305
    %1012 = vmatprep.subr.mxu0 %v310
    %1013 = vmatpush1.msra.mxu0 %v309
    %1014 = vmatprep.subr.mxu0 %v314
    %1015 = vmatpush1.msra.mxu0 %v313
    %1016 = vmatprep.subr.mxu0 %v318
    %1017 = vmatpush1.msra.mxu0 %v317
    %1018 = vmatprep.subr.mxu0 0.0
    %1019 = vmatpush1.msra.mxu0 0.0
    %1020 = vmatprep.subr.mxu0 0.0
    %1021 = vmatpush1.msra.mxu0 0.0
    %1022 = vmatprep.subr.mxu0 0.0
    %1023 = vmatpush1.msra.mxu0 0.0
    %1024 = vmatprep.subr.mxu0 0.0
    %1025 = vmatpush1.msra.mxu0 0.0
    %1026 = vmatprep.subr.mxu0 0.0
    %1027 = vmatpush1.msra.mxu0 0.0
    %1028 = vmatprep.subr.mxu0 0.0
    %1029 = vmatpush1.msra.mxu0 0.0
    %1030 = vmatprep.subr.mxu0 0.0
    %1031 = vmatpush1.msra.mxu0 0.0
    %1032 = vmatprep.subr.mxu0 0.0
    %1033 = vmatpush1.msra.mxu0 0.0
    %1034 = vmatprep.subr.mxu0 0.0
    %1035 = vmatpush1.msra.mxu0 0.0
    %1036 = vmatprep.subr.mxu0 0.0
    %1037 = vmatpush1.msra.mxu0 0.0
    %1038 = vmatprep.subr.mxu0 0.0
    %1039 = vmatpush1.msra.mxu0 0.0
    %1040 = vmatprep.subr.mxu0 0.0
    %1041 = vmatpush1.msra.mxu0 0.0
    %1042 = vmatprep.subr.mxu0 0.0
    %1043 = vmatpush1.msra.mxu0 0.0
    %1044 = vmatprep.subr.mxu0 0.0
    %1045 = vmatpush1.msra.mxu0 0.0
    %1046 = vmatprep.subr.mxu0 0.0
    %1047 = vmatpush1.msra.mxu0 0.0
    %1048 = vmatprep.subr.mxu0 0.0
    %1049 = vmatpush1.msra.mxu0 0.0
    %1050 = vmatprep.mubr.f32.mxu0 0.0
    %1051 = vmatmul.mubr.f32.gmra.mrb[0].mxu0 %v514
    %v1052 = vpop.f32.mrb[0].mxu0
    %v1053 = vadd.f32 0.0, %v1052
    %v1054 = vpop.f32.mrb[0].mxu0
    %v1055 = vadd.f32 0.0, %v1054
    %1056 = vdwg.mxu0
    %v1061 = vcombine.low %v982, %v984
    %v1062 = vcombine.low %v1053, %v1055
    %v1064 = vunpack.c.l.s4 1983009808
    %v1065 = vunpack.c.0.s8 %v1064
    %v1066 = vlaneseq
    %v1067 = vshrl.u32 %v1066, 7
    %v1068 = vsub.s32 %v1065, %v1067
    %v1069 = vrot.slane %v1061, %v1068
    %v1071 = vunpack.c.l.s4 1983009808
    %v1072 = vunpack.c.0.s8 %v1071
    %v1073 = vlaneseq
    %v1074 = vshrl.u32 %v1073, 7
    %v1075 = vsub.s32 %v1072, %v1074
    %v1076 = vrot.slane %v1062, %v1075
    %v1077 = vcombine.low %v1069, %v1076
    %v1079 = vadd.f32 %v914, %v1077
    %v1080 = vxor.u32 %v1079, 2147483648
    %v1081 = vmul.f32 %v1080, 1.442695
    %v1082 = vpow.pop %v1081
    %v1083 = vadd.f32 %v1082, 1.0
    %v1084 = vrcp.pop %v1083
    %v1085 = vmul.f32 1.0, %v1084
    %v1087 = vrot.slane %v1079, 2
    %v1089 = vxor.u32 %v1087, 2147483648
    %v1090 = vmul.f32 %v1089, 1.442695
    %v1091 = vpow.pop %v1090
    %v1092 = vadd.f32 %v1091, 1.0
    %v1093 = vrcp.pop %v1092
    %v1094 = vmul.f32 1.0, %v1093
    %v1095 = vrot.slane %v1079, 4
    %v1097 = vtanh.pop %v1095
    %v1098 = vrot.slane %v1079, 6
    %v1100 = vxor.u32 %v1098, 2147483648
    %v1101 = vmul.f32 %v1100, 1.442695
    %v1102 = vpow.pop %v1101
    %v1103 = vadd.f32 %v1102, 1.0
    %v1104 = vrcp.pop %v1103
    %v1105 = vmul.f32 1.0, %v1104
    %v1106 = vmul.f32 %v1094, %v512
    %v1107 = vmul.f32 %v1085, %v1097
    %v1108 = vadd.f32 %v1106, %v1107
    %v1109 = vtanh.pop %v1108
    %v1110 = vmul.f32 %v1105, %v1109
    %1111 = vmatprep.subr.mxu0 %v516
    %1112 = vmatpush1.msra.mxu0 %v515
    %1113 = vmatprep.subr.mxu0 %v520
    %1114 = vmatpush1.msra.mxu0 %v519
    %1115 = vmatprep.subr.mxu0 %v524
    %1116 = vmatpush1.msra.mxu0 %v523
    %1117 = vmatprep.subr.mxu0 %v528
    %1118 = vmatpush1.msra.mxu0 %v527
    %1119 = vmatprep.subr.mxu0 %v532
    %1120 = vmatpush1.msra.mxu0 %v531
    %1121 = vmatprep.subr.mxu0 %v536
    %1122 = vmatpush1.msra.mxu0 %v535
    %1123 = vmatprep.subr.mxu0 %v540
    %1124 = vmatpush1.msra.mxu0 %v539
    %1125 = vmatprep.subr.mxu0 %v544
    %1126 = vmatpush1.msra.mxu0 %v543
    %1127 = vmatprep.subr.mxu0 %v548
    %1128 = vmatpush1.msra.mxu0 %v547
    %1129 = vmatprep.subr.mxu0 %v552
    %1130 = vmatpush1.msra.mxu0 %v551
    %1131 = vmatprep.subr.mxu0 %v556
    %1132 = vmatpush1.msra.mxu0 %v555
    %1133 = vmatprep.subr.mxu0 %v560
    %1134 = vmatpush1.msra.mxu0 %v559
    %1135 = vmatprep.subr.mxu0 %v564
    %1136 = vmatpush1.msra.mxu0 %v563
    %1137 = vmatprep.subr.mxu0 %v568
    %1138 = vmatpush1.msra.mxu0 %v567
    %1139 = vmatprep.subr.mxu0 %v572
    %1140 = vmatpush1.msra.mxu0 %v571
    %1141 = vmatprep.subr.mxu0 %v576
    %1142 = vmatpush1.msra.mxu0 %v575
    %1143 = vmatprep.subr.mxu0 0.0
    %1144 = vmatpush1.msra.mxu0 0.0
    %1145 = vmatprep.subr.mxu0 0.0
    %1146 = vmatpush1.msra.mxu0 0.0
    %1147 = vmatprep.subr.mxu0 0.0
    %1148 = vmatpush1.msra.mxu0 0.0
    %1149 = vmatprep.subr.mxu0 0.0
    %1150 = vmatpush1.msra.mxu0 0.0
    %1151 = vmatprep.subr.mxu0 0.0
    %1152 = vmatpush1.msra.mxu0 0.0
    %1153 = vmatprep.subr.mxu0 0.0
    %1154 = vmatpush1.msra.mxu0 0.0
    %1155 = vmatprep.subr.mxu0 0.0
    %1156 = vmatpush1.msra.mxu0 0.0
    %1157 = vmatprep.subr.mxu0 0.0
    %1158 = vmatpush1.msra.mxu0 0.0
    %1159 = vmatprep.subr.mxu0 0.0
    %1160 = vmatpush1.msra.mxu0 0.0
    %1161 = vmatprep.subr.mxu0 0.0
    %1162 = vmatpush1.msra.mxu0 0.0
    %1163 = vmatprep.subr.mxu0 0.0
    %1164 = vmatpush1.msra.mxu0 0.0
    %1165 = vmatprep.subr.mxu0 0.0
    %1166 = vmatpush1.msra.mxu0 0.0
    %1167 = vmatprep.subr.mxu0 0.0
    %1168 = vmatpush1.msra.mxu0 0.0
    %1169 = vmatprep.subr.mxu0 0.0
    %1170 = vmatpush1.msra.mxu0 0.0
    %1171 = vmatprep.subr.mxu0 0.0
    %1172 = vmatpush1.msra.mxu0 0.0
    %1173 = vmatprep.subr.mxu0 0.0
    %1174 = vmatpush1.msra.mxu0 0.0
    %1175 = vmatprep.mubr.f32.mxu0 0.0
    %1176 = vmatmul.mubr.f32.gmra.mrb[0].mxu0 %v1110
    %v1177 = vpop.f32.mrb[0].mxu0
    %v1178 = vadd.f32 %v838, %v1177
    %v1179 = vpop.f32.mrb[0].mxu0
    %v1180 = vadd.f32 %v840, %v1179
    %1181 = vdwg.mxu0
    %1182 = vmatprep.subr.mxu0 %v518
    %1183 = vmatpush1.msra.mxu0 %v517
    %1184 = vmatprep.subr.mxu0 %v522
    %1185 = vmatpush1.msra.mxu0 %v521
    %1186 = vmatprep.subr.mxu0 %v526
    %1187 = vmatpush1.msra.mxu0 %v525
    %1188 = vmatprep.subr.mxu0 %v530
    %1189 = vmatpush1.msra.mxu0 %v529
    %1190 = vmatprep.subr.mxu0 %v534
    %1191 = vmatpush1.msra.mxu0 %v533
    %1192 = vmatprep.subr.mxu0 %v538
    %1193 = vmatpush1.msra.mxu0 %v537
    %1194 = vmatprep.subr.mxu0 %v542
    %1195 = vmatpush1.msra.mxu0 %v541
    %1196 = vmatprep.subr.mxu0 %v546
    %1197 = vmatpush1.msra.mxu0 %v545
    %1198 = vmatprep.subr.mxu0 %v550
    %1199 = vmatpush1.msra.mxu0 %v549
    %1200 = vmatprep.subr.mxu0 %v554
    %1201 = vmatpush1.msra.mxu0 %v553
    %1202 = vmatprep.subr.mxu0 %v558
    %1203 = vmatpush1.msra.mxu0 %v557
    %1204 = vmatprep.subr.mxu0 %v562
    %1205 = vmatpush1.msra.mxu0 %v561
    %1206 = vmatprep.subr.mxu0 %v566
    %1207 = vmatpush1.msra.mxu0 %v565
    %1208 = vmatprep.subr.mxu0 %v570
    %1209 = vmatpush1.msra.mxu0 %v569
    %1210 = vmatprep.subr.mxu0 %v574
    %1211 = vmatpush1.msra.mxu0 %v573
    %1212 = vmatprep.subr.mxu0 %v578
    %1213 = vmatpush1.msra.mxu0 %v577
    %1214 = vmatprep.subr.mxu0 0.0
    %1215 = vmatpush1.msra.mxu0 0.0
    %1216 = vmatprep.subr.mxu0 0.0
    %1217 = vmatpush1.msra.mxu0 0.0
    %1218 = vmatprep.subr.mxu0 0.0
    %1219 = vmatpush1.msra.mxu0 0.0
    %1220 = vmatprep.subr.mxu0 0.0
    %1221 = vmatpush1.msra.mxu0 0.0
    %1222 = vmatprep.subr.mxu0 0.0
    %1223 = vmatpush1.msra.mxu0 0.0
    %1224 = vmatprep.subr.mxu0 0.0
    %1225 = vmatpush1.msra.mxu0 0.0
    %1226 = vmatprep.subr.mxu0 0.0
    %1227 = vmatpush1.msra.mxu0 0.0
    %1228 = vmatprep.subr.mxu0 0.0
    %1229 = vmatpush1.msra.mxu0 0.0
    %1230 = vmatprep.subr.mxu0 0.0
    %1231 = vmatpush1.msra.mxu0 0.0
    %1232 = vmatprep.subr.mxu0 0.0
    %1233 = vmatpush1.msra.mxu0 0.0
    %1234 = vmatprep.subr.mxu0 0.0
    %1235 = vmatpush1.msra.mxu0 0.0
    %1236 = vmatprep.subr.mxu0 0.0
    %1237 = vmatpush1.msra.mxu0 0.0
    %1238 = vmatprep.subr.mxu0 0.0
    %1239 = vmatpush1.msra.mxu0 0.0
    %1240 = vmatprep.subr.mxu0 0.0
    %1241 = vmatpush1.msra.mxu0 0.0
    %1242 = vmatprep.subr.mxu0 0.0
    %1243 = vmatpush1.msra.mxu0 0.0
    %1244 = vmatprep.subr.mxu0 0.0
    %1245 = vmatpush1.msra.mxu0 0.0
    %1246 = vmatprep.mubr.f32.mxu0 0.0
    %1247 = vmatmul.mubr.f32.gmra.mrb[0].mxu0 %v1110
    %v1248 = vpop.f32.mrb[0].mxu0
    %v1249 = vadd.f32 %v909, %v1248
    %v1250 = vpop.f32.mrb[0].mxu0
    %v1251 = vadd.f32 %v911, %v1250
    %1252 = vdwg.mxu0
    %v1253 = vadd.f32 %v1178, %v726
    %v1254 = vadd.f32 %v1180, %v730
    %v1255 = vadd.f32 %v1249, %v734
    %v1256 = vadd.f32 %v1251, %v738
    %v1257 = vxor.u32 %v1253, 2147483648
    %v1258 = vmul.f32 %v1257, 1.442695
    %v1259 = vpow.pop %v1258
    %v1260 = vadd.f32 %v1259, 1.0
    %v1261 = vrcp.pop %v1260
    %v1262 = vmul.f32 1.0, %v1261
    %v1263 = vxor.u32 %v1254, 2147483648
    %v1264 = vmul.f32 %v1263, 1.442695
    %v1265 = vpow.pop %v1264
    %v1266 = vadd.f32 %v1265, 1.0
    %v1267 = vrcp.pop %v1266
    %v1268 = vmul.f32 1.0, %v1267
    %v1269 = vtanh.pop %v1255
    %v1270 = vxor.u32 %v1256, 2147483648
    %v1271 = vmul.f32 %v1270, 1.442695
    %v1272 = vpow.pop %v1271
    %v1273 = vadd.f32 %v1272, 1.0
    %v1274 = vrcp.pop %v1273
    %v1275 = vmul.f32 1.0, %v1274
    %v1276 = vmul.f32 %v1268, %v768
    %v1277 = vmul.f32 %v1262, %v1269
    %v1278 = vadd.f32 %v1276, %v1277
    %v1279 = vtanh.pop %v1278
    %v1280 = vmul.f32 %v1275, %v1279
    %1281 = vmatprep.subr.mxu0 %v49
    %1282 = vmatpush1.msra.mxu0 %v48
    %1283 = vmatprep.subr.mxu0 %v53
    %1284 = vmatpush1.msra.mxu0 %v52
    %1285 = vmatprep.subr.mxu0 %v57
    %1286 = vmatpush1.msra.mxu0 %v56
    %1287 = vmatprep.subr.mxu0 %v61
    %1288 = vmatpush1.msra.mxu0 %v60
    %1289 = vmatprep.subr.mxu0 %v65
    %1290 = vmatpush1.msra.mxu0 %v64
    %1291 = vmatprep.subr.mxu0 %v69
    %1292 = vmatpush1.msra.mxu0 %v68
    %1293 = vmatprep.subr.mxu0 %v73
    %1294 = vmatpush1.msra.mxu0 %v72
    %1295 = vmatprep.subr.mxu0 %v77
    %1296 = vmatpush1.msra.mxu0 %v76
    %1297 = vmatprep.subr.mxu0 %v81
    %1298 = vmatpush1.msra.mxu0 %v80
    %1299 = vmatprep.subr.mxu0 %v85
    %1300 = vmatpush1.msra.mxu0 %v84
    %1301 = vmatprep.subr.mxu0 %v89
    %1302 = vmatpush1.msra.mxu0 %v88
    %1303 = vmatprep.subr.mxu0 %v93
    %1304 = vmatpush1.msra.mxu0 %v92
    %1305 = vmatprep.subr.mxu0 %v97
    %1306 = vmatpush1.msra.mxu0 %v96
    %1307 = vmatprep.subr.mxu0 %v101
    %1308 = vmatpush1.msra.mxu0 %v100
    %1309 = vmatprep.subr.mxu0 %v105
    %1310 = vmatpush1.msra.mxu0 %v104
    %1311 = vmatprep.subr.mxu0 %v109
    %1312 = vmatpush1.msra.mxu0 %v108
    %1313 = vmatprep.subr.mxu0 0.0
    %1314 = vmatpush1.msra.mxu0 0.0
    %1315 = vmatprep.subr.mxu0 0.0
    %1316 = vmatpush1.msra.mxu0 0.0
    %1317 = vmatprep.subr.mxu0 0.0
    %1318 = vmatpush1.msra.mxu0 0.0
    %1319 = vmatprep.subr.mxu0 0.0
    %1320 = vmatpush1.msra.mxu0 0.0
    %1321 = vmatprep.subr.mxu0 0.0
    %1322 = vmatpush1.msra.mxu0 0.0
    %1323 = vmatprep.subr.mxu0 0.0
    %1324 = vmatpush1.msra.mxu0 0.0
    %1325 = vmatprep.subr.mxu0 0.0
    %1326 = vmatpush1.msra.mxu0 0.0
    %1327 = vmatprep.subr.mxu0 0.0
    %1328 = vmatpush1.msra.mxu0 0.0
    %1329 = vmatprep.subr.mxu0 0.0
    %1330 = vmatpush1.msra.mxu0 0.0
    %1331 = vmatprep.subr.mxu0 0.0
    %1332 = vmatpush1.msra.mxu0 0.0
    %1333 = vmatprep.subr.mxu0 0.0
    %1334 = vmatpush1.msra.mxu0 0.0
    %1335 = vmatprep.subr.mxu0 0.0
    %1336 = vmatpush1.msra.mxu0 0.0
    %1337 = vmatprep.subr.mxu0 0.0
    %1338 = vmatpush1.msra.mxu0 0.0
    %1339 = vmatprep.subr.mxu0 0.0
    %1340 = vmatpush1.msra.mxu0 0.0
    %1341 = vmatprep.subr.mxu0 0.0
    %1342 = vmatpush1.msra.mxu0 0.0
    %1343 = vmatprep.subr.mxu0 0.0
    %1344 = vmatpush1.msra.mxu0 0.0
    %1345 = vmatprep.mubr.f32.mxu0 0.0
    %1346 = vmatmul.mubr.f32.gmra.mrb[0].mxu0 %v1280
    %v1347 = vpop.f32.mrb[0].mxu0
    %v1348 = vadd.f32 0.0, %v1347
    %v1349 = vpop.f32.mrb[0].mxu0
    %v1350 = vadd.f32 0.0, %v1349
    %1351 = vdwg.mxu0
    %1352 = vmatprep.subr.mxu0 %v51
    %1353 = vmatpush1.msra.mxu0 %v50
    %1354 = vmatprep.subr.mxu0 %v55
    %1355 = vmatpush1.msra.mxu0 %v54
    %1356 = vmatprep.subr.mxu0 %v59
    %1357 = vmatpush1.msra.mxu0 %v58
    %1358 = vmatprep.subr.mxu0 %v63
    %1359 = vmatpush1.msra.mxu0 %v62
    %1360 = vmatprep.subr.mxu0 %v67
    %1361 = vmatpush1.msra.mxu0 %v66
    %1362 = vmatprep.subr.mxu0 %v71
    %1363 = vmatpush1.msra.mxu0 %v70
    %1364 = vmatprep.subr.mxu0 %v75
    %1365 = vmatpush1.msra.mxu0 %v74
    %1366 = vmatprep.subr.mxu0 %v79
    %1367 = vmatpush1.msra.mxu0 %v78
    %1368 = vmatprep.subr.mxu0 %v83
    %1369 = vmatpush1.msra.mxu0 %v82
    %1370 = vmatprep.subr.mxu0 %v87
    %1371 = vmatpush1.msra.mxu0 %v86
    %1372 = vmatprep.subr.mxu0 %v91
    %1373 = vmatpush1.msra.mxu0 %v90
    %1374 = vmatprep.subr.mxu0 %v95
    %1375 = vmatpush1.msra.mxu0 %v94
    %1376 = vmatprep.subr.mxu0 %v99
    %1377 = vmatpush1.msra.mxu0 %v98
    %1378 = vmatprep.subr.mxu0 %v103
    %1379 = vmatpush1.msra.mxu0 %v102
    %1380 = vmatprep.subr.mxu0 %v107
    %1381 = vmatpush1.msra.mxu0 %v106
    %1382 = vmatprep.subr.mxu0 %v111
    %1383 = vmatpush1.msra.mxu0 %v110
    %1384 = vmatprep.subr.mxu0 0.0
    %1385 = vmatpush1.msra.mxu0 0.0
    %1386 = vmatprep.subr.mxu0 0.0
    %1387 = vmatpush1.msra.mxu0 0.0
    %1388 = vmatprep.subr.mxu0 0.0
    %1389 = vmatpush1.msra.mxu0 0.0
    %1390 = vmatprep.subr.mxu0 0.0
    %1391 = vmatpush1.msra.mxu0 0.0
    %1392 = vmatprep.subr.mxu0 0.0
    %1393 = vmatpush1.msra.mxu0 0.0
    %1394 = vmatprep.subr.mxu0 0.0
    %1395 = vmatpush1.msra.mxu0 0.0
    %1396 = vmatprep.subr.mxu0 0.0
    %1397 = vmatpush1.msra.mxu0 0.0
    %1398 = vmatprep.subr.mxu0 0.0
    %1399 = vmatpush1.msra.mxu0 0.0
    %1400 = vmatprep.subr.mxu0 0.0
    %1401 = vmatpush1.msra.mxu0 0.0
    %1402 = vmatprep.subr.mxu0 0.0
    %1403 = vmatpush1.msra.mxu0 0.0
    %1404 = vmatprep.subr.mxu0 0.0
    %1405 = vmatpush1.msra.mxu0 0.0
    %1406 = vmatprep.subr.mxu0 0.0
    %1407 = vmatpush1.msra.mxu0 0.0
    %1408 = vmatprep.subr.mxu0 0.0
    %1409 = vmatpush1.msra.mxu0 0.0
    %1410 = vmatprep.subr.mxu0 0.0
    %1411 = vmatpush1.msra.mxu0 0.0
    %1412 = vmatprep.subr.mxu0 0.0
    %1413 = vmatpush1.msra.mxu0 0.0
    %1414 = vmatprep.subr.mxu0 0.0
    %1415 = vmatpush1.msra.mxu0 0.0
    %1416 = vmatprep.mubr.f32.mxu0 0.0
    %1417 = vmatmul.mubr.f32.gmra.mrb[0].mxu0 %v1280
    %v1418 = vpop.f32.mrb[0].mxu0
    %v1419 = vadd.f32 0.0, %v1418
    %v1420 = vpop.f32.mrb[0].mxu0
    %v1421 = vadd.f32 0.0, %v1420
    %1422 = vdwg.mxu0
    %s1423 = scalar_lea.vmem %s0, 16
    %v1424 = vld [vmem:[%s1423] sm:$0xff]
    %1425 = vmatprep.subr.mxu0 %v256
    %1426 = vmatpush1.msra.mxu0 %v255
    %1427 = vmatprep.subr.mxu0 %v260
    %1428 = vmatpush1.msra.mxu0 %v259
    %1429 = vmatprep.subr.mxu0 %v264
    %1430 = vmatpush1.msra.mxu0 %v263
    %1431 = vmatprep.subr.mxu0 %v268
    %1432 = vmatpush1.msra.mxu0 %v267
    %1433 = vmatprep.subr.mxu0 %v272
    %1434 = vmatpush1.msra.mxu0 %v271
    %1435 = vmatprep.subr.mxu0 %v276
    %1436 = vmatpush1.msra.mxu0 %v275
    %1437 = vmatprep.subr.mxu0 %v280
    %1438 = vmatpush1.msra.mxu0 %v279
    %1439 = vmatprep.subr.mxu0 %v284
    %1440 = vmatpush1.msra.mxu0 %v283
    %1441 = vmatprep.subr.mxu0 %v288
    %1442 = vmatpush1.msra.mxu0 %v287
    %1443 = vmatprep.subr.mxu0 %v292
    %1444 = vmatpush1.msra.mxu0 %v291
    %1445 = vmatprep.subr.mxu0 %v296
    %1446 = vmatpush1.msra.mxu0 %v295
    %1447 = vmatprep.subr.mxu0 %v300
    %1448 = vmatpush1.msra.mxu0 %v299
    %1449 = vmatprep.subr.mxu0 %v304
    %1450 = vmatpush1.msra.mxu0 %v303
    %1451 = vmatprep.subr.mxu0 %v308
    %1452 = vmatpush1.msra.mxu0 %v307
    %1453 = vmatprep.subr.mxu0 %v312
    %1454 = vmatpush1.msra.mxu0 %v311
    %1455 = vmatprep.subr.mxu0 %v316
    %1456 = vmatpush1.msra.mxu0 %v315
    %1457 = vmatprep.subr.mxu0 0.0
    %1458 = vmatpush1.msra.mxu0 0.0
    %1459 = vmatprep.subr.mxu0 0.0
    %1460 = vmatpush1.msra.mxu0 0.0
    %1461 = vmatprep.subr.mxu0 0.0
    %1462 = vmatpush1.msra.mxu0 0.0
    %1463 = vmatprep.subr.mxu0 0.0
    %1464 = vmatpush1.msra.mxu0 0.0
    %1465 = vmatprep.subr.mxu0 0.0
    %1466 = vmatpush1.msra.mxu0 0.0
    %1467 = vmatprep.subr.mxu0 0.0
    %1468 = vmatpush1.msra.mxu0 0.0
    %1469 = vmatprep.subr.mxu0 0.0
    %1470 = vmatpush1.msra.mxu0 0.0
    %1471 = vmatprep.subr.mxu0 0.0
    %1472 = vmatpush1.msra.mxu0 0.0
    %1473 = vmatprep.subr.mxu0 0.0
    %1474 = vmatpush1.msra.mxu0 0.0
    %1475 = vmatprep.subr.mxu0 0.0
    %1476 = vmatpush1.msra.mxu0 0.0
    %1477 = vmatprep.subr.mxu0 0.0
    %1478 = vmatpush1.msra.mxu0 0.0
    %1479 = vmatprep.subr.mxu0 0.0
    %1480 = vmatpush1.msra.mxu0 0.0
    %1481 = vmatprep.subr.mxu0 0.0
    %1482 = vmatpush1.msra.mxu0 0.0
    %1483 = vmatprep.subr.mxu0 0.0
    %1484 = vmatpush1.msra.mxu0 0.0
    %1485 = vmatprep.subr.mxu0 0.0
    %1486 = vmatpush1.msra.mxu0 0.0
    %1487 = vmatprep.subr.mxu0 0.0
    %1488 = vmatpush1.msra.mxu0 0.0
    %1489 = vmatprep.mubr.f32.mxu0 0.0
    %1490 = vmatmul.mubr.f32.gmra.mrb[0].mxu0 %v1110
    %v1491 = vpop.f32.mrb[0].mxu0
    %v1492 = vadd.f32 0.0, %v1491
    %v1493 = vpop.f32.mrb[0].mxu0
    %v1494 = vadd.f32 0.0, %v1493
    %1495 = vdwg.mxu0
    %1496 = vmatprep.subr.mxu0 %v258
    %1497 = vmatpush1.msra.mxu0 %v257
    %1498 = vmatprep.subr.mxu0 %v262
    %1499 = vmatpush1.msra.mxu0 %v261
    %1500 = vmatprep.subr.mxu0 %v266
    %1501 = vmatpush1.msra.mxu0 %v265
    %1502 = vmatprep.subr.mxu0 %v270
    %1503 = vmatpush1.msra.mxu0 %v269
    %1504 = vmatprep.subr.mxu0 %v274
    %1505 = vmatpush1.msra.mxu0 %v273
    %1506 = vmatprep.subr.mxu0 %v278
    %1507 = vmatpush1.msra.mxu0 %v277
    %1508 = vmatprep.subr.mxu0 %v282
    %1509 = vmatpush1.msra.mxu0 %v281
    %1510 = vmatprep.subr.mxu0 %v286
    %1511 = vmatpush1.msra.mxu0 %v285
    %1512 = vmatprep.subr.mxu0 %v290
    %1513 = vmatpush1.msra.mxu0 %v289
    %1514 = vmatprep.subr.mxu0 %v294
    %1515 = vmatpush1.msra.mxu0 %v293
    %1516 = vmatprep.subr.mxu0 %v298
    %1517 = vmatpush1.msra.mxu0 %v297
    %1518 = vmatprep.subr.mxu0 %v302
    %1519 = vmatpush1.msra.mxu0 %v301
    %1520 = vmatprep.subr.mxu0 %v306
    %1521 = vmatpush1.msra.mxu0 %v305
    %1522 = vmatprep.subr.mxu0 %v310
    %1523 = vmatpush1.msra.mxu0 %v309
    %1524 = vmatprep.subr.mxu0 %v314
    %1525 = vmatpush1.msra.mxu0 %v313
    %1526 = vmatprep.subr.mxu0 %v318
    %1527 = vmatpush1.msra.mxu0 %v317
    %1528 = vmatprep.subr.mxu0 0.0
    %1529 = vmatpush1.msra.mxu0 0.0
    %1530 = vmatprep.subr.mxu0 0.0
    %1531 = vmatpush1.msra.mxu0 0.0
    %1532 = vmatprep.subr.mxu0 0.0
    %1533 = vmatpush1.msra.mxu0 0.0
    %1534 = vmatprep.subr.mxu0 0.0
    %1535 = vmatpush1.msra.mxu0 0.0
    %1536 = vmatprep.subr.mxu0 0.0
    %1537 = vmatpush1.msra.mxu0 0.0
    %1538 = vmatprep.subr.mxu0 0.0
    %1539 = vmatpush1.msra.mxu0 0.0
    %1540 = vmatprep.subr.mxu0 0.0
    %1541 = vmatpush1.msra.mxu0 0.0
    %1542 = vmatprep.subr.mxu0 0.0
    %1543 = vmatpush1.msra.mxu0 0.0
    %1544 = vmatprep.subr.mxu0 0.0
    %1545 = vmatpush1.msra.mxu0 0.0
    %1546 = vmatprep.subr.mxu0 0.0
    %1547 = vmatpush1.msra.mxu0 0.0
    %1548 = vmatprep.subr.mxu0 0.0
    %1549 = vmatpush1.msra.mxu0 0.0
    %1550 = vmatprep.subr.mxu0 0.0
    %1551 = vmatpush1.msra.mxu0 0.0
    %1552 = vmatprep.subr.mxu0 0.0
    %1553 = vmatpush1.msra.mxu0 0.0
    %1554 = vmatprep.subr.mxu0 0.0
    %1555 = vmatpush1.msra.mxu0 0.0
    %1556 = vmatprep.subr.mxu0 0.0
    %1557 = vmatpush1.msra.mxu0 0.0
    %1558 = vmatprep.subr.mxu0 0.0
    %1559 = vmatpush1.msra.mxu0 0.0
    %1560 = vmatprep.mubr.f32.mxu0 0.0
    %1561 = vmatmul.mubr.f32.gmra.mrb[0].mxu0 %v1110
    %v1562 = vpop.f32.mrb[0].mxu0
    %v1563 = vadd.f32 0.0, %v1562
    %v1564 = vpop.f32.mrb[0].mxu0
    %v1565 = vadd.f32 0.0, %v1564
    %1566 = vdwg.mxu0
    %v1571 = vcombine.low %v1492, %v1494
    %v1572 = vcombine.low %v1563, %v1565
    %v1574 = vunpack.c.l.s4 1983009808
    %v1575 = vunpack.c.0.s8 %v1574
    %v1576 = vlaneseq
    %v1577 = vshrl.u32 %v1576, 7
    %v1578 = vsub.s32 %v1575, %v1577
    %v1579 = vrot.slane %v1571, %v1578
    %v1581 = vunpack.c.l.s4 1983009808
    %v1582 = vunpack.c.0.s8 %v1581
    %v1583 = vlaneseq
    %v1584 = vshrl.u32 %v1583, 7
    %v1585 = vsub.s32 %v1582, %v1584
    %v1586 = vrot.slane %v1572, %v1585
    %v1587 = vcombine.low %v1579, %v1586
    %v1589 = vadd.f32 %v1424, %v1587
    %v1590 = vxor.u32 %v1589, 2147483648
    %v1591 = vmul.f32 %v1590, 1.442695
    %v1592 = vpow.pop %v1591
    %v1593 = vadd.f32 %v1592, 1.0
    %v1594 = vrcp.pop %v1593
    %v1595 = vmul.f32 1.0, %v1594
    %v1597 = vrot.slane %v1589, 2
    %v1599 = vxor.u32 %v1597, 2147483648
    %v1600 = vmul.f32 %v1599, 1.442695
    %v1601 = vpow.pop %v1600
    %v1602 = vadd.f32 %v1601, 1.0
    %v1603 = vrcp.pop %v1602
    %v1604 = vmul.f32 1.0, %v1603
    %v1605 = vrot.slane %v1589, 4
    %v1607 = vtanh.pop %v1605
    %v1608 = vrot.slane %v1589, 6
    %v1610 = vxor.u32 %v1608, 2147483648
    %v1611 = vmul.f32 %v1610, 1.442695
    %v1612 = vpow.pop %v1611
    %v1613 = vadd.f32 %v1612, 1.0
    %v1614 = vrcp.pop %v1613
    %v1615 = vmul.f32 1.0, %v1614
    %v1616 = vmul.f32 %v1604, %v1108
    %v1617 = vmul.f32 %v1595, %v1607
    %v1618 = vadd.f32 %v1616, %v1617
    %v1619 = vtanh.pop %v1618
    %v1620 = vmul.f32 %v1615, %v1619
    %1621 = vmatprep.subr.mxu0 %v516
    %1622 = vmatpush1.msra.mxu0 %v515
    %1623 = vmatprep.subr.mxu0 %v520
    %1624 = vmatpush1.msra.mxu0 %v519
    %1625 = vmatprep.subr.mxu0 %v524
    %1626 = vmatpush1.msra.mxu0 %v523
    %1627 = vmatprep.subr.mxu0 %v528
    %1628 = vmatpush1.msra.mxu0 %v527
    %1629 = vmatprep.subr.mxu0 %v532
    %1630 = vmatpush1.msra.mxu0 %v531
    %1631 = vmatprep.subr.mxu0 %v536
    %1632 = vmatpush1.msra.mxu0 %v535
    %1633 = vmatprep.subr.mxu0 %v540
    %1634 = vmatpush1.msra.mxu0 %v539
    %1635 = vmatprep.subr.mxu0 %v544
    %1636 = vmatpush1.msra.mxu0 %v543
    %1637 = vmatprep.subr.mxu0 %v548
    %1638 = vmatpush1.msra.mxu0 %v547
    %1639 = vmatprep.subr.mxu0 %v552
    %1640 = vmatpush1.msra.mxu0 %v551
    %1641 = vmatprep.subr.mxu0 %v556
    %1642 = vmatpush1.msra.mxu0 %v555
    %1643 = vmatprep.subr.mxu0 %v560
    %1644 = vmatpush1.msra.mxu0 %v559
    %1645 = vmatprep.subr.mxu0 %v564
    %1646 = vmatpush1.msra.mxu0 %v563
    %1647 = vmatprep.subr.mxu0 %v568
    %1648 = vmatpush1.msra.mxu0 %v567
    %1649 = vmatprep.subr.mxu0 %v572
    %1650 = vmatpush1.msra.mxu0 %v571
    %1651 = vmatprep.subr.mxu0 %v576
    %1652 = vmatpush1.msra.mxu0 %v575
    %1653 = vmatprep.subr.mxu0 0.0
    %1654 = vmatpush1.msra.mxu0 0.0
    %1655 = vmatprep.subr.mxu0 0.0
    %1656 = vmatpush1.msra.mxu0 0.0
    %1657 = vmatprep.subr.mxu0 0.0
    %1658 = vmatpush1.msra.mxu0 0.0
    %1659 = vmatprep.subr.mxu0 0.0
    %1660 = vmatpush1.msra.mxu0 0.0
    %1661 = vmatprep.subr.mxu0 0.0
    %1662 = vmatpush1.msra.mxu0 0.0
    %1663 = vmatprep.subr.mxu0 0.0
    %1664 = vmatpush1.msra.mxu0 0.0
    %1665 = vmatprep.subr.mxu0 0.0
    %1666 = vmatpush1.msra.mxu0 0.0
    %1667 = vmatprep.subr.mxu0 0.0
    %1668 = vmatpush1.msra.mxu0 0.0
    %1669 = vmatprep.subr.mxu0 0.0
    %1670 = vmatpush1.msra.mxu0 0.0
    %1671 = vmatprep.subr.mxu0 0.0
    %1672 = vmatpush1.msra.mxu0 0.0
    %1673 = vmatprep.subr.mxu0 0.0
    %1674 = vmatpush1.msra.mxu0 0.0
    %1675 = vmatprep.subr.mxu0 0.0
    %1676 = vmatpush1.msra.mxu0 0.0
    %1677 = vmatprep.subr.mxu0 0.0
    %1678 = vmatpush1.msra.mxu0 0.0
    %1679 = vmatprep.subr.mxu0 0.0
    %1680 = vmatpush1.msra.mxu0 0.0
    %1681 = vmatprep.subr.mxu0 0.0
    %1682 = vmatpush1.msra.mxu0 0.0
    %1683 = vmatprep.subr.mxu0 0.0
    %1684 = vmatpush1.msra.mxu0 0.0
    %1685 = vmatprep.mubr.f32.mxu0 0.0
    %1686 = vmatmul.mubr.f32.gmra.mrb[0].mxu0 %v1620
    %v1687 = vpop.f32.mrb[0].mxu0
    %v1688 = vadd.f32 %v1348, %v1687
    %v1689 = vpop.f32.mrb[0].mxu0
    %v1690 = vadd.f32 %v1350, %v1689
    %1691 = vdwg.mxu0
    %1692 = vmatprep.subr.mxu0 %v518
    %1693 = vmatpush1.msra.mxu0 %v517
    %1694 = vmatprep.subr.mxu0 %v522
    %1695 = vmatpush1.msra.mxu0 %v521
    %1696 = vmatprep.subr.mxu0 %v526
    %1697 = vmatpush1.msra.mxu0 %v525
    %1698 = vmatprep.subr.mxu0 %v530
    %1699 = vmatpush1.msra.mxu0 %v529
    %1700 = vmatprep.subr.mxu0 %v534
    %1701 = vmatpush1.msra.mxu0 %v533
    %1702 = vmatprep.subr.mxu0 %v538
    %1703 = vmatpush1.msra.mxu0 %v537
    %1704 = vmatprep.subr.mxu0 %v542
    %1705 = vmatpush1.msra.mxu0 %v541
    %1706 = vmatprep.subr.mxu0 %v546
    %1707 = vmatpush1.msra.mxu0 %v545
    %1708 = vmatprep.subr.mxu0 %v550
    %1709 = vmatpush1.msra.mxu0 %v549
    %1710 = vmatprep.subr.mxu0 %v554
    %1711 = vmatpush1.msra.mxu0 %v553
    %1712 = vmatprep.subr.mxu0 %v558
    %1713 = vmatpush1.msra.mxu0 %v557
    %1714 = vmatprep.subr.mxu0 %v562
    %1715 = vmatpush1.msra.mxu0 %v561
    %1716 = vmatprep.subr.mxu0 %v566
    %1717 = vmatpush1.msra.mxu0 %v565
    %1718 = vmatprep.subr.mxu0 %v570
    %1719 = vmatpush1.msra.mxu0 %v569
    %1720 = vmatprep.subr.mxu0 %v574
    %1721 = vmatpush1.msra.mxu0 %v573
    %1722 = vmatprep.subr.mxu0 %v578
    %1723 = vmatpush1.msra.mxu0 %v577
    %1724 = vmatprep.subr.mxu0 0.0
    %1725 = vmatpush1.msra.mxu0 0.0
    %1726 = vmatprep.subr.mxu0 0.0
    %1727 = vmatpush1.msra.mxu0 0.0
    %1728 = vmatprep.subr.mxu0 0.0
    %1729 = vmatpush1.msra.mxu0 0.0
    %1730 = vmatprep.subr.mxu0 0.0
    %1731 = vmatpush1.msra.mxu0 0.0
    %1732 = vmatprep.subr.mxu0 0.0
    %1733 = vmatpush1.msra.mxu0 0.0
    %1734 = vmatprep.subr.mxu0 0.0
    %1735 = vmatpush1.msra.mxu0 0.0
    %1736 = vmatprep.subr.mxu0 0.0
    %1737 = vmatpush1.msra.mxu0 0.0
    %1738 = vmatprep.subr.mxu0 0.0
    %1739 = vmatpush1.msra.mxu0 0.0
    %1740 = vmatprep.subr.mxu0 0.0
    %1741 = vmatpush1.msra.mxu0 0.0
    %1742 = vmatprep.subr.mxu0 0.0
    %1743 = vmatpush1.msra.mxu0 0.0
    %1744 = vmatprep.subr.mxu0 0.0
    %1745 = vmatpush1.msra.mxu0 0.0
    %1746 = vmatprep.subr.mxu0 0.0
    %1747 = vmatpush1.msra.mxu0 0.0
    %1748 = vmatprep.subr.mxu0 0.0
    %1749 = vmatpush1.msra.mxu0 0.0
    %1750 = vmatprep.subr.mxu0 0.0
    %1751 = vmatpush1.msra.mxu0 0.0
    %1752 = vmatprep.subr.mxu0 0.0
    %1753 = vmatpush1.msra.mxu0 0.0
    %1754 = vmatprep.subr.mxu0 0.0
    %1755 = vmatpush1.msra.mxu0 0.0
    %1756 = vmatprep.mubr.f32.mxu0 0.0
    %1757 = vmatmul.mubr.f32.gmra.mrb[0].mxu0 %v1620
    %v1758 = vpop.f32.mrb[0].mxu0
    %v1759 = vadd.f32 %v1419, %v1758
    %v1760 = vpop.f32.mrb[0].mxu0
    %v1761 = vadd.f32 %v1421, %v1760
    %1762 = vdwg.mxu0
    %v1763 = vadd.f32 %v1688, %v726
    %v1764 = vadd.f32 %v1690, %v730
    %v1765 = vadd.f32 %v1759, %v734
    %v1766 = vadd.f32 %v1761, %v738
    %v1767 = vxor.u32 %v1763, 2147483648
    %v1768 = vmul.f32 %v1767, 1.442695
    %v1769 = vpow.pop %v1768
    %v1770 = vadd.f32 %v1769, 1.0
    %v1771 = vrcp.pop %v1770
    %v1772 = vmul.f32 1.0, %v1771
    %v1773 = vxor.u32 %v1764, 2147483648
    %v1774 = vmul.f32 %v1773, 1.442695
    %v1775 = vpow.pop %v1774
    %v1776 = vadd.f32 %v1775, 1.0
    %v1777 = vrcp.pop %v1776
    %v1778 = vmul.f32 1.0, %v1777
    %v1779 = vtanh.pop %v1765
    %v1780 = vxor.u32 %v1766, 2147483648
    %v1781 = vmul.f32 %v1780, 1.442695
    %v1782 = vpow.pop %v1781
    %v1783 = vadd.f32 %v1782, 1.0
    %v1784 = vrcp.pop %v1783
    %v1785 = vmul.f32 1.0, %v1784
    %v1786 = vmul.f32 %v1778, %v1278
    %v1787 = vmul.f32 %v1772, %v1779
    %v1788 = vadd.f32 %v1786, %v1787
    %v1789 = vtanh.pop %v1788
    %v1790 = vmul.f32 %v1785, %v1789
    %1791 = vmatprep.subr.mxu0 %v49
    %1792 = vmatpush1.msra.mxu0 %v48
    %1793 = vmatprep.subr.mxu0 %v53
    %1794 = vmatpush1.msra.mxu0 %v52
    %1795 = vmatprep.subr.mxu0 %v57
    %1796 = vmatpush1.msra.mxu0 %v56
    %1797 = vmatprep.subr.mxu0 %v61
    %1798 = vmatpush1.msra.mxu0 %v60
    %1799 = vmatprep.subr.mxu0 %v65
    %1800 = vmatpush1.msra.mxu0 %v64
    %1801 = vmatprep.subr.mxu0 %v69
    %1802 = vmatpush1.msra.mxu0 %v68
    %1803 = vmatprep.subr.mxu0 %v73
    %1804 = vmatpush1.msra.mxu0 %v72
    %1805 = vmatprep.subr.mxu0 %v77
    %1806 = vmatpush1.msra.mxu0 %v76
    %1807 = vmatprep.subr.mxu0 %v81
    %1808 = vmatpush1.msra.mxu0 %v80
    %1809 = vmatprep.subr.mxu0 %v85
    %1810 = vmatpush1.msra.mxu0 %v84
    %1811 = vmatprep.subr.mxu0 %v89
    %1812 = vmatpush1.msra.mxu0 %v88
    %1813 = vmatprep.subr.mxu0 %v93
    %1814 = vmatpush1.msra.mxu0 %v92
    %1815 = vmatprep.subr.mxu0 %v97
    %1816 = vmatpush1.msra.mxu0 %v96
    %1817 = vmatprep.subr.mxu0 %v101
    %1818 = vmatpush1.msra.mxu0 %v100
    %1819 = vmatprep.subr.mxu0 %v105
    %1820 = vmatpush1.msra.mxu0 %v104
    %1821 = vmatprep.subr.mxu0 %v109
    %1822 = vmatpush1.msra.mxu0 %v108
    %1823 = vmatprep.subr.mxu0 0.0
    %1824 = vmatpush1.msra.mxu0 0.0
    %1825 = vmatprep.subr.mxu0 0.0
    %1826 = vmatpush1.msra.mxu0 0.0
    %1827 = vmatprep.subr.mxu0 0.0
    %1828 = vmatpush1.msra.mxu0 0.0
    %1829 = vmatprep.subr.mxu0 0.0
    %1830 = vmatpush1.msra.mxu0 0.0
    %1831 = vmatprep.subr.mxu0 0.0
    %1832 = vmatpush1.msra.mxu0 0.0
    %1833 = vmatprep.subr.mxu0 0.0
    %1834 = vmatpush1.msra.mxu0 0.0
    %1835 = vmatprep.subr.mxu0 0.0
    %1836 = vmatpush1.msra.mxu0 0.0
    %1837 = vmatprep.subr.mxu0 0.0
    %1838 = vmatpush1.msra.mxu0 0.0
    %1839 = vmatprep.subr.mxu0 0.0
    %1840 = vmatpush1.msra.mxu0 0.0
    %1841 = vmatprep.subr.mxu0 0.0
    %1842 = vmatpush1.msra.mxu0 0.0
    %1843 = vmatprep.subr.mxu0 0.0
    %1844 = vmatpush1.msra.mxu0 0.0
    %1845 = vmatprep.subr.mxu0 0.0
    %1846 = vmatpush1.msra.mxu0 0.0
    %1847 = vmatprep.subr.mxu0 0.0
    %1848 = vmatpush1.msra.mxu0 0.0
    %1849 = vmatprep.subr.mxu0 0.0
    %1850 = vmatpush1.msra.mxu0 0.0
    %1851 = vmatprep.subr.mxu0 0.0
    %1852 = vmatpush1.msra.mxu0 0.0
    %1853 = vmatprep.subr.mxu0 0.0
    %1854 = vmatpush1.msra.mxu0 0.0
    %1855 = vmatprep.mubr.f32.mxu0 0.0
    %1856 = vmatmul.mubr.f32.gmra.mrb[0].mxu0 %v1790
    %v1857 = vpop.f32.mrb[0].mxu0
    %v1858 = vadd.f32 0.0, %v1857
    %v1859 = vpop.f32.mrb[0].mxu0
    %v1860 = vadd.f32 0.0, %v1859
    %1861 = vdwg.mxu0
    %1862 = vmatprep.subr.mxu0 %v51
    %1863 = vmatpush1.msra.mxu0 %v50
    %1864 = vmatprep.subr.mxu0 %v55
    %1865 = vmatpush1.msra.mxu0 %v54
    %1866 = vmatprep.subr.mxu0 %v59
    %1867 = vmatpush1.msra.mxu0 %v58
    %1868 = vmatprep.subr.mxu0 %v63
    %1869 = vmatpush1.msra.mxu0 %v62
    %1870 = vmatprep.subr.mxu0 %v67
    %1871 = vmatpush1.msra.mxu0 %v66
    %1872 = vmatprep.subr.mxu0 %v71
    %1873 = vmatpush1.msra.mxu0 %v70
    %1874 = vmatprep.subr.mxu0 %v75
    %1875 = vmatpush1.msra.mxu0 %v74
    %1876 = vmatprep.subr.mxu0 %v79
    %1877 = vmatpush1.msra.mxu0 %v78
    %1878 = vmatprep.subr.mxu0 %v83
    %1879 = vmatpush1.msra.mxu0 %v82
    %1880 = vmatprep.subr.mxu0 %v87
    %1881 = vmatpush1.msra.mxu0 %v86
    %1882 = vmatprep.subr.mxu0 %v91
    %1883 = vmatpush1.msra.mxu0 %v90
    %1884 = vmatprep.subr.mxu0 %v95
    %1885 = vmatpush1.msra.mxu0 %v94
    %1886 = vmatprep.subr.mxu0 %v99
    %1887 = vmatpush1.msra.mxu0 %v98
    %1888 = vmatprep.subr.mxu0 %v103
    %1889 = vmatpush1.msra.mxu0 %v102
    %1890 = vmatprep.subr.mxu0 %v107
    %1891 = vmatpush1.msra.mxu0 %v106
    %1892 = vmatprep.subr.mxu0 %v111
    %1893 = vmatpush1.msra.mxu0 %v110
    %1894 = vmatprep.subr.mxu0 0.0
    %1895 = vmatpush1.msra.mxu0 0.0
    %1896 = vmatprep.subr.mxu0 0.0
    %1897 = vmatpush1.msra.mxu0 0.0
    %1898 = vmatprep.subr.mxu0 0.0
    %1899 = vmatpush1.msra.mxu0 0.0
    %1900 = vmatprep.subr.mxu0 0.0
    %1901 = vmatpush1.msra.mxu0 0.0
    %1902 = vmatprep.subr.mxu0 0.0
    %1903 = vmatpush1.msra.mxu0 0.0
    %1904 = vmatprep.subr.mxu0 0.0
    %1905 = vmatpush1.msra.mxu0 0.0
    %1906 = vmatprep.subr.mxu0 0.0
    %1907 = vmatpush1.msra.mxu0 0.0
    %1908 = vmatprep.subr.mxu0 0.0
    %1909 = vmatpush1.msra.mxu0 0.0
    %1910 = vmatprep.subr.mxu0 0.0
    %1911 = vmatpush1.msra.mxu0 0.0
    %1912 = vmatprep.subr.mxu0 0.0
    %1913 = vmatpush1.msra.mxu0 0.0
    %1914 = vmatprep.subr.mxu0 0.0
    %1915 = vmatpush1.msra.mxu0 0.0
    %1916 = vmatprep.subr.mxu0 0.0
    %1917 = vmatpush1.msra.mxu0 0.0
    %1918 = vmatprep.subr.mxu0 0.0
    %1919 = vmatpush1.msra.mxu0 0.0
    %1920 = vmatprep.subr.mxu0 0.0
    %1921 = vmatpush1.msra.mxu0 0.0
    %1922 = vmatprep.subr.mxu0 0.0
    %1923 = vmatpush1.msra.mxu0 0.0
    %1924 = vmatprep.subr.mxu0 0.0
    %1925 = vmatpush1.msra.mxu0 0.0
    %1926 = vmatprep.mubr.f32.mxu0 0.0
    %1927 = vmatmul.mubr.f32.gmra.mrb[0].mxu0 %v1790
    %v1928 = vpop.f32.mrb[0].mxu0
    %v1929 = vadd.f32 0.0, %v1928
    %v1930 = vpop.f32.mrb[0].mxu0
    %v1931 = vadd.f32 0.0, %v1930
    %1932 = vdwg.mxu0
    %s1933 = scalar_lea.vmem %s0, 24
    %v1934 = vld [vmem:[%s1933] sm:$0xff]
    %1935 = vmatprep.subr.mxu0 %v256
    %1936 = vmatpush1.msra.mxu0 %v255
    %1937 = vmatprep.subr.mxu0 %v260
    %1938 = vmatpush1.msra.mxu0 %v259
    %1939 = vmatprep.subr.mxu0 %v264
    %1940 = vmatpush1.msra.mxu0 %v263
    %1941 = vmatprep.subr.mxu0 %v268
    %1942 = vmatpush1.msra.mxu0 %v267
    %1943 = vmatprep.subr.mxu0 %v272
    %1944 = vmatpush1.msra.mxu0 %v271
    %1945 = vmatprep.subr.mxu0 %v276
    %1946 = vmatpush1.msra.mxu0 %v275
    %1947 = vmatprep.subr.mxu0 %v280
    %1948 = vmatpush1.msra.mxu0 %v279
    %1949 = vmatprep.subr.mxu0 %v284
    %1950 = vmatpush1.msra.mxu0 %v283
    %1951 = vmatprep.subr.mxu0 %v288
    %1952 = vmatpush1.msra.mxu0 %v287
    %1953 = vmatprep.subr.mxu0 %v292
    %1954 = vmatpush1.msra.mxu0 %v291
    %1955 = vmatprep.subr.mxu0 %v296
    %1956 = vmatpush1.msra.mxu0 %v295
    %1957 = vmatprep.subr.mxu0 %v300
    %1958 = vmatpush1.msra.mxu0 %v299
    %1959 = vmatprep.subr.mxu0 %v304
    %1960 = vmatpush1.msra.mxu0 %v303
    %1961 = vmatprep.subr.mxu0 %v308
    %1962 = vmatpush1.msra.mxu0 %v307
    %1963 = vmatprep.subr.mxu0 %v312
    %1964 = vmatpush1.msra.mxu0 %v311
    %1965 = vmatprep.subr.mxu0 %v316
    %1966 = vmatpush1.msra.mxu0 %v315
    %1967 = vmatprep.subr.mxu0 0.0
    %1968 = vmatpush1.msra.mxu0 0.0
    %1969 = vmatprep.subr.mxu0 0.0
    %1970 = vmatpush1.msra.mxu0 0.0
    %1971 = vmatprep.subr.mxu0 0.0
    %1972 = vmatpush1.msra.mxu0 0.0
    %1973 = vmatprep.subr.mxu0 0.0
    %1974 = vmatpush1.msra.mxu0 0.0
    %1975 = vmatprep.subr.mxu0 0.0
    %1976 = vmatpush1.msra.mxu0 0.0
    %1977 = vmatprep.subr.mxu0 0.0
    %1978 = vmatpush1.msra.mxu0 0.0
    %1979 = vmatprep.subr.mxu0 0.0
    %1980 = vmatpush1.msra.mxu0 0.0
    %1981 = vmatprep.subr.mxu0 0.0
    %1982 = vmatpush1.msra.mxu0 0.0
    %1983 = vmatprep.subr.mxu0 0.0
    %1984 = vmatpush1.msra.mxu0 0.0
    %1985 = vmatprep.subr.mxu0 0.0
    %1986 = vmatpush1.msra.mxu0 0.0
    %1987 = vmatprep.subr.mxu0 0.0
    %1988 = vmatpush1.msra.mxu0 0.0
    %1989 = vmatprep.subr.mxu0 0.0
    %1990 = vmatpush1.msra.mxu0 0.0
    %1991 = vmatprep.subr.mxu0 0.0
    %1992 = vmatpush1.msra.mxu0 0.0
    %1993 = vmatprep.subr.mxu0 0.0
    %1994 = vmatpush1.msra.mxu0 0.0
    %1995 = vmatprep.subr.mxu0 0.0
    %1996 = vmatpush1.msra.mxu0 0.0
    %1997 = vmatprep.subr.mxu0 0.0
    %1998 = vmatpush1.msra.mxu0 0.0
    %1999 = vmatprep.mubr.f32.mxu0 0.0
    %2000 = vmatmul.mubr.f32.gmra.mrb[0].mxu0 %v1620
    %v2001 = vpop.f32.mrb[0].mxu0
    %v2002 = vadd.f32 0.0, %v2001
    %v2003 = vpop.f32.mrb[0].mxu0
    %v2004 = vadd.f32 0.0, %v2003
    %2005 = vdwg.mxu0
    %2006 = vmatprep.subr.mxu0 %v258
    %2007 = vmatpush1.msra.mxu0 %v257
    %2008 = vmatprep.subr.mxu0 %v262
    %2009 = vmatpush1.msra.mxu0 %v261
    %2010 = vmatprep.subr.mxu0 %v266
    %2011 = vmatpush1.msra.mxu0 %v265
    %2012 = vmatprep.subr.mxu0 %v270
    %2013 = vmatpush1.msra.mxu0 %v269
    %2014 = vmatprep.subr.mxu0 %v274
    %2015 = vmatpush1.msra.mxu0 %v273
    %2016 = vmatprep.subr.mxu0 %v278
    %2017 = vmatpush1.msra.mxu0 %v277
    %2018 = vmatprep.subr.mxu0 %v282
    %2019 = vmatpush1.msra.mxu0 %v281
    %2020 = vmatprep.subr.mxu0 %v286
    %2021 = vmatpush1.msra.mxu0 %v285
    %2022 = vmatprep.subr.mxu0 %v290
    %2023 = vmatpush1.msra.mxu0 %v289
    %2024 = vmatprep.subr.mxu0 %v294
    %2025 = vmatpush1.msra.mxu0 %v293
    %2026 = vmatprep.subr.mxu0 %v298
    %2027 = vmatpush1.msra.mxu0 %v297
    %2028 = vmatprep.subr.mxu0 %v302
    %2029 = vmatpush1.msra.mxu0 %v301
    %2030 = vmatprep.subr.mxu0 %v306
    %2031 = vmatpush1.msra.mxu0 %v305
    %2032 = vmatprep.subr.mxu0 %v310
    %2033 = vmatpush1.msra.mxu0 %v309
    %2034 = vmatprep.subr.mxu0 %v314
    %2035 = vmatpush1.msra.mxu0 %v313
    %2036 = vmatprep.subr.mxu0 %v318
    %2037 = vmatpush1.msra.mxu0 %v317
    %2038 = vmatprep.subr.mxu0 0.0
    %2039 = vmatpush1.msra.mxu0 0.0
    %2040 = vmatprep.subr.mxu0 0.0
    %2041 = vmatpush1.msra.mxu0 0.0
    %2042 = vmatprep.subr.mxu0 0.0
    %2043 = vmatpush1.msra.mxu0 0.0
    %2044 = vmatprep.subr.mxu0 0.0
    %2045 = vmatpush1.msra.mxu0 0.0
    %2046 = vmatprep.subr.mxu0 0.0
    %2047 = vmatpush1.msra.mxu0 0.0
    %2048 = vmatprep.subr.mxu0 0.0
    %2049 = vmatpush1.msra.mxu0 0.0
    %2050 = vmatprep.subr.mxu0 0.0
    %2051 = vmatpush1.msra.mxu0 0.0
    %2052 = vmatprep.subr.mxu0 0.0
    %2053 = vmatpush1.msra.mxu0 0.0
    %2054 = vmatprep.subr.mxu0 0.0
    %2055 = vmatpush1.msra.mxu0 0.0
    %2056 = vmatprep.subr.mxu0 0.0
    %2057 = vmatpush1.msra.mxu0 0.0
    %2058 = vmatprep.subr.mxu0 0.0
    %2059 = vmatpush1.msra.mxu0 0.0
    %2060 = vmatprep.subr.mxu0 0.0
    %2061 = vmatpush1.msra.mxu0 0.0
    %2062 = vmatprep.subr.mxu0 0.0
    %2063 = vmatpush1.msra.mxu0 0.0
    %2064 = vmatprep.subr.mxu0 0.0
    %2065 = vmatpush1.msra.mxu0 0.0
    %2066 = vmatprep.subr.mxu0 0.0
    %2067 = vmatpush1.msra.mxu0 0.0
    %2068 = vmatprep.subr.mxu0 0.0
    %2069 = vmatpush1.msra.mxu0 0.0
    %2070 = vmatprep.mubr.f32.mxu0 0.0
    %2071 = vmatmul.mubr.f32.gmra.mrb[0].mxu0 %v1620
    %v2072 = vpop.f32.mrb[0].mxu0
    %v2073 = vadd.f32 0.0, %v2072
    %v2074 = vpop.f32.mrb[0].mxu0
    %v2075 = vadd.f32 0.0, %v2074
    %2076 = vdwg.mxu0
    %v2081 = vcombine.low %v2002, %v2004
    %v2082 = vcombine.low %v2073, %v2075
    %v2084 = vunpack.c.l.s4 1983009808
    %v2085 = vunpack.c.0.s8 %v2084
    %v2086 = vlaneseq
    %v2087 = vshrl.u32 %v2086, 7
    %v2088 = vsub.s32 %v2085, %v2087
    %v2089 = vrot.slane %v2081, %v2088
    %v2091 = vunpack.c.l.s4 1983009808
    %v2092 = vunpack.c.0.s8 %v2091
    %v2093 = vlaneseq
    %v2094 = vshrl.u32 %v2093, 7
    %v2095 = vsub.s32 %v2092, %v2094
    %v2096 = vrot.slane %v2082, %v2095
    %v2097 = vcombine.low %v2089, %v2096
    %v2099 = vadd.f32 %v1934, %v2097
    %v2100 = vxor.u32 %v2099, 2147483648
    %v2101 = vmul.f32 %v2100, 1.442695
    %v2102 = vpow.pop %v2101
    %v2103 = vadd.f32 %v2102, 1.0
    %v2104 = vrcp.pop %v2103
    %v2105 = vmul.f32 1.0, %v2104
    %v2107 = vrot.slane %v2099, 2
    %v2109 = vxor.u32 %v2107, 2147483648
    %v2110 = vmul.f32 %v2109, 1.442695
    %v2111 = vpow.pop %v2110
    %v2112 = vadd.f32 %v2111, 1.0
    %v2113 = vrcp.pop %v2112
    %v2114 = vmul.f32 1.0, %v2113
    %v2115 = vrot.slane %v2099, 4
    %v2117 = vtanh.pop %v2115
    %v2118 = vrot.slane %v2099, 6
    %v2120 = vxor.u32 %v2118, 2147483648
    %v2121 = vmul.f32 %v2120, 1.442695
    %v2122 = vpow.pop %v2121
    %v2123 = vadd.f32 %v2122, 1.0
    %v2124 = vrcp.pop %v2123
    %v2125 = vmul.f32 1.0, %v2124
    %v2126 = vmul.f32 %v2114, %v1618
    %v2127 = vmul.f32 %v2105, %v2117
    %v2128 = vadd.f32 %v2126, %v2127
    %v2129 = vtanh.pop %v2128
    %v2130 = vmul.f32 %v2125, %v2129
    %2131 = vmatprep.subr.mxu0 %v516
    %2132 = vmatpush1.msra.mxu0 %v515
    %2133 = vmatprep.subr.mxu0 %v520
    %2134 = vmatpush1.msra.mxu0 %v519
    %2135 = vmatprep.subr.mxu0 %v524
    %2136 = vmatpush1.msra.mxu0 %v523
    %2137 = vmatprep.subr.mxu0 %v528
    %2138 = vmatpush1.msra.mxu0 %v527
    %2139 = vmatprep.subr.mxu0 %v532
    %2140 = vmatpush1.msra.mxu0 %v531
    %2141 = vmatprep.subr.mxu0 %v536
    %2142 = vmatpush1.msra.mxu0 %v535
    %2143 = vmatprep.subr.mxu0 %v540
    %2144 = vmatpush1.msra.mxu0 %v539
    %2145 = vmatprep.subr.mxu0 %v544
    %2146 = vmatpush1.msra.mxu0 %v543
    %2147 = vmatprep.subr.mxu0 %v548
    %2148 = vmatpush1.msra.mxu0 %v547
    %2149 = vmatprep.subr.mxu0 %v552
    %2150 = vmatpush1.msra.mxu0 %v551
    %2151 = vmatprep.subr.mxu0 %v556
    %2152 = vmatpush1.msra.mxu0 %v555
    %2153 = vmatprep.subr.mxu0 %v560
    %2154 = vmatpush1.msra.mxu0 %v559
    %2155 = vmatprep.subr.mxu0 %v564
    %2156 = vmatpush1.msra.mxu0 %v563
    %2157 = vmatprep.subr.mxu0 %v568
    %2158 = vmatpush1.msra.mxu0 %v567
    %2159 = vmatprep.subr.mxu0 %v572
    %2160 = vmatpush1.msra.mxu0 %v571
    %2161 = vmatprep.subr.mxu0 %v576
    %2162 = vmatpush1.msra.mxu0 %v575
    %2163 = vmatprep.subr.mxu0 0.0
    %2164 = vmatpush1.msra.mxu0 0.0
    %2165 = vmatprep.subr.mxu0 0.0
    %2166 = vmatpush1.msra.mxu0 0.0
    %2167 = vmatprep.subr.mxu0 0.0
    %2168 = vmatpush1.msra.mxu0 0.0
    %2169 = vmatprep.subr.mxu0 0.0
    %2170 = vmatpush1.msra.mxu0 0.0
    %2171 = vmatprep.subr.mxu0 0.0
    %2172 = vmatpush1.msra.mxu0 0.0
    %2173 = vmatprep.subr.mxu0 0.0
    %2174 = vmatpush1.msra.mxu0 0.0
    %2175 = vmatprep.subr.mxu0 0.0
    %2176 = vmatpush1.msra.mxu0 0.0
    %2177 = vmatprep.subr.mxu0 0.0
    %2178 = vmatpush1.msra.mxu0 0.0
    %2179 = vmatprep.subr.mxu0 0.0
    %2180 = vmatpush1.msra.mxu0 0.0
    %2181 = vmatprep.subr.mxu0 0.0
    %2182 = vmatpush1.msra.mxu0 0.0
    %2183 = vmatprep.subr.mxu0 0.0
    %2184 = vmatpush1.msra.mxu0 0.0
    %2185 = vmatprep.subr.mxu0 0.0
    %2186 = vmatpush1.msra.mxu0 0.0
    %2187 = vmatprep.subr.mxu0 0.0
    %2188 = vmatpush1.msra.mxu0 0.0
    %2189 = vmatprep.subr.mxu0 0.0
    %2190 = vmatpush1.msra.mxu0 0.0
    %2191 = vmatprep.subr.mxu0 0.0
    %2192 = vmatpush1.msra.mxu0 0.0
    %2193 = vmatprep.subr.mxu0 0.0
    %2194 = vmatpush1.msra.mxu0 0.0
    %2195 = vmatprep.mubr.f32.mxu0 0.0
    %2196 = vmatmul.mubr.f32.gmra.mrb[0].mxu0 %v2130
    %v2197 = vpop.f32.mrb[0].mxu0
    %v2198 = vadd.f32 %v1858, %v2197
    %v2199 = vpop.f32.mrb[0].mxu0
    %v2200 = vadd.f32 %v1860, %v2199
    %2201 = vdwg.mxu0
    %2202 = vmatprep.subr.mxu0 %v518
    %2203 = vmatpush1.msra.mxu0 %v517
    %2204 = vmatprep.subr.mxu0 %v522
    %2205 = vmatpush1.msra.mxu0 %v521
    %2206 = vmatprep.subr.mxu0 %v526
    %2207 = vmatpush1.msra.mxu0 %v525
    %2208 = vmatprep.subr.mxu0 %v530
    %2209 = vmatpush1.msra.mxu0 %v529
    %2210 = vmatprep.subr.mxu0 %v534
    %2211 = vmatpush1.msra.mxu0 %v533
    %2212 = vmatprep.subr.mxu0 %v538
    %2213 = vmatpush1.msra.mxu0 %v537
    %2214 = vmatprep.subr.mxu0 %v542
    %2215 = vmatpush1.msra.mxu0 %v541
    %2216 = vmatprep.subr.mxu0 %v546
    %2217 = vmatpush1.msra.mxu0 %v545
    %2218 = vmatprep.subr.mxu0 %v550
    %2219 = vmatpush1.msra.mxu0 %v549
    %2220 = vmatprep.subr.mxu0 %v554
    %2221 = vmatpush1.msra.mxu0 %v553
    %2222 = vmatprep.subr.mxu0 %v558
    %2223 = vmatpush1.msra.mxu0 %v557
    %2224 = vmatprep.subr.mxu0 %v562
    %2225 = vmatpush1.msra.mxu0 %v561
    %2226 = vmatprep.subr.mxu0 %v566
    %2227 = vmatpush1.msra.mxu0 %v565
    %2228 = vmatprep.subr.mxu0 %v570
    %2229 = vmatpush1.msra.mxu0 %v569
    %2230 = vmatprep.subr.mxu0 %v574
    %2231 = vmatpush1.msra.mxu0 %v573
    %2232 = vmatprep.subr.mxu0 %v578
    %2233 = vmatpush1.msra.mxu0 %v577
    %2234 = vmatprep.subr.mxu0 0.0
    %2235 = vmatpush1.msra.mxu0 0.0
    %2236 = vmatprep.subr.mxu0 0.0
    %2237 = vmatpush1.msra.mxu0 0.0
    %2238 = vmatprep.subr.mxu0 0.0
    %2239 = vmatpush1.msra.mxu0 0.0
    %2240 = vmatprep.subr.mxu0 0.0
    %2241 = vmatpush1.msra.mxu0 0.0
    %2242 = vmatprep.subr.mxu0 0.0
    %2243 = vmatpush1.msra.mxu0 0.0
    %2244 = vmatprep.subr.mxu0 0.0
    %2245 = vmatpush1.msra.mxu0 0.0
    %2246 = vmatprep.subr.mxu0 0.0
    %2247 = vmatpush1.msra.mxu0 0.0
    %2248 = vmatprep.subr.mxu0 0.0
    %2249 = vmatpush1.msra.mxu0 0.0
    %2250 = vmatprep.subr.mxu0 0.0
    %2251 = vmatpush1.msra.mxu0 0.0
    %2252 = vmatprep.subr.mxu0 0.0
    %2253 = vmatpush1.msra.mxu0 0.0
    %2254 = vmatprep.subr.mxu0 0.0
    %2255 = vmatpush1.msra.mxu0 0.0
    %2256 = vmatprep.subr.mxu0 0.0
    %2257 = vmatpush1.msra.mxu0 0.0
    %2258 = vmatprep.subr.mxu0 0.0
    %2259 = vmatpush1.msra.mxu0 0.0
    %2260 = vmatprep.subr.mxu0 0.0
    %2261 = vmatpush1.msra.mxu0 0.0
    %2262 = vmatprep.subr.mxu0 0.0
    %2263 = vmatpush1.msra.mxu0 0.0
    %2264 = vmatprep.subr.mxu0 0.0
    %2265 = vmatpush1.msra.mxu0 0.0
    %2266 = vmatprep.mubr.f32.mxu0 0.0
    %2267 = vmatmul.mubr.f32.gmra.mrb[0].mxu0 %v2130
    %v2268 = vpop.f32.mrb[0].mxu0
    %v2269 = vadd.f32 %v1929, %v2268
    %v2270 = vpop.f32.mrb[0].mxu0
    %v2271 = vadd.f32 %v1931, %v2270
    %2272 = vdwg.mxu0
    %v2273 = vadd.f32 %v2198, %v726
    %v2274 = vadd.f32 %v2200, %v730
    %v2275 = vadd.f32 %v2269, %v734
    %v2276 = vadd.f32 %v2271, %v738
    %v2277 = vxor.u32 %v2273, 2147483648
    %v2278 = vmul.f32 %v2277, 1.442695
    %v2279 = vpow.pop %v2278
    %v2280 = vadd.f32 %v2279, 1.0
    %v2281 = vrcp.pop %v2280
    %v2282 = vmul.f32 1.0, %v2281
    %v2283 = vxor.u32 %v2274, 2147483648
    %v2284 = vmul.f32 %v2283, 1.442695
    %v2285 = vpow.pop %v2284
    %v2286 = vadd.f32 %v2285, 1.0
    %v2287 = vrcp.pop %v2286
    %v2288 = vmul.f32 1.0, %v2287
    %v2289 = vtanh.pop %v2275
    %v2290 = vxor.u32 %v2276, 2147483648
    %v2291 = vmul.f32 %v2290, 1.442695
    %v2292 = vpow.pop %v2291
    %v2293 = vadd.f32 %v2292, 1.0
    %v2294 = vrcp.pop %v2293
    %v2295 = vmul.f32 1.0, %v2294
    %v2296 = vmul.f32 %v2288, %v1788
    %v2297 = vmul.f32 %v2282, %v2289
    %v2298 = vadd.f32 %v2296, %v2297
    %v2299 = vtanh.pop %v2298
    %v2300 = vmul.f32 %v2295, %v2299
    %2301 = vmatprep.subr.mxu0 %v49
    %2302 = vmatpush1.msra.mxu0 %v48
    %2303 = vmatprep.subr.mxu0 %v53
    %2304 = vmatpush1.msra.mxu0 %v52
    %2305 = vmatprep.subr.mxu0 %v57
    %2306 = vmatpush1.msra.mxu0 %v56
    %2307 = vmatprep.subr.mxu0 %v61
    %2308 = vmatpush1.msra.mxu0 %v60
    %2309 = vmatprep.subr.mxu0 %v65
    %2310 = vmatpush1.msra.mxu0 %v64
    %2311 = vmatprep.subr.mxu0 %v69
    %2312 = vmatpush1.msra.mxu0 %v68
    %2313 = vmatprep.subr.mxu0 %v73
    %2314 = vmatpush1.msra.mxu0 %v72
    %2315 = vmatprep.subr.mxu0 %v77
    %2316 = vmatpush1.msra.mxu0 %v76
    %2317 = vmatprep.subr.mxu0 %v81
    %2318 = vmatpush1.msra.mxu0 %v80
    %2319 = vmatprep.subr.mxu0 %v85
    %2320 = vmatpush1.msra.mxu0 %v84
    %2321 = vmatprep.subr.mxu0 %v89
    %2322 = vmatpush1.msra.mxu0 %v88
    %2323 = vmatprep.subr.mxu0 %v93
    %2324 = vmatpush1.msra.mxu0 %v92
    %2325 = vmatprep.subr.mxu0 %v97
    %2326 = vmatpush1.msra.mxu0 %v96
    %2327 = vmatprep.subr.mxu0 %v101
    %2328 = vmatpush1.msra.mxu0 %v100
    %2329 = vmatprep.subr.mxu0 %v105
    %2330 = vmatpush1.msra.mxu0 %v104
    %2331 = vmatprep.subr.mxu0 %v109
    %2332 = vmatpush1.msra.mxu0 %v108
    %2333 = vmatprep.subr.mxu0 0.0
    %2334 = vmatpush1.msra.mxu0 0.0
    %2335 = vmatprep.subr.mxu0 0.0
    %2336 = vmatpush1.msra.mxu0 0.0
    %2337 = vmatprep.subr.mxu0 0.0
    %2338 = vmatpush1.msra.mxu0 0.0
    %2339 = vmatprep.subr.mxu0 0.0
    %2340 = vmatpush1.msra.mxu0 0.0
    %2341 = vmatprep.subr.mxu0 0.0
    %2342 = vmatpush1.msra.mxu0 0.0
    %2343 = vmatprep.subr.mxu0 0.0
    %2344 = vmatpush1.msra.mxu0 0.0
    %2345 = vmatprep.subr.mxu0 0.0
    %2346 = vmatpush1.msra.mxu0 0.0
    %2347 = vmatprep.subr.mxu0 0.0
    %2348 = vmatpush1.msra.mxu0 0.0
    %2349 = vmatprep.subr.mxu0 0.0
    %2350 = vmatpush1.msra.mxu0 0.0
    %2351 = vmatprep.subr.mxu0 0.0
    %2352 = vmatpush1.msra.mxu0 0.0
    %2353 = vmatprep.subr.mxu0 0.0
    %2354 = vmatpush1.msra.mxu0 0.0
    %2355 = vmatprep.subr.mxu0 0.0
    %2356 = vmatpush1.msra.mxu0 0.0
    %2357 = vmatprep.subr.mxu0 0.0
    %2358 = vmatpush1.msra.mxu0 0.0
    %2359 = vmatprep.subr.mxu0 0.0
    %2360 = vmatpush1.msra.mxu0 0.0
    %2361 = vmatprep.subr.mxu0 0.0
    %2362 = vmatpush1.msra.mxu0 0.0
    %2363 = vmatprep.subr.mxu0 0.0
    %2364 = vmatpush1.msra.mxu0 0.0
    %2365 = vmatprep.mubr.f32.mxu0 0.0
    %2366 = vmatmul.mubr.f32.gmra.mrb[0].mxu0 %v2300
    %v2367 = vpop.f32.mrb[0].mxu0
    %v2368 = vadd.f32 0.0, %v2367
    %v2369 = vpop.f32.mrb[0].mxu0
    %v2370 = vadd.f32 0.0, %v2369
    %2371 = vdwg.mxu0
    %2372 = vmatprep.subr.mxu0 %v51
    %2373 = vmatpush1.msra.mxu0 %v50
    %2374 = vmatprep.subr.mxu0 %v55
    %2375 = vmatpush1.msra.mxu0 %v54
    %2376 = vmatprep.subr.mxu0 %v59
    %2377 = vmatpush1.msra.mxu0 %v58
    %2378 = vmatprep.subr.mxu0 %v63
    %2379 = vmatpush1.msra.mxu0 %v62
    %2380 = vmatprep.subr.mxu0 %v67
    %2381 = vmatpush1.msra.mxu0 %v66
    %2382 = vmatprep.subr.mxu0 %v71
    %2383 = vmatpush1.msra.mxu0 %v70
    %2384 = vmatprep.subr.mxu0 %v75
    %2385 = vmatpush1.msra.mxu0 %v74
    %2386 = vmatprep.subr.mxu0 %v79
    %2387 = vmatpush1.msra.mxu0 %v78
    %2388 = vmatprep.subr.mxu0 %v83
    %2389 = vmatpush1.msra.mxu0 %v82
    %2390 = vmatprep.subr.mxu0 %v87
    %2391 = vmatpush1.msra.mxu0 %v86
    %2392 = vmatprep.subr.mxu0 %v91
    %2393 = vmatpush1.msra.mxu0 %v90
    %2394 = vmatprep.subr.mxu0 %v95
    %2395 = vmatpush1.msra.mxu0 %v94
    %2396 = vmatprep.subr.mxu0 %v99
    %2397 = vmatpush1.msra.mxu0 %v98
    %2398 = vmatprep.subr.mxu0 %v103
    %2399 = vmatpush1.msra.mxu0 %v102
    %2400 = vmatprep.subr.mxu0 %v107
    %2401 = vmatpush1.msra.mxu0 %v106
    %2402 = vmatprep.subr.mxu0 %v111
    %2403 = vmatpush1.msra.mxu0 %v110
    %2404 = vmatprep.subr.mxu0 0.0
    %2405 = vmatpush1.msra.mxu0 0.0
    %2406 = vmatprep.subr.mxu0 0.0
    %2407 = vmatpush1.msra.mxu0 0.0
    %2408 = vmatprep.subr.mxu0 0.0
    %2409 = vmatpush1.msra.mxu0 0.0
    %2410 = vmatprep.subr.mxu0 0.0
    %2411 = vmatpush1.msra.mxu0 0.0
    %2412 = vmatprep.subr.mxu0 0.0
    %2413 = vmatpush1.msra.mxu0 0.0
    %2414 = vmatprep.subr.mxu0 0.0
    %2415 = vmatpush1.msra.mxu0 0.0
    %2416 = vmatprep.subr.mxu0 0.0
    %2417 = vmatpush1.msra.mxu0 0.0
    %2418 = vmatprep.subr.mxu0 0.0
    %2419 = vmatpush1.msra.mxu0 0.0
    %2420 = vmatprep.subr.mxu0 0.0
    %2421 = vmatpush1.msra.mxu0 0.0
    %2422 = vmatprep.subr.mxu0 0.0
    %2423 = vmatpush1.msra.mxu0 0.0
    %2424 = vmatprep.subr.mxu0 0.0
    %2425 = vmatpush1.msra.mxu0 0.0
    %2426 = vmatprep.subr.mxu0 0.0
    %2427 = vmatpush1.msra.mxu0 0.0
    %2428 = vmatprep.subr.mxu0 0.0
    %2429 = vmatpush1.msra.mxu0 0.0
    %2430 = vmatprep.subr.mxu0 0.0
    %2431 = vmatpush1.msra.mxu0 0.0
    %2432 = vmatprep.subr.mxu0 0.0
    %2433 = vmatpush1.msra.mxu0 0.0
    %2434 = vmatprep.subr.mxu0 0.0
    %2435 = vmatpush1.msra.mxu0 0.0
    %2436 = vmatprep.mubr.f32.mxu0 0.0
    %2437 = vmatmul.mubr.f32.gmra.mrb[0].mxu0 %v2300
    %v2438 = vpop.f32.mrb[0].mxu0
    %v2439 = vadd.f32 0.0, %v2438
    %v2440 = vpop.f32.mrb[0].mxu0
    %v2441 = vadd.f32 0.0, %v2440
    %2442 = vdwg.mxu0
    %s2443 = scalar_lea.vmem %s0, 32
    %v2444 = vld [vmem:[%s2443] sm:$0xff]
    %2445 = vmatprep.subr.mxu0 %v256
    %2446 = vmatpush1.msra.mxu0 %v255
    %2447 = vmatprep.subr.mxu0 %v260
    %2448 = vmatpush1.msra.mxu0 %v259
    %2449 = vmatprep.subr.mxu0 %v264
    %2450 = vmatpush1.msra.mxu0 %v263
    %2451 = vmatprep.subr.mxu0 %v268
    %2452 = vmatpush1.msra.mxu0 %v267
    %2453 = vmatprep.subr.mxu0 %v272
    %2454 = vmatpush1.msra.mxu0 %v271
    %2455 = vmatprep.subr.mxu0 %v276
    %2456 = vmatpush1.msra.mxu0 %v275
    %2457 = vmatprep.subr.mxu0 %v280
    %2458 = vmatpush1.msra.mxu0 %v279
    %2459 = vmatprep.subr.mxu0 %v284
    %2460 = vmatpush1.msra.mxu0 %v283
    %2461 = vmatprep.subr.mxu0 %v288
    %2462 = vmatpush1.msra.mxu0 %v287
    %2463 = vmatprep.subr.mxu0 %v292
    %2464 = vmatpush1.msra.mxu0 %v291
    %2465 = vmatprep.subr.mxu0 %v296
    %2466 = vmatpush1.msra.mxu0 %v295
    %2467 = vmatprep.subr.mxu0 %v300
    %2468 = vmatpush1.msra.mxu0 %v299
    %2469 = vmatprep.subr.mxu0 %v304
    %2470 = vmatpush1.msra.mxu0 %v303
    %2471 = vmatprep.subr.mxu0 %v308
    %2472 = vmatpush1.msra.mxu0 %v307
    %2473 = vmatprep.subr.mxu0 %v312
    %2474 = vmatpush1.msra.mxu0 %v311
    %2475 = vmatprep.subr.mxu0 %v316
    %2476 = vmatpush1.msra.mxu0 %v315
    %2477 = vmatprep.subr.mxu0 0.0
    %2478 = vmatpush1.msra.mxu0 0.0
    %2479 = vmatprep.subr.mxu0 0.0
    %2480 = vmatpush1.msra.mxu0 0.0
    %2481 = vmatprep.subr.mxu0 0.0
    %2482 = vmatpush1.msra.mxu0 0.0
    %2483 = vmatprep.subr.mxu0 0.0
    %2484 = vmatpush1.msra.mxu0 0.0
    %2485 = vmatprep.subr.mxu0 0.0
    %2486 = vmatpush1.msra.mxu0 0.0
    %2487 = vmatprep.subr.mxu0 0.0
    %2488 = vmatpush1.msra.mxu0 0.0
    %2489 = vmatprep.subr.mxu0 0.0
    %2490 = vmatpush1.msra.mxu0 0.0
    %2491 = vmatprep.subr.mxu0 0.0
    %2492 = vmatpush1.msra.mxu0 0.0
    %2493 = vmatprep.subr.mxu0 0.0
    %2494 = vmatpush1.msra.mxu0 0.0
    %2495 = vmatprep.subr.mxu0 0.0
    %2496 = vmatpush1.msra.mxu0 0.0
    %2497 = vmatprep.subr.mxu0 0.0
    %2498 = vmatpush1.msra.mxu0 0.0
    %2499 = vmatprep.subr.mxu0 0.0
    %2500 = vmatpush1.msra.mxu0 0.0
    %2501 = vmatprep.subr.mxu0 0.0
    %2502 = vmatpush1.msra.mxu0 0.0
    %2503 = vmatprep.subr.mxu0 0.0
    %2504 = vmatpush1.msra.mxu0 0.0
    %2505 = vmatprep.subr.mxu0 0.0
    %2506 = vmatpush1.msra.mxu0 0.0
    %2507 = vmatprep.subr.mxu0 0.0
    %2508 = vmatpush1.msra.mxu0 0.0
    %2509 = vmatprep.mubr.f32.mxu0 0.0
    %2510 = vmatmul.mubr.f32.gmra.mrb[0].mxu0 %v2130
    %v2511 = vpop.f32.mrb[0].mxu0
    %v2512 = vadd.f32 0.0, %v2511
    %v2513 = vpop.f32.mrb[0].mxu0
    %v2514 = vadd.f32 0.0, %v2513
    %2515 = vdwg.mxu0
    %2516 = vmatprep.subr.mxu0 %v258
    %2517 = vmatpush1.msra.mxu0 %v257
    %2518 = vmatprep.subr.mxu0 %v262
    %2519 = vmatpush1.msra.mxu0 %v261
    %2520 = vmatprep.subr.mxu0 %v266
    %2521 = vmatpush1.msra.mxu0 %v265
    %2522 = vmatprep.subr.mxu0 %v270
    %2523 = vmatpush1.msra.mxu0 %v269
    %2524 = vmatprep.subr.mxu0 %v274
    %2525 = vmatpush1.msra.mxu0 %v273
    %2526 = vmatprep.subr.mxu0 %v278
    %2527 = vmatpush1.msra.mxu0 %v277
    %2528 = vmatprep.subr.mxu0 %v282
    %2529 = vmatpush1.msra.mxu0 %v281
    %2530 = vmatprep.subr.mxu0 %v286
    %2531 = vmatpush1.msra.mxu0 %v285
    %2532 = vmatprep.subr.mxu0 %v290
    %2533 = vmatpush1.msra.mxu0 %v289
    %2534 = vmatprep.subr.mxu0 %v294
    %2535 = vmatpush1.msra.mxu0 %v293
    %2536 = vmatprep.subr.mxu0 %v298
    %2537 = vmatpush1.msra.mxu0 %v297
    %2538 = vmatprep.subr.mxu0 %v302
    %2539 = vmatpush1.msra.mxu0 %v301
    %2540 = vmatprep.subr.mxu0 %v306
    %2541 = vmatpush1.msra.mxu0 %v305
    %2542 = vmatprep.subr.mxu0 %v310
    %2543 = vmatpush1.msra.mxu0 %v309
    %2544 = vmatprep.subr.mxu0 %v314
    %2545 = vmatpush1.msra.mxu0 %v313
    %2546 = vmatprep.subr.mxu0 %v318
    %2547 = vmatpush1.msra.mxu0 %v317
    %2548 = vmatprep.subr.mxu0 0.0
    %2549 = vmatpush1.msra.mxu0 0.0
    %2550 = vmatprep.subr.mxu0 0.0
    %2551 = vmatpush1.msra.mxu0 0.0
    %2552 = vmatprep.subr.mxu0 0.0
    %2553 = vmatpush1.msra.mxu0 0.0
    %2554 = vmatprep.subr.mxu0 0.0
    %2555 = vmatpush1.msra.mxu0 0.0
    %2556 = vmatprep.subr.mxu0 0.0
    %2557 = vmatpush1.msra.mxu0 0.0
    %2558 = vmatprep.subr.mxu0 0.0
    %2559 = vmatpush1.msra.mxu0 0.0
    %2560 = vmatprep.subr.mxu0 0.0
    %2561 = vmatpush1.msra.mxu0 0.0
    %2562 = vmatprep.subr.mxu0 0.0
    %2563 = vmatpush1.msra.mxu0 0.0
    %2564 = vmatprep.subr.mxu0 0.0
    %2565 = vmatpush1.msra.mxu0 0.0
    %2566 = vmatprep.subr.mxu0 0.0
    %2567 = vmatpush1.msra.mxu0 0.0
    %2568 = vmatprep.subr.mxu0 0.0
    %2569 = vmatpush1.msra.mxu0 0.0
    %2570 = vmatprep.subr.mxu0 0.0
    %2571 = vmatpush1.msra.mxu0 0.0
    %2572 = vmatprep.subr.mxu0 0.0
    %2573 = vmatpush1.msra.mxu0 0.0
    %2574 = vmatprep.subr.mxu0 0.0
    %2575 = vmatpush1.msra.mxu0 0.0
    %2576 = vmatprep.subr.mxu0 0.0
    %2577 = vmatpush1.msra.mxu0 0.0
    %2578 = vmatprep.subr.mxu0 0.0
    %2579 = vmatpush1.msra.mxu0 0.0
    %2580 = vmatprep.mubr.f32.mxu0 0.0
    %2581 = vmatmul.mubr.f32.gmra.mrb[0].mxu0 %v2130
    %v2582 = vpop.f32.mrb[0].mxu0
    %v2583 = vadd.f32 0.0, %v2582
    %v2584 = vpop.f32.mrb[0].mxu0
    %v2585 = vadd.f32 0.0, %v2584
    %2586 = vdwg.mxu0
    %v2591 = vcombine.low %v2512, %v2514
    %v2592 = vcombine.low %v2583, %v2585
    %v2594 = vunpack.c.l.s4 1983009808
    %v2595 = vunpack.c.0.s8 %v2594
    %v2596 = vlaneseq
    %v2597 = vshrl.u32 %v2596, 7
    %v2598 = vsub.s32 %v2595, %v2597
    %v2599 = vrot.slane %v2591, %v2598
    %v2601 = vunpack.c.l.s4 1983009808
    %v2602 = vunpack.c.0.s8 %v2601
    %v2603 = vlaneseq
    %v2604 = vshrl.u32 %v2603, 7
    %v2605 = vsub.s32 %v2602, %v2604
    %v2606 = vrot.slane %v2592, %v2605
    %v2607 = vcombine.low %v2599, %v2606
    %v2609 = vadd.f32 %v2444, %v2607
    %v2610 = vxor.u32 %v2609, 2147483648
    %v2611 = vmul.f32 %v2610, 1.442695
    %v2612 = vpow.pop %v2611
    %v2613 = vadd.f32 %v2612, 1.0
    %v2614 = vrcp.pop %v2613
    %v2615 = vmul.f32 1.0, %v2614
    %v2617 = vrot.slane %v2609, 2
    %v2619 = vxor.u32 %v2617, 2147483648
    %v2620 = vmul.f32 %v2619, 1.442695
    %v2621 = vpow.pop %v2620
    %v2622 = vadd.f32 %v2621, 1.0
    %v2623 = vrcp.pop %v2622
    %v2624 = vmul.f32 1.0, %v2623
    %v2625 = vrot.slane %v2609, 4
    %v2627 = vtanh.pop %v2625
    %v2628 = vrot.slane %v2609, 6
    %v2630 = vxor.u32 %v2628, 2147483648
    %v2631 = vmul.f32 %v2630, 1.442695
    %v2632 = vpow.pop %v2631
    %v2633 = vadd.f32 %v2632, 1.0
    %v2634 = vrcp.pop %v2633
    %v2635 = vmul.f32 1.0, %v2634
    %v2636 = vmul.f32 %v2624, %v2128
    %v2637 = vmul.f32 %v2615, %v2627
    %v2638 = vadd.f32 %v2636, %v2637
    %v2639 = vtanh.pop %v2638
    %v2640 = vmul.f32 %v2635, %v2639
    %2641 = vmatprep.subr.mxu0 %v516
    %2642 = vmatpush1.msra.mxu0 %v515
    %2643 = vmatprep.subr.mxu0 %v520
    %2644 = vmatpush1.msra.mxu0 %v519
    %2645 = vmatprep.subr.mxu0 %v524
    %2646 = vmatpush1.msra.mxu0 %v523
    %2647 = vmatprep.subr.mxu0 %v528
    %2648 = vmatpush1.msra.mxu0 %v527
    %2649 = vmatprep.subr.mxu0 %v532
    %2650 = vmatpush1.msra.mxu0 %v531
    %2651 = vmatprep.subr.mxu0 %v536
    %2652 = vmatpush1.msra.mxu0 %v535
    %2653 = vmatprep.subr.mxu0 %v540
    %2654 = vmatpush1.msra.mxu0 %v539
    %2655 = vmatprep.subr.mxu0 %v544
    %2656 = vmatpush1.msra.mxu0 %v543
    %2657 = vmatprep.subr.mxu0 %v548
    %2658 = vmatpush1.msra.mxu0 %v547
    %2659 = vmatprep.subr.mxu0 %v552
    %2660 = vmatpush1.msra.mxu0 %v551
    %2661 = vmatprep.subr.mxu0 %v556
    %2662 = vmatpush1.msra.mxu0 %v555
    %2663 = vmatprep.subr.mxu0 %v560
    %2664 = vmatpush1.msra.mxu0 %v559
    %2665 = vmatprep.subr.mxu0 %v564
    %2666 = vmatpush1.msra.mxu0 %v563
    %2667 = vmatprep.subr.mxu0 %v568
    %2668 = vmatpush1.msra.mxu0 %v567
    %2669 = vmatprep.subr.mxu0 %v572
    %2670 = vmatpush1.msra.mxu0 %v571
    %2671 = vmatprep.subr.mxu0 %v576
    %2672 = vmatpush1.msra.mxu0 %v575
    %2673 = vmatprep.subr.mxu0 0.0
    %2674 = vmatpush1.msra.mxu0 0.0
    %2675 = vmatprep.subr.mxu0 0.0
    %2676 = vmatpush1.msra.mxu0 0.0
    %2677 = vmatprep.subr.mxu0 0.0
    %2678 = vmatpush1.msra.mxu0 0.0
    %2679 = vmatprep.subr.mxu0 0.0
    %2680 = vmatpush1.msra.mxu0 0.0
    %2681 = vmatprep.subr.mxu0 0.0
    %2682 = vmatpush1.msra.mxu0 0.0
    %2683 = vmatprep.subr.mxu0 0.0
    %2684 = vmatpush1.msra.mxu0 0.0
    %2685 = vmatprep.subr.mxu0 0.0
    %2686 = vmatpush1.msra.mxu0 0.0
    %2687 = vmatprep.subr.mxu0 0.0
    %2688 = vmatpush1.msra.mxu0 0.0
    %2689 = vmatprep.subr.mxu0 0.0
    %2690 = vmatpush1.msra.mxu0 0.0
    %2691 = vmatprep.subr.mxu0 0.0
    %2692 = vmatpush1.msra.mxu0 0.0
    %2693 = vmatprep.subr.mxu0 0.0
    %2694 = vmatpush1.msra.mxu0 0.0
    %2695 = vmatprep.subr.mxu0 0.0
    %2696 = vmatpush1.msra.mxu0 0.0
    %2697 = vmatprep.subr.mxu0 0.0
    %2698 = vmatpush1.msra.mxu0 0.0
    %2699 = vmatprep.subr.mxu0 0.0
    %2700 = vmatpush1.msra.mxu0 0.0
    %2701 = vmatprep.subr.mxu0 0.0
    %2702 = vmatpush1.msra.mxu0 0.0
    %2703 = vmatprep.subr.mxu0 0.0
    %2704 = vmatpush1.msra.mxu0 0.0
    %2705 = vmatprep.mubr.f32.mxu0 0.0
    %2706 = vmatmul.mubr.f32.gmra.mrb[0].mxu0 %v2640
    %v2707 = vpop.f32.mrb[0].mxu0
    %v2708 = vadd.f32 %v2368, %v2707
    %v2709 = vpop.f32.mrb[0].mxu0
    %v2710 = vadd.f32 %v2370, %v2709
    %2711 = vdwg.mxu0
    %2712 = vmatprep.subr.mxu0 %v518
    %2713 = vmatpush1.msra.mxu0 %v517
    %2714 = vmatprep.subr.mxu0 %v522
    %2715 = vmatpush1.msra.mxu0 %v521
    %2716 = vmatprep.subr.mxu0 %v526
    %2717 = vmatpush1.msra.mxu0 %v525
    %2718 = vmatprep.subr.mxu0 %v530
    %2719 = vmatpush1.msra.mxu0 %v529
    %2720 = vmatprep.subr.mxu0 %v534
    %2721 = vmatpush1.msra.mxu0 %v533
    %2722 = vmatprep.subr.mxu0 %v538
    %2723 = vmatpush1.msra.mxu0 %v537
    %2724 = vmatprep.subr.mxu0 %v542
    %2725 = vmatpush1.msra.mxu0 %v541
    %2726 = vmatprep.subr.mxu0 %v546
    %2727 = vmatpush1.msra.mxu0 %v545
    %2728 = vmatprep.subr.mxu0 %v550
    %2729 = vmatpush1.msra.mxu0 %v549
    %2730 = vmatprep.subr.mxu0 %v554
    %2731 = vmatpush1.msra.mxu0 %v553
    %2732 = vmatprep.subr.mxu0 %v558
    %2733 = vmatpush1.msra.mxu0 %v557
    %2734 = vmatprep.subr.mxu0 %v562
    %2735 = vmatpush1.msra.mxu0 %v561
    %2736 = vmatprep.subr.mxu0 %v566
    %2737 = vmatpush1.msra.mxu0 %v565
    %2738 = vmatprep.subr.mxu0 %v570
    %2739 = vmatpush1.msra.mxu0 %v569
    %2740 = vmatprep.subr.mxu0 %v574
    %2741 = vmatpush1.msra.mxu0 %v573
    %2742 = vmatprep.subr.mxu0 %v578
    %2743 = vmatpush1.msra.mxu0 %v577
    %2744 = vmatprep.subr.mxu0 0.0
    %2745 = vmatpush1.msra.mxu0 0.0
    %2746 = vmatprep.subr.mxu0 0.0
    %2747 = vmatpush1.msra.mxu0 0.0
    %2748 = vmatprep.subr.mxu0 0.0
    %2749 = vmatpush1.msra.mxu0 0.0
    %2750 = vmatprep.subr.mxu0 0.0
    %2751 = vmatpush1.msra.mxu0 0.0
    %2752 = vmatprep.subr.mxu0 0.0
    %2753 = vmatpush1.msra.mxu0 0.0
    %2754 = vmatprep.subr.mxu0 0.0
    %2755 = vmatpush1.msra.mxu0 0.0
    %2756 = vmatprep.subr.mxu0 0.0
    %2757 = vmatpush1.msra.mxu0 0.0
    %2758 = vmatprep.subr.mxu0 0.0
    %2759 = vmatpush1.msra.mxu0 0.0
    %2760 = vmatprep.subr.mxu0 0.0
    %2761 = vmatpush1.msra.mxu0 0.0
    %2762 = vmatprep.subr.mxu0 0.0
    %2763 = vmatpush1.msra.mxu0 0.0
    %2764 = vmatprep.subr.mxu0 0.0
    %2765 = vmatpush1.msra.mxu0 0.0
    %2766 = vmatprep.subr.mxu0 0.0
    %2767 = vmatpush1.msra.mxu0 0.0
    %2768 = vmatprep.subr.mxu0 0.0
    %2769 = vmatpush1.msra.mxu0 0.0
    %2770 = vmatprep.subr.mxu0 0.0
    %2771 = vmatpush1.msra.mxu0 0.0
    %2772 = vmatprep.subr.mxu0 0.0
    %2773 = vmatpush1.msra.mxu0 0.0
    %2774 = vmatprep.subr.mxu0 0.0
    %2775 = vmatpush1.msra.mxu0 0.0
    %2776 = vmatprep.mubr.f32.mxu0 0.0
    %2777 = vmatmul.mubr.f32.gmra.mrb[0].mxu0 %v2640
    %v2778 = vpop.f32.mrb[0].mxu0
    %v2779 = vadd.f32 %v2439, %v2778
    %v2780 = vpop.f32.mrb[0].mxu0
    %v2781 = vadd.f32 %v2441, %v2780
    %2782 = vdwg.mxu0
    %v2783 = vadd.f32 %v2708, %v726
    %v2784 = vadd.f32 %v2710, %v730
    %v2785 = vadd.f32 %v2779, %v734
    %v2786 = vadd.f32 %v2781, %v738
    %v2787 = vxor.u32 %v2783, 2147483648
    %v2788 = vmul.f32 %v2787, 1.442695
    %v2789 = vpow.pop %v2788
    %v2790 = vadd.f32 %v2789, 1.0
    %v2791 = vrcp.pop %v2790
    %v2792 = vmul.f32 1.0, %v2791
    %v2793 = vxor.u32 %v2784, 2147483648
    %v2794 = vmul.f32 %v2793, 1.442695
    %v2795 = vpow.pop %v2794
    %v2796 = vadd.f32 %v2795, 1.0
    %v2797 = vrcp.pop %v2796
    %v2798 = vmul.f32 1.0, %v2797
    %v2799 = vtanh.pop %v2785
    %v2800 = vxor.u32 %v2786, 2147483648
    %v2801 = vmul.f32 %v2800, 1.442695
    %v2802 = vpow.pop %v2801
    %v2803 = vadd.f32 %v2802, 1.0
    %v2804 = vrcp.pop %v2803
    %v2805 = vmul.f32 1.0, %v2804
    %v2806 = vmul.f32 %v2798, %v2298
    %v2807 = vmul.f32 %v2792, %v2799
    %v2808 = vadd.f32 %v2806, %v2807
    %v2809 = vtanh.pop %v2808
    %v2810 = vmul.f32 %v2805, %v2809
    %2811 = vmatprep.subr.mxu0 %v49
    %2812 = vmatpush1.msra.mxu0 %v48
    %2813 = vmatprep.subr.mxu0 %v53
    %2814 = vmatpush1.msra.mxu0 %v52
    %2815 = vmatprep.subr.mxu0 %v57
    %2816 = vmatpush1.msra.mxu0 %v56
    %2817 = vmatprep.subr.mxu0 %v61
    %2818 = vmatpush1.msra.mxu0 %v60
    %2819 = vmatprep.subr.mxu0 %v65
    %2820 = vmatpush1.msra.mxu0 %v64
    %2821 = vmatprep.subr.mxu0 %v69
    %2822 = vmatpush1.msra.mxu0 %v68
    %2823 = vmatprep.subr.mxu0 %v73
    %2824 = vmatpush1.msra.mxu0 %v72
    %2825 = vmatprep.subr.mxu0 %v77
    %2826 = vmatpush1.msra.mxu0 %v76
    %2827 = vmatprep.subr.mxu0 %v81
    %2828 = vmatpush1.msra.mxu0 %v80
    %2829 = vmatprep.subr.mxu0 %v85
    %2830 = vmatpush1.msra.mxu0 %v84
    %2831 = vmatprep.subr.mxu0 %v89
    %2832 = vmatpush1.msra.mxu0 %v88
    %2833 = vmatprep.subr.mxu0 %v93
    %2834 = vmatpush1.msra.mxu0 %v92
    %2835 = vmatprep.subr.mxu0 %v97
    %2836 = vmatpush1.msra.mxu0 %v96
    %2837 = vmatprep.subr.mxu0 %v101
    %2838 = vmatpush1.msra.mxu0 %v100
    %2839 = vmatprep.subr.mxu0 %v105
    %2840 = vmatpush1.msra.mxu0 %v104
    %2841 = vmatprep.subr.mxu0 %v109
    %2842 = vmatpush1.msra.mxu0 %v108
    %2843 = vmatprep.subr.mxu0 0.0
    %2844 = vmatpush1.msra.mxu0 0.0
    %2845 = vmatprep.subr.mxu0 0.0
    %2846 = vmatpush1.msra.mxu0 0.0
    %2847 = vmatprep.subr.mxu0 0.0
    %2848 = vmatpush1.msra.mxu0 0.0
    %2849 = vmatprep.subr.mxu0 0.0
    %2850 = vmatpush1.msra.mxu0 0.0
    %2851 = vmatprep.subr.mxu0 0.0
    %2852 = vmatpush1.msra.mxu0 0.0
    %2853 = vmatprep.subr.mxu0 0.0
    %2854 = vmatpush1.msra.mxu0 0.0
    %2855 = vmatprep.subr.mxu0 0.0
    %2856 = vmatpush1.msra.mxu0 0.0
    %2857 = vmatprep.subr.mxu0 0.0
    %2858 = vmatpush1.msra.mxu0 0.0
    %2859 = vmatprep.subr.mxu0 0.0
    %2860 = vmatpush1.msra.mxu0 0.0
    %2861 = vmatprep.subr.mxu0 0.0
    %2862 = vmatpush1.msra.mxu0 0.0
    %2863 = vmatprep.subr.mxu0 0.0
    %2864 = vmatpush1.msra.mxu0 0.0
    %2865 = vmatprep.subr.mxu0 0.0
    %2866 = vmatpush1.msra.mxu0 0.0
    %2867 = vmatprep.subr.mxu0 0.0
    %2868 = vmatpush1.msra.mxu0 0.0
    %2869 = vmatprep.subr.mxu0 0.0
    %2870 = vmatpush1.msra.mxu0 0.0
    %2871 = vmatprep.subr.mxu0 0.0
    %2872 = vmatpush1.msra.mxu0 0.0
    %2873 = vmatprep.subr.mxu0 0.0
    %2874 = vmatpush1.msra.mxu0 0.0
    %2875 = vmatprep.mubr.f32.mxu0 0.0
    %2876 = vmatmul.mubr.f32.gmra.mrb[0].mxu0 %v2810
    %v2877 = vpop.f32.mrb[0].mxu0
    %v2878 = vadd.f32 0.0, %v2877
    %v2879 = vpop.f32.mrb[0].mxu0
    %v2880 = vadd.f32 0.0, %v2879
    %2881 = vdwg.mxu0
    %2882 = vmatprep.subr.mxu0 %v51
    %2883 = vmatpush1.msra.mxu0 %v50
    %2884 = vmatprep.subr.mxu0 %v55
    %2885 = vmatpush1.msra.mxu0 %v54
    %2886 = vmatprep.subr.mxu0 %v59
    %2887 = vmatpush1.msra.mxu0 %v58
    %2888 = vmatprep.subr.mxu0 %v63
    %2889 = vmatpush1.msra.mxu0 %v62
    %2890 = vmatprep.subr.mxu0 %v67
    %2891 = vmatpush1.msra.mxu0 %v66
    %2892 = vmatprep.subr.mxu0 %v71
    %2893 = vmatpush1.msra.mxu0 %v70
    %2894 = vmatprep.subr.mxu0 %v75
    %2895 = vmatpush1.msra.mxu0 %v74
    %2896 = vmatprep.subr.mxu0 %v79
    %2897 = vmatpush1.msra.mxu0 %v78
    %2898 = vmatprep.subr.mxu0 %v83
    %2899 = vmatpush1.msra.mxu0 %v82
    %2900 = vmatprep.subr.mxu0 %v87
    %2901 = vmatpush1.msra.mxu0 %v86
    %2902 = vmatprep.subr.mxu0 %v91
    %2903 = vmatpush1.msra.mxu0 %v90
    %2904 = vmatprep.subr.mxu0 %v95
    %2905 = vmatpush1.msra.mxu0 %v94
    %2906 = vmatprep.subr.mxu0 %v99
    %2907 = vmatpush1.msra.mxu0 %v98
    %2908 = vmatprep.subr.mxu0 %v103
    %2909 = vmatpush1.msra.mxu0 %v102
    %2910 = vmatprep.subr.mxu0 %v107
    %2911 = vmatpush1.msra.mxu0 %v106
    %2912 = vmatprep.subr.mxu0 %v111
    %2913 = vmatpush1.msra.mxu0 %v110
    %2914 = vmatprep.subr.mxu0 0.0
    %2915 = vmatpush1.msra.mxu0 0.0
    %2916 = vmatprep.subr.mxu0 0.0
    %2917 = vmatpush1.msra.mxu0 0.0
    %2918 = vmatprep.subr.mxu0 0.0
    %2919 = vmatpush1.msra.mxu0 0.0
    %2920 = vmatprep.subr.mxu0 0.0
    %2921 = vmatpush1.msra.mxu0 0.0
    %2922 = vmatprep.subr.mxu0 0.0
    %2923 = vmatpush1.msra.mxu0 0.0
    %2924 = vmatprep.subr.mxu0 0.0
    %2925 = vmatpush1.msra.mxu0 0.0
    %2926 = vmatprep.subr.mxu0 0.0
    %2927 = vmatpush1.msra.mxu0 0.0
    %2928 = vmatprep.subr.mxu0 0.0
    %2929 = vmatpush1.msra.mxu0 0.0
    %2930 = vmatprep.subr.mxu0 0.0
    %2931 = vmatpush1.msra.mxu0 0.0
    %2932 = vmatprep.subr.mxu0 0.0
    %2933 = vmatpush1.msra.mxu0 0.0
    %2934 = vmatprep.subr.mxu0 0.0
    %2935 = vmatpush1.msra.mxu0 0.0
    %2936 = vmatprep.subr.mxu0 0.0
    %2937 = vmatpush1.msra.mxu0 0.0
    %2938 = vmatprep.subr.mxu0 0.0
    %2939 = vmatpush1.msra.mxu0 0.0
    %2940 = vmatprep.subr.mxu0 0.0
    %2941 = vmatpush1.msra.mxu0 0.0
    %2942 = vmatprep.subr.mxu0 0.0
    %2943 = vmatpush1.msra.mxu0 0.0
    %2944 = vmatprep.subr.mxu0 0.0
    %2945 = vmatpush1.msra.mxu0 0.0
    %2946 = vmatprep.mubr.f32.mxu0 0.0
    %2947 = vmatmul.mubr.f32.gmra.mrb[0].mxu0 %v2810
    %v2948 = vpop.f32.mrb[0].mxu0
    %v2949 = vadd.f32 0.0, %v2948
    %v2950 = vpop.f32.mrb[0].mxu0
    %v2951 = vadd.f32 0.0, %v2950
    %2952 = vdwg.mxu0
    %s2953 = scalar_lea.vmem %s0, 40
    %v2954 = vld [vmem:[%s2953] sm:$0xff]
    %2955 = vmatprep.subr.mxu0 %v256
    %2956 = vmatpush1.msra.mxu0 %v255
    %2957 = vmatprep.subr.mxu0 %v260
    %2958 = vmatpush1.msra.mxu0 %v259
    %2959 = vmatprep.subr.mxu0 %v264
    %2960 = vmatpush1.msra.mxu0 %v263
    %2961 = vmatprep.subr.mxu0 %v268
    %2962 = vmatpush1.msra.mxu0 %v267
    %2963 = vmatprep.subr.mxu0 %v272
    %2964 = vmatpush1.msra.mxu0 %v271
    %2965 = vmatprep.subr.mxu0 %v276
    %2966 = vmatpush1.msra.mxu0 %v275
    %2967 = vmatprep.subr.mxu0 %v280
    %2968 = vmatpush1.msra.mxu0 %v279
    %2969 = vmatprep.subr.mxu0 %v284
    %2970 = vmatpush1.msra.mxu0 %v283
    %2971 = vmatprep.subr.mxu0 %v288
    %2972 = vmatpush1.msra.mxu0 %v287
    %2973 = vmatprep.subr.mxu0 %v292
    %2974 = vmatpush1.msra.mxu0 %v291
    %2975 = vmatprep.subr.mxu0 %v296
    %2976 = vmatpush1.msra.mxu0 %v295
    %2977 = vmatprep.subr.mxu0 %v300
    %2978 = vmatpush1.msra.mxu0 %v299
    %2979 = vmatprep.subr.mxu0 %v304
    %2980 = vmatpush1.msra.mxu0 %v303
    %2981 = vmatprep.subr.mxu0 %v308
    %2982 = vmatpush1.msra.mxu0 %v307
    %2983 = vmatprep.subr.mxu0 %v312
    %2984 = vmatpush1.msra.mxu0 %v311
    %2985 = vmatprep.subr.mxu0 %v316
    %2986 = vmatpush1.msra.mxu0 %v315
    %2987 = vmatprep.subr.mxu0 0.0
    %2988 = vmatpush1.msra.mxu0 0.0
    %2989 = vmatprep.subr.mxu0 0.0
    %2990 = vmatpush1.msra.mxu0 0.0
    %2991 = vmatprep.subr.mxu0 0.0
    %2992 = vmatpush1.msra.mxu0 0.0
    %2993 = vmatprep.subr.mxu0 0.0
    %2994 = vmatpush1.msra.mxu0 0.0
    %2995 = vmatprep.subr.mxu0 0.0
    %2996 = vmatpush1.msra.mxu0 0.0
    %2997 = vmatprep.subr.mxu0 0.0
    %2998 = vmatpush1.msra.mxu0 0.0
    %2999 = vmatprep.subr.mxu0 0.0
    %3000 = vmatpush1.msra.mxu0 0.0
    %3001 = vmatprep.subr.mxu0 0.0
    %3002 = vmatpush1.msra.mxu0 0.0
    %3003 = vmatprep.subr.mxu0 0.0
    %3004 = vmatpush1.msra.mxu0 0.0
    %3005 = vmatprep.subr.mxu0 0.0
    %3006 = vmatpush1.msra.mxu0 0.0
    %3007 = vmatprep.subr.mxu0 0.0
    %3008 = vmatpush1.msra.mxu0 0.0
    %3009 = vmatprep.subr.mxu0 0.0
    %3010 = vmatpush1.msra.mxu0 0.0
    %3011 = vmatprep.subr.mxu0 0.0
    %3012 = vmatpush1.msra.mxu0 0.0
    %3013 = vmatprep.subr.mxu0 0.0
    %3014 = vmatpush1.msra.mxu0 0.0
    %3015 = vmatprep.subr.mxu0 0.0
    %3016 = vmatpush1.msra.mxu0 0.0
    %3017 = vmatprep.subr.mxu0 0.0
    %3018 = vmatpush1.msra.mxu0 0.0
    %3019 = vmatprep.mubr.f32.mxu0 0.0
    %3020 = vmatmul.mubr.f32.gmra.mrb[0].mxu0 %v2640
    %v3021 = vpop.f32.mrb[0].mxu0
    %v3022 = vadd.f32 0.0, %v3021
    %v3023 = vpop.f32.mrb[0].mxu0
    %v3024 = vadd.f32 0.0, %v3023
    %3025 = vdwg.mxu0
    %3026 = vmatprep.subr.mxu0 %v258
    %3027 = vmatpush1.msra.mxu0 %v257
    %3028 = vmatprep.subr.mxu0 %v262
    %3029 = vmatpush1.msra.mxu0 %v261
    %3030 = vmatprep.subr.mxu0 %v266
    %3031 = vmatpush1.msra.mxu0 %v265
    %3032 = vmatprep.subr.mxu0 %v270
    %3033 = vmatpush1.msra.mxu0 %v269
    %3034 = vmatprep.subr.mxu0 %v274
    %3035 = vmatpush1.msra.mxu0 %v273
    %3036 = vmatprep.subr.mxu0 %v278
    %3037 = vmatpush1.msra.mxu0 %v277
    %3038 = vmatprep.subr.mxu0 %v282
    %3039 = vmatpush1.msra.mxu0 %v281
    %3040 = vmatprep.subr.mxu0 %v286
    %3041 = vmatpush1.msra.mxu0 %v285
    %3042 = vmatprep.subr.mxu0 %v290
    %3043 = vmatpush1.msra.mxu0 %v289
    %3044 = vmatprep.subr.mxu0 %v294
    %3045 = vmatpush1.msra.mxu0 %v293
    %3046 = vmatprep.subr.mxu0 %v298
    %3047 = vmatpush1.msra.mxu0 %v297
    %3048 = vmatprep.subr.mxu0 %v302
    %3049 = vmatpush1.msra.mxu0 %v301
    %3050 = vmatprep.subr.mxu0 %v306
    %3051 = vmatpush1.msra.mxu0 %v305
    %3052 = vmatprep.subr.mxu0 %v310
    %3053 = vmatpush1.msra.mxu0 %v309
    %3054 = vmatprep.subr.mxu0 %v314
    %3055 = vmatpush1.msra.mxu0 %v313
    %3056 = vmatprep.subr.mxu0 %v318
    %3057 = vmatpush1.msra.mxu0 %v317
    %3058 = vmatprep.subr.mxu0 0.0
    %3059 = vmatpush1.msra.mxu0 0.0
    %3060 = vmatprep.subr.mxu0 0.0
    %3061 = vmatpush1.msra.mxu0 0.0
    %3062 = vmatprep.subr.mxu0 0.0
    %3063 = vmatpush1.msra.mxu0 0.0
    %3064 = vmatprep.subr.mxu0 0.0
    %3065 = vmatpush1.msra.mxu0 0.0
    %3066 = vmatprep.subr.mxu0 0.0
    %3067 = vmatpush1.msra.mxu0 0.0
    %3068 = vmatprep.subr.mxu0 0.0
    %3069 = vmatpush1.msra.mxu0 0.0
    %3070 = vmatprep.subr.mxu0 0.0
    %3071 = vmatpush1.msra.mxu0 0.0
    %3072 = vmatprep.subr.mxu0 0.0
    %3073 = vmatpush1.msra.mxu0 0.0
    %3074 = vmatprep.subr.mxu0 0.0
    %3075 = vmatpush1.msra.mxu0 0.0
    %3076 = vmatprep.subr.mxu0 0.0
    %3077 = vmatpush1.msra.mxu0 0.0
    %3078 = vmatprep.subr.mxu0 0.0
    %3079 = vmatpush1.msra.mxu0 0.0
    %3080 = vmatprep.subr.mxu0 0.0
    %3081 = vmatpush1.msra.mxu0 0.0
    %3082 = vmatprep.subr.mxu0 0.0
    %3083 = vmatpush1.msra.mxu0 0.0
    %3084 = vmatprep.subr.mxu0 0.0
    %3085 = vmatpush1.msra.mxu0 0.0
    %3086 = vmatprep.subr.mxu0 0.0
    %3087 = vmatpush1.msra.mxu0 0.0
    %3088 = vmatprep.subr.mxu0 0.0
    %3089 = vmatpush1.msra.mxu0 0.0
    %3090 = vmatprep.mubr.f32.mxu0 0.0
    %3091 = vmatmul.mubr.f32.gmra.mrb[0].mxu0 %v2640
    %v3092 = vpop.f32.mrb[0].mxu0
    %v3093 = vadd.f32 0.0, %v3092
    %v3094 = vpop.f32.mrb[0].mxu0
    %v3095 = vadd.f32 0.0, %v3094
    %3096 = vdwg.mxu0
    %v3101 = vcombine.low %v3022, %v3024
    %v3102 = vcombine.low %v3093, %v3095
    %v3104 = vunpack.c.l.s4 1983009808
    %v3105 = vunpack.c.0.s8 %v3104
    %v3106 = vlaneseq
    %v3107 = vshrl.u32 %v3106, 7
    %v3108 = vsub.s32 %v3105, %v3107
    %v3109 = vrot.slane %v3101, %v3108
    %v3111 = vunpack.c.l.s4 1983009808
    %v3112 = vunpack.c.0.s8 %v3111
    %v3113 = vlaneseq
    %v3114 = vshrl.u32 %v3113, 7
    %v3115 = vsub.s32 %v3112, %v3114
    %v3116 = vrot.slane %v3102, %v3115
    %v3117 = vcombine.low %v3109, %v3116
    %v3119 = vadd.f32 %v2954, %v3117
    %v3120 = vxor.u32 %v3119, 2147483648
    %v3121 = vmul.f32 %v3120, 1.442695
    %v3122 = vpow.pop %v3121
    %v3123 = vadd.f32 %v3122, 1.0
    %v3124 = vrcp.pop %v3123
    %v3125 = vmul.f32 1.0, %v3124
    %v3127 = vrot.slane %v3119, 2
    %v3129 = vxor.u32 %v3127, 2147483648
    %v3130 = vmul.f32 %v3129, 1.442695
    %v3131 = vpow.pop %v3130
    %v3132 = vadd.f32 %v3131, 1.0
    %v3133 = vrcp.pop %v3132
    %v3134 = vmul.f32 1.0, %v3133
    %v3135 = vrot.slane %v3119, 4
    %v3137 = vtanh.pop %v3135
    %v3138 = vrot.slane %v3119, 6
    %v3140 = vxor.u32 %v3138, 2147483648
    %v3141 = vmul.f32 %v3140, 1.442695
    %v3142 = vpow.pop %v3141
    %v3143 = vadd.f32 %v3142, 1.0
    %v3144 = vrcp.pop %v3143
    %v3145 = vmul.f32 1.0, %v3144
    %v3146 = vmul.f32 %v3134, %v2638
    %v3147 = vmul.f32 %v3125, %v3137
    %v3148 = vadd.f32 %v3146, %v3147
    %v3149 = vtanh.pop %v3148
    %v3150 = vmul.f32 %v3145, %v3149
    %3151 = vmatprep.subr.mxu0 %v516
    %3152 = vmatpush1.msra.mxu0 %v515
    %3153 = vmatprep.subr.mxu0 %v520
    %3154 = vmatpush1.msra.mxu0 %v519
    %3155 = vmatprep.subr.mxu0 %v524
    %3156 = vmatpush1.msra.mxu0 %v523
    %3157 = vmatprep.subr.mxu0 %v528
    %3158 = vmatpush1.msra.mxu0 %v527
    %3159 = vmatprep.subr.mxu0 %v532
    %3160 = vmatpush1.msra.mxu0 %v531
    %3161 = vmatprep.subr.mxu0 %v536
    %3162 = vmatpush1.msra.mxu0 %v535
    %3163 = vmatprep.subr.mxu0 %v540
    %3164 = vmatpush1.msra.mxu0 %v539
    %3165 = vmatprep.subr.mxu0 %v544
    %3166 = vmatpush1.msra.mxu0 %v543
    %3167 = vmatprep.subr.mxu0 %v548
    %3168 = vmatpush1.msra.mxu0 %v547
    %3169 = vmatprep.subr.mxu0 %v552
    %3170 = vmatpush1.msra.mxu0 %v551
    %3171 = vmatprep.subr.mxu0 %v556
    %3172 = vmatpush1.msra.mxu0 %v555
    %3173 = vmatprep.subr.mxu0 %v560
    %3174 = vmatpush1.msra.mxu0 %v559
    %3175 = vmatprep.subr.mxu0 %v564
    %3176 = vmatpush1.msra.mxu0 %v563
    %3177 = vmatprep.subr.mxu0 %v568
    %3178 = vmatpush1.msra.mxu0 %v567
    %3179 = vmatprep.subr.mxu0 %v572
    %3180 = vmatpush1.msra.mxu0 %v571
    %3181 = vmatprep.subr.mxu0 %v576
    %3182 = vmatpush1.msra.mxu0 %v575
    %3183 = vmatprep.subr.mxu0 0.0
    %3184 = vmatpush1.msra.mxu0 0.0
    %3185 = vmatprep.subr.mxu0 0.0
    %3186 = vmatpush1.msra.mxu0 0.0
    %3187 = vmatprep.subr.mxu0 0.0
    %3188 = vmatpush1.msra.mxu0 0.0
    %3189 = vmatprep.subr.mxu0 0.0
    %3190 = vmatpush1.msra.mxu0 0.0
    %3191 = vmatprep.subr.mxu0 0.0
    %3192 = vmatpush1.msra.mxu0 0.0
    %3193 = vmatprep.subr.mxu0 0.0
    %3194 = vmatpush1.msra.mxu0 0.0
    %3195 = vmatprep.subr.mxu0 0.0
    %3196 = vmatpush1.msra.mxu0 0.0
    %3197 = vmatprep.subr.mxu0 0.0
    %3198 = vmatpush1.msra.mxu0 0.0
    %3199 = vmatprep.subr.mxu0 0.0
    %3200 = vmatpush1.msra.mxu0 0.0
    %3201 = vmatprep.subr.mxu0 0.0
    %3202 = vmatpush1.msra.mxu0 0.0
    %3203 = vmatprep.subr.mxu0 0.0
    %3204 = vmatpush1.msra.mxu0 0.0
    %3205 = vmatprep.subr.mxu0 0.0
    %3206 = vmatpush1.msra.mxu0 0.0
    %3207 = vmatprep.subr.mxu0 0.0
    %3208 = vmatpush1.msra.mxu0 0.0
    %3209 = vmatprep.subr.mxu0 0.0
    %3210 = vmatpush1.msra.mxu0 0.0
    %3211 = vmatprep.subr.mxu0 0.0
    %3212 = vmatpush1.msra.mxu0 0.0
    %3213 = vmatprep.subr.mxu0 0.0
    %3214 = vmatpush1.msra.mxu0 0.0
    %3215 = vmatprep.mubr.f32.mxu0 0.0
    %3216 = vmatmul.mubr.f32.gmra.mrb[0].mxu0 %v3150
    %v3217 = vpop.f32.mrb[0].mxu0
    %v3218 = vadd.f32 %v2878, %v3217
    %v3219 = vpop.f32.mrb[0].mxu0
    %v3220 = vadd.f32 %v2880, %v3219
    %3221 = vdwg.mxu0
    %3222 = vmatprep.subr.mxu0 %v518
    %3223 = vmatpush1.msra.mxu0 %v517
    %3224 = vmatprep.subr.mxu0 %v522
    %3225 = vmatpush1.msra.mxu0 %v521
    %3226 = vmatprep.subr.mxu0 %v526
    %3227 = vmatpush1.msra.mxu0 %v525
    %3228 = vmatprep.subr.mxu0 %v530
    %3229 = vmatpush1.msra.mxu0 %v529
    %3230 = vmatprep.subr.mxu0 %v534
    %3231 = vmatpush1.msra.mxu0 %v533
    %3232 = vmatprep.subr.mxu0 %v538
    %3233 = vmatpush1.msra.mxu0 %v537
    %3234 = vmatprep.subr.mxu0 %v542
    %3235 = vmatpush1.msra.mxu0 %v541
    %3236 = vmatprep.subr.mxu0 %v546
    %3237 = vmatpush1.msra.mxu0 %v545
    %3238 = vmatprep.subr.mxu0 %v550
    %3239 = vmatpush1.msra.mxu0 %v549
    %3240 = vmatprep.subr.mxu0 %v554
    %3241 = vmatpush1.msra.mxu0 %v553
    %3242 = vmatprep.subr.mxu0 %v558
    %3243 = vmatpush1.msra.mxu0 %v557
    %3244 = vmatprep.subr.mxu0 %v562
    %3245 = vmatpush1.msra.mxu0 %v561
    %3246 = vmatprep.subr.mxu0 %v566
    %3247 = vmatpush1.msra.mxu0 %v565
    %3248 = vmatprep.subr.mxu0 %v570
    %3249 = vmatpush1.msra.mxu0 %v569
    %3250 = vmatprep.subr.mxu0 %v574
    %3251 = vmatpush1.msra.mxu0 %v573
    %3252 = vmatprep.subr.mxu0 %v578
    %3253 = vmatpush1.msra.mxu0 %v577
    %3254 = vmatprep.subr.mxu0 0.0
    %3255 = vmatpush1.msra.mxu0 0.0
    %3256 = vmatprep.subr.mxu0 0.0
    %3257 = vmatpush1.msra.mxu0 0.0
    %3258 = vmatprep.subr.mxu0 0.0
    %3259 = vmatpush1.msra.mxu0 0.0
    %3260 = vmatprep.subr.mxu0 0.0
    %3261 = vmatpush1.msra.mxu0 0.0
    %3262 = vmatprep.subr.mxu0 0.0
    %3263 = vmatpush1.msra.mxu0 0.0
    %3264 = vmatprep.subr.mxu0 0.0
    %3265 = vmatpush1.msra.mxu0 0.0
    %3266 = vmatprep.subr.mxu0 0.0
    %3267 = vmatpush1.msra.mxu0 0.0
    %3268 = vmatprep.subr.mxu0 0.0
    %3269 = vmatpush1.msra.mxu0 0.0
    %3270 = vmatprep.subr.mxu0 0.0
    %3271 = vmatpush1.msra.mxu0 0.0
    %3272 = vmatprep.subr.mxu0 0.0
    %3273 = vmatpush1.msra.mxu0 0.0
    %3274 = vmatprep.subr.mxu0 0.0
    %3275 = vmatpush1.msra.mxu0 0.0
    %3276 = vmatprep.subr.mxu0 0.0
    %3277 = vmatpush1.msra.mxu0 0.0
    %3278 = vmatprep.subr.mxu0 0.0
    %3279 = vmatpush1.msra.mxu0 0.0
    %3280 = vmatprep.subr.mxu0 0.0
    %3281 = vmatpush1.msra.mxu0 0.0
    %3282 = vmatprep.subr.mxu0 0.0
    %3283 = vmatpush1.msra.mxu0 0.0
    %3284 = vmatprep.subr.mxu0 0.0
    %3285 = vmatpush1.msra.mxu0 0.0
    %3286 = vmatprep.mubr.f32.mxu0 0.0
    %3287 = vmatmul.mubr.f32.gmra.mrb[0].mxu0 %v3150
    %v3288 = vpop.f32.mrb[0].mxu0
    %v3289 = vadd.f32 %v2949, %v3288
    %v3290 = vpop.f32.mrb[0].mxu0
    %v3291 = vadd.f32 %v2951, %v3290
    %3292 = vdwg.mxu0
    %v3293 = vadd.f32 %v3218, %v726
    %v3294 = vadd.f32 %v3220, %v730
    %v3295 = vadd.f32 %v3289, %v734
    %v3296 = vadd.f32 %v3291, %v738
    %v3297 = vxor.u32 %v3293, 2147483648
    %v3298 = vmul.f32 %v3297, 1.442695
    %v3299 = vpow.pop %v3298
    %v3300 = vadd.f32 %v3299, 1.0
    %v3301 = vrcp.pop %v3300
    %v3302 = vmul.f32 1.0, %v3301
    %v3303 = vxor.u32 %v3294, 2147483648
    %v3304 = vmul.f32 %v3303, 1.442695
    %v3305 = vpow.pop %v3304
    %v3306 = vadd.f32 %v3305, 1.0
    %v3307 = vrcp.pop %v3306
    %v3308 = vmul.f32 1.0, %v3307
    %v3309 = vtanh.pop %v3295
    %v3310 = vxor.u32 %v3296, 2147483648
    %v3311 = vmul.f32 %v3310, 1.442695
    %v3312 = vpow.pop %v3311
    %v3313 = vadd.f32 %v3312, 1.0
    %v3314 = vrcp.pop %v3313
    %v3315 = vmul.f32 1.0, %v3314
    %v3316 = vmul.f32 %v3308, %v2808
    %v3317 = vmul.f32 %v3302, %v3309
    %v3318 = vadd.f32 %v3316, %v3317
    %v3319 = vtanh.pop %v3318
    %v3320 = vmul.f32 %v3315, %v3319
    %3321 = vmatprep.subr.mxu0 %v49
    %3322 = vmatpush1.msra.mxu0 %v48
    %3323 = vmatprep.subr.mxu0 %v53
    %3324 = vmatpush1.msra.mxu0 %v52
    %3325 = vmatprep.subr.mxu0 %v57
    %3326 = vmatpush1.msra.mxu0 %v56
    %3327 = vmatprep.subr.mxu0 %v61
    %3328 = vmatpush1.msra.mxu0 %v60
    %3329 = vmatprep.subr.mxu0 %v65
    %3330 = vmatpush1.msra.mxu0 %v64
    %3331 = vmatprep.subr.mxu0 %v69
    %3332 = vmatpush1.msra.mxu0 %v68
    %3333 = vmatprep.subr.mxu0 %v73
    %3334 = vmatpush1.msra.mxu0 %v72
    %3335 = vmatprep.subr.mxu0 %v77
    %3336 = vmatpush1.msra.mxu0 %v76
    %3337 = vmatprep.subr.mxu0 %v81
    %3338 = vmatpush1.msra.mxu0 %v80
    %3339 = vmatprep.subr.mxu0 %v85
    %3340 = vmatpush1.msra.mxu0 %v84
    %3341 = vmatprep.subr.mxu0 %v89
    %3342 = vmatpush1.msra.mxu0 %v88
    %3343 = vmatprep.subr.mxu0 %v93
    %3344 = vmatpush1.msra.mxu0 %v92
    %3345 = vmatprep.subr.mxu0 %v97
    %3346 = vmatpush1.msra.mxu0 %v96
    %3347 = vmatprep.subr.mxu0 %v101
    %3348 = vmatpush1.msra.mxu0 %v100
    %3349 = vmatprep.subr.mxu0 %v105
    %3350 = vmatpush1.msra.mxu0 %v104
    %3351 = vmatprep.subr.mxu0 %v109
    %3352 = vmatpush1.msra.mxu0 %v108
    %3353 = vmatprep.subr.mxu0 0.0
    %3354 = vmatpush1.msra.mxu0 0.0
    %3355 = vmatprep.subr.mxu0 0.0
    %3356 = vmatpush1.msra.mxu0 0.0
    %3357 = vmatprep.subr.mxu0 0.0
    %3358 = vmatpush1.msra.mxu0 0.0
    %3359 = vmatprep.subr.mxu0 0.0
    %3360 = vmatpush1.msra.mxu0 0.0
    %3361 = vmatprep.subr.mxu0 0.0
    %3362 = vmatpush1.msra.mxu0 0.0
    %3363 = vmatprep.subr.mxu0 0.0
    %3364 = vmatpush1.msra.mxu0 0.0
    %3365 = vmatprep.subr.mxu0 0.0
    %3366 = vmatpush1.msra.mxu0 0.0
    %3367 = vmatprep.subr.mxu0 0.0
    %3368 = vmatpush1.msra.mxu0 0.0
    %3369 = vmatprep.subr.mxu0 0.0
    %3370 = vmatpush1.msra.mxu0 0.0
    %3371 = vmatprep.subr.mxu0 0.0
    %3372 = vmatpush1.msra.mxu0 0.0
    %3373 = vmatprep.subr.mxu0 0.0
    %3374 = vmatpush1.msra.mxu0 0.0
    %3375 = vmatprep.subr.mxu0 0.0
    %3376 = vmatpush1.msra.mxu0 0.0
    %3377 = vmatprep.subr.mxu0 0.0
    %3378 = vmatpush1.msra.mxu0 0.0
    %3379 = vmatprep.subr.mxu0 0.0
    %3380 = vmatpush1.msra.mxu0 0.0
    %3381 = vmatprep.subr.mxu0 0.0
    %3382 = vmatpush1.msra.mxu0 0.0
    %3383 = vmatprep.subr.mxu0 0.0
    %3384 = vmatpush1.msra.mxu0 0.0
    %3385 = vmatprep.mubr.f32.mxu0 0.0
    %3386 = vmatmul.mubr.f32.gmra.mrb[0].mxu0 %v3320
    %v3387 = vpop.f32.mrb[0].mxu0
    %v3388 = vadd.f32 0.0, %v3387
    %v3389 = vpop.f32.mrb[0].mxu0
    %v3390 = vadd.f32 0.0, %v3389
    %3391 = vdwg.mxu0
    %3392 = vmatprep.subr.mxu0 %v51
    %3393 = vmatpush1.msra.mxu0 %v50
    %3394 = vmatprep.subr.mxu0 %v55
    %3395 = vmatpush1.msra.mxu0 %v54
    %3396 = vmatprep.subr.mxu0 %v59
    %3397 = vmatpush1.msra.mxu0 %v58
    %3398 = vmatprep.subr.mxu0 %v63
    %3399 = vmatpush1.msra.mxu0 %v62
    %3400 = vmatprep.subr.mxu0 %v67
    %3401 = vmatpush1.msra.mxu0 %v66
    %3402 = vmatprep.subr.mxu0 %v71
    %3403 = vmatpush1.msra.mxu0 %v70
    %3404 = vmatprep.subr.mxu0 %v75
    %3405 = vmatpush1.msra.mxu0 %v74
    %3406 = vmatprep.subr.mxu0 %v79
    %3407 = vmatpush1.msra.mxu0 %v78
    %3408 = vmatprep.subr.mxu0 %v83
    %3409 = vmatpush1.msra.mxu0 %v82
    %3410 = vmatprep.subr.mxu0 %v87
    %3411 = vmatpush1.msra.mxu0 %v86
    %3412 = vmatprep.subr.mxu0 %v91
    %3413 = vmatpush1.msra.mxu0 %v90
    %3414 = vmatprep.subr.mxu0 %v95
    %3415 = vmatpush1.msra.mxu0 %v94
    %3416 = vmatprep.subr.mxu0 %v99
    %3417 = vmatpush1.msra.mxu0 %v98
    %3418 = vmatprep.subr.mxu0 %v103
    %3419 = vmatpush1.msra.mxu0 %v102
    %3420 = vmatprep.subr.mxu0 %v107
    %3421 = vmatpush1.msra.mxu0 %v106
    %3422 = vmatprep.subr.mxu0 %v111
    %3423 = vmatpush1.msra.mxu0 %v110
    %3424 = vmatprep.subr.mxu0 0.0
    %3425 = vmatpush1.msra.mxu0 0.0
    %3426 = vmatprep.subr.mxu0 0.0
    %3427 = vmatpush1.msra.mxu0 0.0
    %3428 = vmatprep.subr.mxu0 0.0
    %3429 = vmatpush1.msra.mxu0 0.0
    %3430 = vmatprep.subr.mxu0 0.0
    %3431 = vmatpush1.msra.mxu0 0.0
    %3432 = vmatprep.subr.mxu0 0.0
    %3433 = vmatpush1.msra.mxu0 0.0
    %3434 = vmatprep.subr.mxu0 0.0
    %3435 = vmatpush1.msra.mxu0 0.0
    %3436 = vmatprep.subr.mxu0 0.0
    %3437 = vmatpush1.msra.mxu0 0.0
    %3438 = vmatprep.subr.mxu0 0.0
    %3439 = vmatpush1.msra.mxu0 0.0
    %3440 = vmatprep.subr.mxu0 0.0
    %3441 = vmatpush1.msra.mxu0 0.0
    %3442 = vmatprep.subr.mxu0 0.0
    %3443 = vmatpush1.msra.mxu0 0.0
    %3444 = vmatprep.subr.mxu0 0.0
    %3445 = vmatpush1.msra.mxu0 0.0
    %3446 = vmatprep.subr.mxu0 0.0
    %3447 = vmatpush1.msra.mxu0 0.0
    %3448 = vmatprep.subr.mxu0 0.0
    %3449 = vmatpush1.msra.mxu0 0.0
    %3450 = vmatprep.subr.mxu0 0.0
    %3451 = vmatpush1.msra.mxu0 0.0
    %3452 = vmatprep.subr.mxu0 0.0
    %3453 = vmatpush1.msra.mxu0 0.0
    %3454 = vmatprep.subr.mxu0 0.0
    %3455 = vmatpush1.msra.mxu0 0.0
    %3456 = vmatprep.mubr.f32.mxu0 0.0
    %3457 = vmatmul.mubr.f32.gmra.mrb[0].mxu0 %v3320
    %v3458 = vpop.f32.mrb[0].mxu0
    %v3459 = vadd.f32 0.0, %v3458
    %v3460 = vpop.f32.mrb[0].mxu0
    %v3461 = vadd.f32 0.0, %v3460
    %3462 = vdwg.mxu0
    %s3463 = scalar_lea.vmem %s0, 48
    %v3464 = vld [vmem:[%s3463] sm:$0xff]
    %3465 = vmatprep.subr.mxu0 %v256
    %3466 = vmatpush1.msra.mxu0 %v255
    %3467 = vmatprep.subr.mxu0 %v260
    %3468 = vmatpush1.msra.mxu0 %v259
    %3469 = vmatprep.subr.mxu0 %v264
    %3470 = vmatpush1.msra.mxu0 %v263
    %3471 = vmatprep.subr.mxu0 %v268
    %3472 = vmatpush1.msra.mxu0 %v267
    %3473 = vmatprep.subr.mxu0 %v272
    %3474 = vmatpush1.msra.mxu0 %v271
    %3475 = vmatprep.subr.mxu0 %v276
    %3476 = vmatpush1.msra.mxu0 %v275
    %3477 = vmatprep.subr.mxu0 %v280
    %3478 = vmatpush1.msra.mxu0 %v279
    %3479 = vmatprep.subr.mxu0 %v284
    %3480 = vmatpush1.msra.mxu0 %v283
    %3481 = vmatprep.subr.mxu0 %v288
    %3482 = vmatpush1.msra.mxu0 %v287
    %3483 = vmatprep.subr.mxu0 %v292
    %3484 = vmatpush1.msra.mxu0 %v291
    %3485 = vmatprep.subr.mxu0 %v296
    %3486 = vmatpush1.msra.mxu0 %v295
    %3487 = vmatprep.subr.mxu0 %v300
    %3488 = vmatpush1.msra.mxu0 %v299
    %3489 = vmatprep.subr.mxu0 %v304
    %3490 = vmatpush1.msra.mxu0 %v303
    %3491 = vmatprep.subr.mxu0 %v308
    %3492 = vmatpush1.msra.mxu0 %v307
    %3493 = vmatprep.subr.mxu0 %v312
    %3494 = vmatpush1.msra.mxu0 %v311
    %3495 = vmatprep.subr.mxu0 %v316
    %3496 = vmatpush1.msra.mxu0 %v315
    %3497 = vmatprep.subr.mxu0 0.0
    %3498 = vmatpush1.msra.mxu0 0.0
    %3499 = vmatprep.subr.mxu0 0.0
    %3500 = vmatpush1.msra.mxu0 0.0
    %3501 = vmatprep.subr.mxu0 0.0
    %3502 = vmatpush1.msra.mxu0 0.0
    %3503 = vmatprep.subr.mxu0 0.0
    %3504 = vmatpush1.msra.mxu0 0.0
    %3505 = vmatprep.subr.mxu0 0.0
    %3506 = vmatpush1.msra.mxu0 0.0
    %3507 = vmatprep.subr.mxu0 0.0
    %3508 = vmatpush1.msra.mxu0 0.0
    %3509 = vmatprep.subr.mxu0 0.0
    %3510 = vmatpush1.msra.mxu0 0.0
    %3511 = vmatprep.subr.mxu0 0.0
    %3512 = vmatpush1.msra.mxu0 0.0
    %3513 = vmatprep.subr.mxu0 0.0
    %3514 = vmatpush1.msra.mxu0 0.0
    %3515 = vmatprep.subr.mxu0 0.0
    %3516 = vmatpush1.msra.mxu0 0.0
    %3517 = vmatprep.subr.mxu0 0.0
    %3518 = vmatpush1.msra.mxu0 0.0
    %3519 = vmatprep.subr.mxu0 0.0
    %3520 = vmatpush1.msra.mxu0 0.0
    %3521 = vmatprep.subr.mxu0 0.0
    %3522 = vmatpush1.msra.mxu0 0.0
    %3523 = vmatprep.subr.mxu0 0.0
    %3524 = vmatpush1.msra.mxu0 0.0
    %3525 = vmatprep.subr.mxu0 0.0
    %3526 = vmatpush1.msra.mxu0 0.0
    %3527 = vmatprep.subr.mxu0 0.0
    %3528 = vmatpush1.msra.mxu0 0.0
    %3529 = vmatprep.mubr.f32.mxu0 0.0
    %3530 = vmatmul.mubr.f32.gmra.mrb[0].mxu0 %v3150
    %v3531 = vpop.f32.mrb[0].mxu0
    %v3532 = vadd.f32 0.0, %v3531
    %v3533 = vpop.f32.mrb[0].mxu0
    %v3534 = vadd.f32 0.0, %v3533
    %3535 = vdwg.mxu0
    %3536 = vmatprep.subr.mxu0 %v258
    %3537 = vmatpush1.msra.mxu0 %v257
    %3538 = vmatprep.subr.mxu0 %v262
    %3539 = vmatpush1.msra.mxu0 %v261
    %3540 = vmatprep.subr.mxu0 %v266
    %3541 = vmatpush1.msra.mxu0 %v265
    %3542 = vmatprep.subr.mxu0 %v270
    %3543 = vmatpush1.msra.mxu0 %v269
    %3544 = vmatprep.subr.mxu0 %v274
    %3545 = vmatpush1.msra.mxu0 %v273
    %3546 = vmatprep.subr.mxu0 %v278
    %3547 = vmatpush1.msra.mxu0 %v277
    %3548 = vmatprep.subr.mxu0 %v282
    %3549 = vmatpush1.msra.mxu0 %v281
    %3550 = vmatprep.subr.mxu0 %v286
    %3551 = vmatpush1.msra.mxu0 %v285
    %3552 = vmatprep.subr.mxu0 %v290
    %3553 = vmatpush1.msra.mxu0 %v289
    %3554 = vmatprep.subr.mxu0 %v294
    %3555 = vmatpush1.msra.mxu0 %v293
    %3556 = vmatprep.subr.mxu0 %v298
    %3557 = vmatpush1.msra.mxu0 %v297
    %3558 = vmatprep.subr.mxu0 %v302
    %3559 = vmatpush1.msra.mxu0 %v301
    %3560 = vmatprep.subr.mxu0 %v306
    %3561 = vmatpush1.msra.mxu0 %v305
    %3562 = vmatprep.subr.mxu0 %v310
    %3563 = vmatpush1.msra.mxu0 %v309
    %3564 = vmatprep.subr.mxu0 %v314
    %3565 = vmatpush1.msra.mxu0 %v313
    %3566 = vmatprep.subr.mxu0 %v318
    %3567 = vmatpush1.msra.mxu0 %v317
    %3568 = vmatprep.subr.mxu0 0.0
    %3569 = vmatpush1.msra.mxu0 0.0
    %3570 = vmatprep.subr.mxu0 0.0
    %3571 = vmatpush1.msra.mxu0 0.0
    %3572 = vmatprep.subr.mxu0 0.0
    %3573 = vmatpush1.msra.mxu0 0.0
    %3574 = vmatprep.subr.mxu0 0.0
    %3575 = vmatpush1.msra.mxu0 0.0
    %3576 = vmatprep.subr.mxu0 0.0
    %3577 = vmatpush1.msra.mxu0 0.0
    %3578 = vmatprep.subr.mxu0 0.0
    %3579 = vmatpush1.msra.mxu0 0.0
    %3580 = vmatprep.subr.mxu0 0.0
    %3581 = vmatpush1.msra.mxu0 0.0
    %3582 = vmatprep.subr.mxu0 0.0
    %3583 = vmatpush1.msra.mxu0 0.0
    %3584 = vmatprep.subr.mxu0 0.0
    %3585 = vmatpush1.msra.mxu0 0.0
    %3586 = vmatprep.subr.mxu0 0.0
    %3587 = vmatpush1.msra.mxu0 0.0
    %3588 = vmatprep.subr.mxu0 0.0
    %3589 = vmatpush1.msra.mxu0 0.0
    %3590 = vmatprep.subr.mxu0 0.0
    %3591 = vmatpush1.msra.mxu0 0.0
    %3592 = vmatprep.subr.mxu0 0.0
    %3593 = vmatpush1.msra.mxu0 0.0
    %3594 = vmatprep.subr.mxu0 0.0
    %3595 = vmatpush1.msra.mxu0 0.0
    %3596 = vmatprep.subr.mxu0 0.0
    %3597 = vmatpush1.msra.mxu0 0.0
    %3598 = vmatprep.subr.mxu0 0.0
    %3599 = vmatpush1.msra.mxu0 0.0
    %3600 = vmatprep.mubr.f32.mxu0 0.0
    %3601 = vmatmul.mubr.f32.gmra.mrb[0].mxu0 %v3150
    %v3602 = vpop.f32.mrb[0].mxu0
    %v3603 = vadd.f32 0.0, %v3602
    %v3604 = vpop.f32.mrb[0].mxu0
    %v3605 = vadd.f32 0.0, %v3604
    %3606 = vdwg.mxu0
    %v3611 = vcombine.low %v3532, %v3534
    %v3612 = vcombine.low %v3603, %v3605
    %v3614 = vunpack.c.l.s4 1983009808
    %v3615 = vunpack.c.0.s8 %v3614
    %v3616 = vlaneseq
    %v3617 = vshrl.u32 %v3616, 7
    %v3618 = vsub.s32 %v3615, %v3617
    %v3619 = vrot.slane %v3611, %v3618
    %v3621 = vunpack.c.l.s4 1983009808
    %v3622 = vunpack.c.0.s8 %v3621
    %v3623 = vlaneseq
    %v3624 = vshrl.u32 %v3623, 7
    %v3625 = vsub.s32 %v3622, %v3624
    %v3626 = vrot.slane %v3612, %v3625
    %v3627 = vcombine.low %v3619, %v3626
    %v3629 = vadd.f32 %v3464, %v3627
    %v3630 = vxor.u32 %v3629, 2147483648
    %v3631 = vmul.f32 %v3630, 1.442695
    %v3632 = vpow.pop %v3631
    %v3633 = vadd.f32 %v3632, 1.0
    %v3634 = vrcp.pop %v3633
    %v3635 = vmul.f32 1.0, %v3634
    %v3637 = vrot.slane %v3629, 2
    %v3639 = vxor.u32 %v3637, 2147483648
    %v3640 = vmul.f32 %v3639, 1.442695
    %v3641 = vpow.pop %v3640
    %v3642 = vadd.f32 %v3641, 1.0
    %v3643 = vrcp.pop %v3642
    %v3644 = vmul.f32 1.0, %v3643
    %v3645 = vrot.slane %v3629, 4
    %v3647 = vtanh.pop %v3645
    %v3648 = vrot.slane %v3629, 6
    %v3650 = vxor.u32 %v3648, 2147483648
    %v3651 = vmul.f32 %v3650, 1.442695
    %v3652 = vpow.pop %v3651
    %v3653 = vadd.f32 %v3652, 1.0
    %v3654 = vrcp.pop %v3653
    %v3655 = vmul.f32 1.0, %v3654
    %v3656 = vmul.f32 %v3644, %v3148
    %v3657 = vmul.f32 %v3635, %v3647
    %v3658 = vadd.f32 %v3656, %v3657
    %v3659 = vtanh.pop %v3658
    %v3660 = vmul.f32 %v3655, %v3659
    %3661 = vmatprep.subr.mxu0 %v516
    %3662 = vmatpush1.msra.mxu0 %v515
    %3663 = vmatprep.subr.mxu0 %v520
    %3664 = vmatpush1.msra.mxu0 %v519
    %3665 = vmatprep.subr.mxu0 %v524
    %3666 = vmatpush1.msra.mxu0 %v523
    %3667 = vmatprep.subr.mxu0 %v528
    %3668 = vmatpush1.msra.mxu0 %v527
    %3669 = vmatprep.subr.mxu0 %v532
    %3670 = vmatpush1.msra.mxu0 %v531
    %3671 = vmatprep.subr.mxu0 %v536
    %3672 = vmatpush1.msra.mxu0 %v535
    %3673 = vmatprep.subr.mxu0 %v540
    %3674 = vmatpush1.msra.mxu0 %v539
    %3675 = vmatprep.subr.mxu0 %v544
    %3676 = vmatpush1.msra.mxu0 %v543
    %3677 = vmatprep.subr.mxu0 %v548
    %3678 = vmatpush1.msra.mxu0 %v547
    %3679 = vmatprep.subr.mxu0 %v552
    %3680 = vmatpush1.msra.mxu0 %v551
    %3681 = vmatprep.subr.mxu0 %v556
    %3682 = vmatpush1.msra.mxu0 %v555
    %3683 = vmatprep.subr.mxu0 %v560
    %3684 = vmatpush1.msra.mxu0 %v559
    %3685 = vmatprep.subr.mxu0 %v564
    %3686 = vmatpush1.msra.mxu0 %v563
    %3687 = vmatprep.subr.mxu0 %v568
    %3688 = vmatpush1.msra.mxu0 %v567
    %3689 = vmatprep.subr.mxu0 %v572
    %3690 = vmatpush1.msra.mxu0 %v571
    %3691 = vmatprep.subr.mxu0 %v576
    %3692 = vmatpush1.msra.mxu0 %v575
    %3693 = vmatprep.subr.mxu0 0.0
    %3694 = vmatpush1.msra.mxu0 0.0
    %3695 = vmatprep.subr.mxu0 0.0
    %3696 = vmatpush1.msra.mxu0 0.0
    %3697 = vmatprep.subr.mxu0 0.0
    %3698 = vmatpush1.msra.mxu0 0.0
    %3699 = vmatprep.subr.mxu0 0.0
    %3700 = vmatpush1.msra.mxu0 0.0
    %3701 = vmatprep.subr.mxu0 0.0
    %3702 = vmatpush1.msra.mxu0 0.0
    %3703 = vmatprep.subr.mxu0 0.0
    %3704 = vmatpush1.msra.mxu0 0.0
    %3705 = vmatprep.subr.mxu0 0.0
    %3706 = vmatpush1.msra.mxu0 0.0
    %3707 = vmatprep.subr.mxu0 0.0
    %3708 = vmatpush1.msra.mxu0 0.0
    %3709 = vmatprep.subr.mxu0 0.0
    %3710 = vmatpush1.msra.mxu0 0.0
    %3711 = vmatprep.subr.mxu0 0.0
    %3712 = vmatpush1.msra.mxu0 0.0
    %3713 = vmatprep.subr.mxu0 0.0
    %3714 = vmatpush1.msra.mxu0 0.0
    %3715 = vmatprep.subr.mxu0 0.0
    %3716 = vmatpush1.msra.mxu0 0.0
    %3717 = vmatprep.subr.mxu0 0.0
    %3718 = vmatpush1.msra.mxu0 0.0
    %3719 = vmatprep.subr.mxu0 0.0
    %3720 = vmatpush1.msra.mxu0 0.0
    %3721 = vmatprep.subr.mxu0 0.0
    %3722 = vmatpush1.msra.mxu0 0.0
    %3723 = vmatprep.subr.mxu0 0.0
    %3724 = vmatpush1.msra.mxu0 0.0
    %3725 = vmatprep.mubr.f32.mxu0 0.0
    %3726 = vmatmul.mubr.f32.gmra.mrb[0].mxu0 %v3660
    %v3727 = vpop.f32.mrb[0].mxu0
    %v3728 = vadd.f32 %v3388, %v3727
    %v3729 = vpop.f32.mrb[0].mxu0
    %v3730 = vadd.f32 %v3390, %v3729
    %3731 = vdwg.mxu0
    %3732 = vmatprep.subr.mxu0 %v518
    %3733 = vmatpush1.msra.mxu0 %v517
    %3734 = vmatprep.subr.mxu0 %v522
    %3735 = vmatpush1.msra.mxu0 %v521
    %3736 = vmatprep.subr.mxu0 %v526
    %3737 = vmatpush1.msra.mxu0 %v525
    %3738 = vmatprep.subr.mxu0 %v530
    %3739 = vmatpush1.msra.mxu0 %v529
    %3740 = vmatprep.subr.mxu0 %v534
    %3741 = vmatpush1.msra.mxu0 %v533
    %3742 = vmatprep.subr.mxu0 %v538
    %3743 = vmatpush1.msra.mxu0 %v537
    %3744 = vmatprep.subr.mxu0 %v542
    %3745 = vmatpush1.msra.mxu0 %v541
    %3746 = vmatprep.subr.mxu0 %v546
    %3747 = vmatpush1.msra.mxu0 %v545
    %3748 = vmatprep.subr.mxu0 %v550
    %3749 = vmatpush1.msra.mxu0 %v549
    %3750 = vmatprep.subr.mxu0 %v554
    %3751 = vmatpush1.msra.mxu0 %v553
    %3752 = vmatprep.subr.mxu0 %v558
    %3753 = vmatpush1.msra.mxu0 %v557
    %3754 = vmatprep.subr.mxu0 %v562
    %3755 = vmatpush1.msra.mxu0 %v561
    %3756 = vmatprep.subr.mxu0 %v566
    %3757 = vmatpush1.msra.mxu0 %v565
    %3758 = vmatprep.subr.mxu0 %v570
    %3759 = vmatpush1.msra.mxu0 %v569
    %3760 = vmatprep.subr.mxu0 %v574
    %3761 = vmatpush1.msra.mxu0 %v573
    %3762 = vmatprep.subr.mxu0 %v578
    %3763 = vmatpush1.msra.mxu0 %v577
    %3764 = vmatprep.subr.mxu0 0.0
    %3765 = vmatpush1.msra.mxu0 0.0
    %3766 = vmatprep.subr.mxu0 0.0
    %3767 = vmatpush1.msra.mxu0 0.0
    %3768 = vmatprep.subr.mxu0 0.0
    %3769 = vmatpush1.msra.mxu0 0.0
    %3770 = vmatprep.subr.mxu0 0.0
    %3771 = vmatpush1.msra.mxu0 0.0
    %3772 = vmatprep.subr.mxu0 0.0
    %3773 = vmatpush1.msra.mxu0 0.0
    %3774 = vmatprep.subr.mxu0 0.0
    %3775 = vmatpush1.msra.mxu0 0.0
    %3776 = vmatprep.subr.mxu0 0.0
    %3777 = vmatpush1.msra.mxu0 0.0
    %3778 = vmatprep.subr.mxu0 0.0
    %3779 = vmatpush1.msra.mxu0 0.0
    %3780 = vmatprep.subr.mxu0 0.0
    %3781 = vmatpush1.msra.mxu0 0.0
    %3782 = vmatprep.subr.mxu0 0.0
    %3783 = vmatpush1.msra.mxu0 0.0
    %3784 = vmatprep.subr.mxu0 0.0
    %3785 = vmatpush1.msra.mxu0 0.0
    %3786 = vmatprep.subr.mxu0 0.0
    %3787 = vmatpush1.msra.mxu0 0.0
    %3788 = vmatprep.subr.mxu0 0.0
    %3789 = vmatpush1.msra.mxu0 0.0
    %3790 = vmatprep.subr.mxu0 0.0
    %3791 = vmatpush1.msra.mxu0 0.0
    %3792 = vmatprep.subr.mxu0 0.0
    %3793 = vmatpush1.msra.mxu0 0.0
    %3794 = vmatprep.subr.mxu0 0.0
    %3795 = vmatpush1.msra.mxu0 0.0
    %3796 = vmatprep.mubr.f32.mxu0 0.0
    %3797 = vmatmul.mubr.f32.gmra.mrb[0].mxu0 %v3660
    %v3798 = vpop.f32.mrb[0].mxu0
    %v3799 = vadd.f32 %v3459, %v3798
    %v3800 = vpop.f32.mrb[0].mxu0
    %v3801 = vadd.f32 %v3461, %v3800
    %3802 = vdwg.mxu0
    %v3803 = vadd.f32 %v3728, %v726
    %v3804 = vadd.f32 %v3730, %v730
    %v3805 = vadd.f32 %v3799, %v734
    %v3806 = vadd.f32 %v3801, %v738
    %v3807 = vxor.u32 %v3803, 2147483648
    %v3808 = vmul.f32 %v3807, 1.442695
    %v3809 = vpow.pop %v3808
    %v3810 = vadd.f32 %v3809, 1.0
    %v3811 = vrcp.pop %v3810
    %v3812 = vmul.f32 1.0, %v3811
    %v3813 = vxor.u32 %v3804, 2147483648
    %v3814 = vmul.f32 %v3813, 1.442695
    %v3815 = vpow.pop %v3814
    %v3816 = vadd.f32 %v3815, 1.0
    %v3817 = vrcp.pop %v3816
    %v3818 = vmul.f32 1.0, %v3817
    %v3819 = vtanh.pop %v3805
    %v3820 = vxor.u32 %v3806, 2147483648
    %v3821 = vmul.f32 %v3820, 1.442695
    %v3822 = vpow.pop %v3821
    %v3823 = vadd.f32 %v3822, 1.0
    %v3824 = vrcp.pop %v3823
    %v3825 = vmul.f32 1.0, %v3824
    %v3826 = vmul.f32 %v3818, %v3318
    %v3827 = vmul.f32 %v3812, %v3819
    %v3828 = vadd.f32 %v3826, %v3827
    %v3829 = vtanh.pop %v3828
    %v3830 = vmul.f32 %v3825, %v3829
    %3831 = vmatprep.subr.mxu0 %v49
    %3832 = vmatpush1.msra.mxu0 %v48
    %3833 = vmatprep.subr.mxu0 %v53
    %3834 = vmatpush1.msra.mxu0 %v52
    %3835 = vmatprep.subr.mxu0 %v57
    %3836 = vmatpush1.msra.mxu0 %v56
    %3837 = vmatprep.subr.mxu0 %v61
    %3838 = vmatpush1.msra.mxu0 %v60
    %3839 = vmatprep.subr.mxu0 %v65
    %3840 = vmatpush1.msra.mxu0 %v64
    %3841 = vmatprep.subr.mxu0 %v69
    %3842 = vmatpush1.msra.mxu0 %v68
    %3843 = vmatprep.subr.mxu0 %v73
    %3844 = vmatpush1.msra.mxu0 %v72
    %3845 = vmatprep.subr.mxu0 %v77
    %3846 = vmatpush1.msra.mxu0 %v76
    %3847 = vmatprep.subr.mxu0 %v81
    %3848 = vmatpush1.msra.mxu0 %v80
    %3849 = vmatprep.subr.mxu0 %v85
    %3850 = vmatpush1.msra.mxu0 %v84
    %3851 = vmatprep.subr.mxu0 %v89
    %3852 = vmatpush1.msra.mxu0 %v88
    %3853 = vmatprep.subr.mxu0 %v93
    %3854 = vmatpush1.msra.mxu0 %v92
    %3855 = vmatprep.subr.mxu0 %v97
    %3856 = vmatpush1.msra.mxu0 %v96
    %3857 = vmatprep.subr.mxu0 %v101
    %3858 = vmatpush1.msra.mxu0 %v100
    %3859 = vmatprep.subr.mxu0 %v105
    %3860 = vmatpush1.msra.mxu0 %v104
    %3861 = vmatprep.subr.mxu0 %v109
    %3862 = vmatpush1.msra.mxu0 %v108
    %3863 = vmatprep.subr.mxu0 0.0
    %3864 = vmatpush1.msra.mxu0 0.0
    %3865 = vmatprep.subr.mxu0 0.0
    %3866 = vmatpush1.msra.mxu0 0.0
    %3867 = vmatprep.subr.mxu0 0.0
    %3868 = vmatpush1.msra.mxu0 0.0
    %3869 = vmatprep.subr.mxu0 0.0
    %3870 = vmatpush1.msra.mxu0 0.0
    %3871 = vmatprep.subr.mxu0 0.0
    %3872 = vmatpush1.msra.mxu0 0.0
    %3873 = vmatprep.subr.mxu0 0.0
    %3874 = vmatpush1.msra.mxu0 0.0
    %3875 = vmatprep.subr.mxu0 0.0
    %3876 = vmatpush1.msra.mxu0 0.0
    %3877 = vmatprep.subr.mxu0 0.0
    %3878 = vmatpush1.msra.mxu0 0.0
    %3879 = vmatprep.subr.mxu0 0.0
    %3880 = vmatpush1.msra.mxu0 0.0
    %3881 = vmatprep.subr.mxu0 0.0
    %3882 = vmatpush1.msra.mxu0 0.0
    %3883 = vmatprep.subr.mxu0 0.0
    %3884 = vmatpush1.msra.mxu0 0.0
    %3885 = vmatprep.subr.mxu0 0.0
    %3886 = vmatpush1.msra.mxu0 0.0
    %3887 = vmatprep.subr.mxu0 0.0
    %3888 = vmatpush1.msra.mxu0 0.0
    %3889 = vmatprep.subr.mxu0 0.0
    %3890 = vmatpush1.msra.mxu0 0.0
    %3891 = vmatprep.subr.mxu0 0.0
    %3892 = vmatpush1.msra.mxu0 0.0
    %3893 = vmatprep.subr.mxu0 0.0
    %3894 = vmatpush1.msra.mxu0 0.0
    %3895 = vmatprep.mubr.f32.mxu0 0.0
    %3896 = vmatmul.mubr.f32.gmra.mrb[0].mxu0 %v3830
    %v3897 = vpop.f32.mrb[0].mxu0
    %v3898 = vadd.f32 0.0, %v3897
    %v3899 = vpop.f32.mrb[0].mxu0
    %v3900 = vadd.f32 0.0, %v3899
    %3901 = vdwg.mxu0
    %3902 = vmatprep.subr.mxu0 %v51
    %3903 = vmatpush1.msra.mxu0 %v50
    %3904 = vmatprep.subr.mxu0 %v55
    %3905 = vmatpush1.msra.mxu0 %v54
    %3906 = vmatprep.subr.mxu0 %v59
    %3907 = vmatpush1.msra.mxu0 %v58
    %3908 = vmatprep.subr.mxu0 %v63
    %3909 = vmatpush1.msra.mxu0 %v62
    %3910 = vmatprep.subr.mxu0 %v67
    %3911 = vmatpush1.msra.mxu0 %v66
    %3912 = vmatprep.subr.mxu0 %v71
    %3913 = vmatpush1.msra.mxu0 %v70
    %3914 = vmatprep.subr.mxu0 %v75
    %3915 = vmatpush1.msra.mxu0 %v74
    %3916 = vmatprep.subr.mxu0 %v79
    %3917 = vmatpush1.msra.mxu0 %v78
    %3918 = vmatprep.subr.mxu0 %v83
    %3919 = vmatpush1.msra.mxu0 %v82
    %3920 = vmatprep.subr.mxu0 %v87
    %3921 = vmatpush1.msra.mxu0 %v86
    %3922 = vmatprep.subr.mxu0 %v91
    %3923 = vmatpush1.msra.mxu0 %v90
    %3924 = vmatprep.subr.mxu0 %v95
    %3925 = vmatpush1.msra.mxu0 %v94
    %3926 = vmatprep.subr.mxu0 %v99
    %3927 = vmatpush1.msra.mxu0 %v98
    %3928 = vmatprep.subr.mxu0 %v103
    %3929 = vmatpush1.msra.mxu0 %v102
    %3930 = vmatprep.subr.mxu0 %v107
    %3931 = vmatpush1.msra.mxu0 %v106
    %3932 = vmatprep.subr.mxu0 %v111
    %3933 = vmatpush1.msra.mxu0 %v110
    %3934 = vmatprep.subr.mxu0 0.0
    %3935 = vmatpush1.msra.mxu0 0.0
    %3936 = vmatprep.subr.mxu0 0.0
    %3937 = vmatpush1.msra.mxu0 0.0
    %3938 = vmatprep.subr.mxu0 0.0
    %3939 = vmatpush1.msra.mxu0 0.0
    %3940 = vmatprep.subr.mxu0 0.0
    %3941 = vmatpush1.msra.mxu0 0.0
    %3942 = vmatprep.subr.mxu0 0.0
    %3943 = vmatpush1.msra.mxu0 0.0
    %3944 = vmatprep.subr.mxu0 0.0
    %3945 = vmatpush1.msra.mxu0 0.0
    %3946 = vmatprep.subr.mxu0 0.0
    %3947 = vmatpush1.msra.mxu0 0.0
    %3948 = vmatprep.subr.mxu0 0.0
    %3949 = vmatpush1.msra.mxu0 0.0
    %3950 = vmatprep.subr.mxu0 0.0
    %3951 = vmatpush1.msra.mxu0 0.0
    %3952 = vmatprep.subr.mxu0 0.0
    %3953 = vmatpush1.msra.mxu0 0.0
    %3954 = vmatprep.subr.mxu0 0.0
    %3955 = vmatpush1.msra.mxu0 0.0
    %3956 = vmatprep.subr.mxu0 0.0
    %3957 = vmatpush1.msra.mxu0 0.0
    %3958 = vmatprep.subr.mxu0 0.0
    %3959 = vmatpush1.msra.mxu0 0.0
    %3960 = vmatprep.subr.mxu0 0.0
    %3961 = vmatpush1.msra.mxu0 0.0
    %3962 = vmatprep.subr.mxu0 0.0
    %3963 = vmatpush1.msra.mxu0 0.0
    %3964 = vmatprep.subr.mxu0 0.0
    %3965 = vmatpush1.msra.mxu0 0.0
    %3966 = vmatprep.mubr.f32.mxu0 0.0
    %3967 = vmatmul.mubr.f32.gmra.mrb[0].mxu0 %v3830
    %v3968 = vpop.f32.mrb[0].mxu0
    %v3969 = vadd.f32 0.0, %v3968
    %v3970 = vpop.f32.mrb[0].mxu0
    %v3971 = vadd.f32 0.0, %v3970
    %3972 = vdwg.mxu0
    %s3973 = scalar_lea.vmem %s0, 56
    %v3974 = vld [vmem:[%s3973] sm:$0xff]
    %3975 = vmatprep.subr.mxu0 %v256
    %3976 = vmatpush1.msra.mxu0 %v255
    %3977 = vmatprep.subr.mxu0 %v260
    %3978 = vmatpush1.msra.mxu0 %v259
    %3979 = vmatprep.subr.mxu0 %v264
    %3980 = vmatpush1.msra.mxu0 %v263
    %3981 = vmatprep.subr.mxu0 %v268
    %3982 = vmatpush1.msra.mxu0 %v267
    %3983 = vmatprep.subr.mxu0 %v272
    %3984 = vmatpush1.msra.mxu0 %v271
    %3985 = vmatprep.subr.mxu0 %v276
    %3986 = vmatpush1.msra.mxu0 %v275
    %3987 = vmatprep.subr.mxu0 %v280
    %3988 = vmatpush1.msra.mxu0 %v279
    %3989 = vmatprep.subr.mxu0 %v284
    %3990 = vmatpush1.msra.mxu0 %v283
    %3991 = vmatprep.subr.mxu0 %v288
    %3992 = vmatpush1.msra.mxu0 %v287
    %3993 = vmatprep.subr.mxu0 %v292
    %3994 = vmatpush1.msra.mxu0 %v291
    %3995 = vmatprep.subr.mxu0 %v296
    %3996 = vmatpush1.msra.mxu0 %v295
    %3997 = vmatprep.subr.mxu0 %v300
    %3998 = vmatpush1.msra.mxu0 %v299
    %3999 = vmatprep.subr.mxu0 %v304
    %4000 = vmatpush1.msra.mxu0 %v303
    %4001 = vmatprep.subr.mxu0 %v308
    %4002 = vmatpush1.msra.mxu0 %v307
    %4003 = vmatprep.subr.mxu0 %v312
    %4004 = vmatpush1.msra.mxu0 %v311
    %4005 = vmatprep.subr.mxu0 %v316
    %4006 = vmatpush1.msra.mxu0 %v315
    %4007 = vmatprep.subr.mxu0 0.0
    %4008 = vmatpush1.msra.mxu0 0.0
    %4009 = vmatprep.subr.mxu0 0.0
    %4010 = vmatpush1.msra.mxu0 0.0
    %4011 = vmatprep.subr.mxu0 0.0
    %4012 = vmatpush1.msra.mxu0 0.0
    %4013 = vmatprep.subr.mxu0 0.0
    %4014 = vmatpush1.msra.mxu0 0.0
    %4015 = vmatprep.subr.mxu0 0.0
    %4016 = vmatpush1.msra.mxu0 0.0
    %4017 = vmatprep.subr.mxu0 0.0
    %4018 = vmatpush1.msra.mxu0 0.0
    %4019 = vmatprep.subr.mxu0 0.0
    %4020 = vmatpush1.msra.mxu0 0.0
    %4021 = vmatprep.subr.mxu0 0.0
    %4022 = vmatpush1.msra.mxu0 0.0
    %4023 = vmatprep.subr.mxu0 0.0
    %4024 = vmatpush1.msra.mxu0 0.0
    %4025 = vmatprep.subr.mxu0 0.0
    %4026 = vmatpush1.msra.mxu0 0.0
    %4027 = vmatprep.subr.mxu0 0.0
    %4028 = vmatpush1.msra.mxu0 0.0
    %4029 = vmatprep.subr.mxu0 0.0
    %4030 = vmatpush1.msra.mxu0 0.0
    %4031 = vmatprep.subr.mxu0 0.0
    %4032 = vmatpush1.msra.mxu0 0.0
    %4033 = vmatprep.subr.mxu0 0.0
    %4034 = vmatpush1.msra.mxu0 0.0
    %4035 = vmatprep.subr.mxu0 0.0
    %4036 = vmatpush1.msra.mxu0 0.0
    %4037 = vmatprep.subr.mxu0 0.0
    %4038 = vmatpush1.msra.mxu0 0.0
    %4039 = vmatprep.mubr.f32.mxu0 0.0
    %4040 = vmatmul.mubr.f32.gmra.mrb[0].mxu0 %v3660
    %v4041 = vpop.f32.mrb[0].mxu0
    %v4042 = vadd.f32 0.0, %v4041
    %v4043 = vpop.f32.mrb[0].mxu0
    %v4044 = vadd.f32 0.0, %v4043
    %4045 = vdwg.mxu0
    %4046 = vmatprep.subr.mxu0 %v258
    %4047 = vmatpush1.msra.mxu0 %v257
    %4048 = vmatprep.subr.mxu0 %v262
    %4049 = vmatpush1.msra.mxu0 %v261
    %4050 = vmatprep.subr.mxu0 %v266
    %4051 = vmatpush1.msra.mxu0 %v265
    %4052 = vmatprep.subr.mxu0 %v270
    %4053 = vmatpush1.msra.mxu0 %v269
    %4054 = vmatprep.subr.mxu0 %v274
    %4055 = vmatpush1.msra.mxu0 %v273
    %4056 = vmatprep.subr.mxu0 %v278
    %4057 = vmatpush1.msra.mxu0 %v277
    %4058 = vmatprep.subr.mxu0 %v282
    %4059 = vmatpush1.msra.mxu0 %v281
    %4060 = vmatprep.subr.mxu0 %v286
    %4061 = vmatpush1.msra.mxu0 %v285
    %4062 = vmatprep.subr.mxu0 %v290
    %4063 = vmatpush1.msra.mxu0 %v289
    %4064 = vmatprep.subr.mxu0 %v294
    %4065 = vmatpush1.msra.mxu0 %v293
    %4066 = vmatprep.subr.mxu0 %v298
    %4067 = vmatpush1.msra.mxu0 %v297
    %4068 = vmatprep.subr.mxu0 %v302
    %4069 = vmatpush1.msra.mxu0 %v301
    %4070 = vmatprep.subr.mxu0 %v306
    %4071 = vmatpush1.msra.mxu0 %v305
    %4072 = vmatprep.subr.mxu0 %v310
    %4073 = vmatpush1.msra.mxu0 %v309
    %4074 = vmatprep.subr.mxu0 %v314
    %4075 = vmatpush1.msra.mxu0 %v313
    %4076 = vmatprep.subr.mxu0 %v318
    %4077 = vmatpush1.msra.mxu0 %v317
    %4078 = vmatprep.subr.mxu0 0.0
    %4079 = vmatpush1.msra.mxu0 0.0
    %4080 = vmatprep.subr.mxu0 0.0
    %4081 = vmatpush1.msra.mxu0 0.0
    %4082 = vmatprep.subr.mxu0 0.0
    %4083 = vmatpush1.msra.mxu0 0.0
    %4084 = vmatprep.subr.mxu0 0.0
    %4085 = vmatpush1.msra.mxu0 0.0
    %4086 = vmatprep.subr.mxu0 0.0
    %4087 = vmatpush1.msra.mxu0 0.0
    %4088 = vmatprep.subr.mxu0 0.0
    %4089 = vmatpush1.msra.mxu0 0.0
    %4090 = vmatprep.subr.mxu0 0.0
    %4091 = vmatpush1.msra.mxu0 0.0
    %4092 = vmatprep.subr.mxu0 0.0
    %4093 = vmatpush1.msra.mxu0 0.0
    %4094 = vmatprep.subr.mxu0 0.0
    %4095 = vmatpush1.msra.mxu0 0.0
    %4096 = vmatprep.subr.mxu0 0.0
    %4097 = vmatpush1.msra.mxu0 0.0
    %4098 = vmatprep.subr.mxu0 0.0
    %4099 = vmatpush1.msra.mxu0 0.0
    %4100 = vmatprep.subr.mxu0 0.0
    %4101 = vmatpush1.msra.mxu0 0.0
    %4102 = vmatprep.subr.mxu0 0.0
    %4103 = vmatpush1.msra.mxu0 0.0
    %4104 = vmatprep.subr.mxu0 0.0
    %4105 = vmatpush1.msra.mxu0 0.0
    %4106 = vmatprep.subr.mxu0 0.0
    %4107 = vmatpush1.msra.mxu0 0.0
    %4108 = vmatprep.subr.mxu0 0.0
    %4109 = vmatpush1.msra.mxu0 0.0
    %4110 = vmatprep.mubr.f32.mxu0 0.0
    %4111 = vmatmul.mubr.f32.gmra.mrb[0].mxu0 %v3660
    %v4112 = vpop.f32.mrb[0].mxu0
    %v4113 = vadd.f32 0.0, %v4112
    %v4114 = vpop.f32.mrb[0].mxu0
    %v4115 = vadd.f32 0.0, %v4114
    %4116 = vdwg.mxu0
    %v4121 = vcombine.low %v4042, %v4044
    %v4122 = vcombine.low %v4113, %v4115
    %v4124 = vunpack.c.l.s4 1983009808
    %v4125 = vunpack.c.0.s8 %v4124
    %v4126 = vlaneseq
    %v4127 = vshrl.u32 %v4126, 7
    %v4128 = vsub.s32 %v4125, %v4127
    %v4129 = vrot.slane %v4121, %v4128
    %v4131 = vunpack.c.l.s4 1983009808
    %v4132 = vunpack.c.0.s8 %v4131
    %v4133 = vlaneseq
    %v4134 = vshrl.u32 %v4133, 7
    %v4135 = vsub.s32 %v4132, %v4134
    %v4136 = vrot.slane %v4122, %v4135
    %v4137 = vcombine.low %v4129, %v4136
    %v4139 = vadd.f32 %v3974, %v4137
    %v4140 = vxor.u32 %v4139, 2147483648
    %v4141 = vmul.f32 %v4140, 1.442695
    %v4142 = vpow.pop %v4141
    %v4143 = vadd.f32 %v4142, 1.0
    %v4144 = vrcp.pop %v4143
    %v4145 = vmul.f32 1.0, %v4144
    %v4147 = vrot.slane %v4139, 2
    %v4149 = vxor.u32 %v4147, 2147483648
    %v4150 = vmul.f32 %v4149, 1.442695
    %v4151 = vpow.pop %v4150
    %v4152 = vadd.f32 %v4151, 1.0
    %v4153 = vrcp.pop %v4152
    %v4154 = vmul.f32 1.0, %v4153
    %v4155 = vrot.slane %v4139, 4
    %v4157 = vtanh.pop %v4155
    %v4158 = vrot.slane %v4139, 6
    %v4160 = vxor.u32 %v4158, 2147483648
    %v4161 = vmul.f32 %v4160, 1.442695
    %v4162 = vpow.pop %v4161
    %v4163 = vadd.f32 %v4162, 1.0
    %v4164 = vrcp.pop %v4163
    %v4165 = vmul.f32 1.0, %v4164
    %v4166 = vmul.f32 %v4154, %v3658
    %v4167 = vmul.f32 %v4145, %v4157
    %v4168 = vadd.f32 %v4166, %v4167
    %v4169 = vtanh.pop %v4168
    %v4170 = vmul.f32 %v4165, %v4169
    %4171 = vmatprep.subr.mxu0 %v516
    %4172 = vmatpush1.msra.mxu0 %v515
    %4173 = vmatprep.subr.mxu0 %v520
    %4174 = vmatpush1.msra.mxu0 %v519
    %4175 = vmatprep.subr.mxu0 %v524
    %4176 = vmatpush1.msra.mxu0 %v523
    %4177 = vmatprep.subr.mxu0 %v528
    %4178 = vmatpush1.msra.mxu0 %v527
    %4179 = vmatprep.subr.mxu0 %v532
    %4180 = vmatpush1.msra.mxu0 %v531
    %4181 = vmatprep.subr.mxu0 %v536
    %4182 = vmatpush1.msra.mxu0 %v535
    %4183 = vmatprep.subr.mxu0 %v540
    %4184 = vmatpush1.msra.mxu0 %v539
    %4185 = vmatprep.subr.mxu0 %v544
    %4186 = vmatpush1.msra.mxu0 %v543
    %4187 = vmatprep.subr.mxu0 %v548
    %4188 = vmatpush1.msra.mxu0 %v547
    %4189 = vmatprep.subr.mxu0 %v552
    %4190 = vmatpush1.msra.mxu0 %v551
    %4191 = vmatprep.subr.mxu0 %v556
    %4192 = vmatpush1.msra.mxu0 %v555
    %4193 = vmatprep.subr.mxu0 %v560
    %4194 = vmatpush1.msra.mxu0 %v559
    %4195 = vmatprep.subr.mxu0 %v564
    %4196 = vmatpush1.msra.mxu0 %v563
    %4197 = vmatprep.subr.mxu0 %v568
    %4198 = vmatpush1.msra.mxu0 %v567
    %4199 = vmatprep.subr.mxu0 %v572
    %4200 = vmatpush1.msra.mxu0 %v571
    %4201 = vmatprep.subr.mxu0 %v576
    %4202 = vmatpush1.msra.mxu0 %v575
    %4203 = vmatprep.subr.mxu0 0.0
    %4204 = vmatpush1.msra.mxu0 0.0
    %4205 = vmatprep.subr.mxu0 0.0
    %4206 = vmatpush1.msra.mxu0 0.0
    %4207 = vmatprep.subr.mxu0 0.0
    %4208 = vmatpush1.msra.mxu0 0.0
    %4209 = vmatprep.subr.mxu0 0.0
    %4210 = vmatpush1.msra.mxu0 0.0
    %4211 = vmatprep.subr.mxu0 0.0
    %4212 = vmatpush1.msra.mxu0 0.0
    %4213 = vmatprep.subr.mxu0 0.0
    %4214 = vmatpush1.msra.mxu0 0.0
    %4215 = vmatprep.subr.mxu0 0.0
    %4216 = vmatpush1.msra.mxu0 0.0
    %4217 = vmatprep.subr.mxu0 0.0
    %4218 = vmatpush1.msra.mxu0 0.0
    %4219 = vmatprep.subr.mxu0 0.0
    %4220 = vmatpush1.msra.mxu0 0.0
    %4221 = vmatprep.subr.mxu0 0.0
    %4222 = vmatpush1.msra.mxu0 0.0
    %4223 = vmatprep.subr.mxu0 0.0
    %4224 = vmatpush1.msra.mxu0 0.0
    %4225 = vmatprep.subr.mxu0 0.0
    %4226 = vmatpush1.msra.mxu0 0.0
    %4227 = vmatprep.subr.mxu0 0.0
    %4228 = vmatpush1.msra.mxu0 0.0
    %4229 = vmatprep.subr.mxu0 0.0
    %4230 = vmatpush1.msra.mxu0 0.0
    %4231 = vmatprep.subr.mxu0 0.0
    %4232 = vmatpush1.msra.mxu0 0.0
    %4233 = vmatprep.subr.mxu0 0.0
    %4234 = vmatpush1.msra.mxu0 0.0
    %4235 = vmatprep.mubr.f32.mxu0 0.0
    %4236 = vmatmul.mubr.f32.gmra.mrb[0].mxu0 %v4170
    %v4237 = vpop.f32.mrb[0].mxu0
    %v4238 = vadd.f32 %v3898, %v4237
    %v4239 = vpop.f32.mrb[0].mxu0
    %v4240 = vadd.f32 %v3900, %v4239
    %4241 = vdwg.mxu0
    %4242 = vmatprep.subr.mxu0 %v518
    %4243 = vmatpush1.msra.mxu0 %v517
    %4244 = vmatprep.subr.mxu0 %v522
    %4245 = vmatpush1.msra.mxu0 %v521
    %4246 = vmatprep.subr.mxu0 %v526
    %4247 = vmatpush1.msra.mxu0 %v525
    %4248 = vmatprep.subr.mxu0 %v530
    %4249 = vmatpush1.msra.mxu0 %v529
    %4250 = vmatprep.subr.mxu0 %v534
    %4251 = vmatpush1.msra.mxu0 %v533
    %4252 = vmatprep.subr.mxu0 %v538
    %4253 = vmatpush1.msra.mxu0 %v537
    %4254 = vmatprep.subr.mxu0 %v542
    %4255 = vmatpush1.msra.mxu0 %v541
    %4256 = vmatprep.subr.mxu0 %v546
    %4257 = vmatpush1.msra.mxu0 %v545
    %4258 = vmatprep.subr.mxu0 %v550
    %4259 = vmatpush1.msra.mxu0 %v549
    %4260 = vmatprep.subr.mxu0 %v554
    %4261 = vmatpush1.msra.mxu0 %v553
    %4262 = vmatprep.subr.mxu0 %v558
    %4263 = vmatpush1.msra.mxu0 %v557
    %4264 = vmatprep.subr.mxu0 %v562
    %4265 = vmatpush1.msra.mxu0 %v561
    %4266 = vmatprep.subr.mxu0 %v566
    %4267 = vmatpush1.msra.mxu0 %v565
    %4268 = vmatprep.subr.mxu0 %v570
    %4269 = vmatpush1.msra.mxu0 %v569
    %4270 = vmatprep.subr.mxu0 %v574
    %4271 = vmatpush1.msra.mxu0 %v573
    %4272 = vmatprep.subr.mxu0 %v578
    %4273 = vmatpush1.msra.mxu0 %v577
    %4274 = vmatprep.subr.mxu0 0.0
    %4275 = vmatpush1.msra.mxu0 0.0
    %4276 = vmatprep.subr.mxu0 0.0
    %4277 = vmatpush1.msra.mxu0 0.0
    %4278 = vmatprep.subr.mxu0 0.0
    %4279 = vmatpush1.msra.mxu0 0.0
    %4280 = vmatprep.subr.mxu0 0.0
    %4281 = vmatpush1.msra.mxu0 0.0
    %4282 = vmatprep.subr.mxu0 0.0
    %4283 = vmatpush1.msra.mxu0 0.0
    %4284 = vmatprep.subr.mxu0 0.0
    %4285 = vmatpush1.msra.mxu0 0.0
    %4286 = vmatprep.subr.mxu0 0.0
    %4287 = vmatpush1.msra.mxu0 0.0
    %4288 = vmatprep.subr.mxu0 0.0
    %4289 = vmatpush1.msra.mxu0 0.0
    %4290 = vmatprep.subr.mxu0 0.0
    %4291 = vmatpush1.msra.mxu0 0.0
    %4292 = vmatprep.subr.mxu0 0.0
    %4293 = vmatpush1.msra.mxu0 0.0
    %4294 = vmatprep.subr.mxu0 0.0
    %4295 = vmatpush1.msra.mxu0 0.0
    %4296 = vmatprep.subr.mxu0 0.0
    %4297 = vmatpush1.msra.mxu0 0.0
    %4298 = vmatprep.subr.mxu0 0.0
    %4299 = vmatpush1.msra.mxu0 0.0
    %4300 = vmatprep.subr.mxu0 0.0
    %4301 = vmatpush1.msra.mxu0 0.0
    %4302 = vmatprep.subr.mxu0 0.0
    %4303 = vmatpush1.msra.mxu0 0.0
    %4304 = vmatprep.subr.mxu0 0.0
    %4305 = vmatpush1.msra.mxu0 0.0
    %4306 = vmatprep.mubr.f32.mxu0 0.0
    %4307 = vmatmul.mubr.f32.gmra.mrb[0].mxu0 %v4170
    %v4308 = vpop.f32.mrb[0].mxu0
    %v4309 = vadd.f32 %v3969, %v4308
    %v4310 = vpop.f32.mrb[0].mxu0
    %v4311 = vadd.f32 %v3971, %v4310
    %4312 = vdwg.mxu0
    %v4313 = vadd.f32 %v4238, %v726
    %v4314 = vadd.f32 %v4240, %v730
    %v4315 = vadd.f32 %v4309, %v734
    %v4316 = vadd.f32 %v4311, %v738
    %v4317 = vxor.u32 %v4313, 2147483648
    %v4318 = vmul.f32 %v4317, 1.442695
    %v4319 = vpow.pop %v4318
    %v4320 = vadd.f32 %v4319, 1.0
    %v4321 = vrcp.pop %v4320
    %v4322 = vmul.f32 1.0, %v4321
    %v4323 = vxor.u32 %v4314, 2147483648
    %v4324 = vmul.f32 %v4323, 1.442695
    %v4325 = vpow.pop %v4324
    %v4326 = vadd.f32 %v4325, 1.0
    %v4327 = vrcp.pop %v4326
    %v4328 = vmul.f32 1.0, %v4327
    %v4329 = vtanh.pop %v4315
    %v4330 = vxor.u32 %v4316, 2147483648
    %v4331 = vmul.f32 %v4330, 1.442695
    %v4332 = vpow.pop %v4331
    %v4333 = vadd.f32 %v4332, 1.0
    %v4334 = vrcp.pop %v4333
    %v4335 = vmul.f32 1.0, %v4334
    %v4336 = vmul.f32 %v4328, %v3828
    %v4337 = vmul.f32 %v4322, %v4329
    %v4338 = vadd.f32 %v4336, %v4337
    %v4339 = vtanh.pop %v4338
    %v4340 = vmul.f32 %v4335, %v4339
    %4341 = vst [vmem:[%s5] sm:$0x3] %v4340
    // Predicated region
    $region30: #{lstm_net_forward.1} parent=1 // pred_check
      _
    $region31: #{lstm_net_forward.1} parent=1 // pred_check_branch
      %4343 = sbr.rel (0) target = $region33
    $region32: #{lstm_net_forward.1} parent=1 // pred_region
      _
    $region33: #{lstm_net_forward.1} parent=1 // pred_fallthru
      _
    // Predicated region
    $region34: #{lstm_net_forward.1} parent=1 // pred_check
      _
    $region35: #{lstm_net_forward.1} parent=1 // pred_check_branch
      %4345 = sbr.rel (0) target = $region37
    $region36: #{lstm_net_forward.1} parent=1 // pred_region
      _
    $region37: #{lstm_net_forward.1} parent=1 // pred_fallthru
      _
    %4346 = vsyncpa [#allocation3], 1
    %4347 = vsyncpa [#allocation5], 1

</llo_original>
